<compile_context>
chip_gen: v6e
topology: v6e:2x2x1
jax: 0.10.0
libtpu: 0.0.40
codegen_flags: <defaults>
</compile_context>

<pallas_src>
import functools
import math

import jax
import jax.numpy as jnp
from jax.experimental import pallas as pl
from jax.experimental.pallas import tpu as pltpu

# ----------------------- small synthetic BERT config -----------------------
VOCAB = 100
HIDDEN = 32
N_HEADS = 2
HEAD_DIM = HIDDEN // N_HEADS
N_LAYERS = 2
INTERMEDIATE = 64
MAX_POS = 16
N_TYPES = 2
LN_EPS = 1e-12
NUM_CLASSES = 2
ATTN_SCALE = 1.0 / math.sqrt(HEAD_DIM)
NEG_INF = -1e9


# ------------------------------ fused Pallas kernel ------------------------------
def _fused_forward_kernel(
    ids_ref, mask_ref,
    wemb_ref, pemb_ref,
    emb_g_ref, emb_b_ref,
    q_w_ref, q_b_ref,
    kT_w_ref, kT_b_ref,
    v_w_ref, v_b_ref,
    ao_w_ref, ao_b_ref,
    ln1_g_ref, ln1_b_ref,
    i_w_ref, i_b_ref,
    o_w_ref, o_b_ref,
    ln2_g_ref, ln2_b_ref,
    cls_w_ref, cls_b_ref,
    logits_ref,
):
    f32 = jnp.float32
    BS = ids_ref.shape[0]            # B * S
    B = logits_ref.shape[0]
    S = BS // B
    VOCAB_ = wemb_ref.shape[0]
    MAXP = pemb_ref.shape[0]
    L = q_w_ref.shape[0]
    NH = q_w_ref.shape[1]

    def layernorm(x, g, b):
        # one-pass variance: two INDEPENDENT lane reductions instead of two
        # dependent ones (mean, then mean of squared deviation).
        mean = jnp.mean(x, axis=-1, keepdims=True)
        mean_sq = jnp.mean(x * x, axis=-1, keepdims=True)
        var = mean_sq - mean * mean
        return (x - mean) * jax.lax.rsqrt(var + LN_EPS) * g + b

    # ---- word embedding via one-hot matmul (MXU is idle at this size) ----
    ids = ids_ref[...]                                               # (BS, 1) int32
    vcol = jax.lax.broadcasted_iota(jnp.int32, (BS, VOCAB_), 1)
    onehot = (vcol == ids).astype(f32)                               # (BS, VOCAB)
    x = jnp.dot(onehot, wemb_ref[...], preferred_element_type=f32)   # (BS, H)

    # ---- position embedding via selection matmul (no int div/mod needed) ----
    r = jax.lax.broadcasted_iota(jnp.int32, (BS, MAXP), 0)
    c = jax.lax.broadcasted_iota(jnp.int32, (BS, MAXP), 1)
    pos_ok = (c < S) & (r == c)                                      # batch 0
    for b in range(1, B):
        pos_ok = pos_ok | ((c < S) & (r == b * S + c))
    x = x + jnp.dot(pos_ok.astype(f32), pemb_ref[...], preferred_element_type=f32)

    # embedding LayerNorm (token-type embedding already folded into word_emb)
    x = layernorm(x, emb_g_ref[...], emb_b_ref[...])

    # ---- additive attention bias built in-kernel from the key-padding mask ----
    # block-diagonal (no cross-batch attention) + mask over keys.
    rr = jax.lax.broadcasted_iota(jnp.int32, (BS, BS), 0)
    cc = jax.lax.broadcasted_iota(jnp.int32, (BS, BS), 1)
    same = (rr < S) & (cc < S)                                       # batch 0 block
    for b in range(1, B):
        lo, hi = b * S, (b + 1) * S
        same = same | ((rr >= lo) & (rr < hi) & (cc >= lo) & (cc < hi))
    key_keep = mask_ref[...] > 0                                     # (1, BS) broadcasts
    bias = jnp.where(same & key_keep, 0.0, NEG_INF).astype(f32)      # (BS, BS)

    # ---- encoder layers (static unroll; weights indexed per layer/head) ----
    for l in range(L):
        xT = jnp.transpose(x)                 # K-side transpose ONCE per layer
        attn = ao_b_ref[l]                    # (1, H), broadcasts on add
        for h in range(NH):
            # per-head weights pre-split at prepare time -> no activation lane slicing
            qh = jnp.dot(x, q_w_ref[l, h], preferred_element_type=f32) + q_b_ref[l, h]
            khT = jnp.dot(kT_w_ref[l, h], xT, preferred_element_type=f32) + kT_b_ref[l, h]
            vh = jnp.dot(x, v_w_ref[l, h], preferred_element_type=f32) + v_b_ref[l, h]

            s = jnp.dot(qh, khT, preferred_element_type=f32) * ATTN_SCALE + bias
            s = s - jnp.max(s, axis=-1, keepdims=True)
            p = jnp.exp(s)
            p = p * pl.reciprocal(jnp.sum(p, axis=-1, keepdims=True), approx=True)

            ctx = jnp.dot(p, vh, preferred_element_type=f32)          # (BS, dh)
            attn = attn + jnp.dot(ctx, ao_w_ref[l, h], preferred_element_type=f32)

        # residual + LN (attention dropout = identity at eval)
        x = layernorm(attn + x, ln1_g_ref[l], ln1_b_ref[l])

        # ---- feed-forward ----
        inter = jnp.dot(x, i_w_ref[l], preferred_element_type=f32) + i_b_ref[l]
        # TODO(synk): HF BERT default activation is exact (erf) GELU; tanh-approx
        # GELU used here for robust Mosaic lowering (<1e-3 relative difference).
        inter = jax.nn.gelu(inter, approximate=True)
        ffn = jnp.dot(inter, o_w_ref[l], preferred_element_type=f32) + o_b_ref[l]
        x = layernorm(ffn + x, ln2_g_ref[l], ln2_b_ref[l])

    # ---- [CLS] rows -> classifier (text_dropout(0.3) is identity at eval) ----
    all_logits = (jnp.dot(x, cls_w_ref[...], preferred_element_type=f32)
                  + cls_b_ref[...])                                   # (BS, 2)
    for b in range(B):
        logits_ref[b:b + 1, :] = all_logits[b * S:b * S + 1, :].astype(logits_ref.dtype)


def _full_spec(shape):
    nd = len(shape)
    return pl.BlockSpec(shape, lambda i, _nd=nd: (0,) * _nd)


def fused_bert_forward(fused, ids_col, mask_row, batch_size):
    operands = [
        ids_col, mask_row,
        fused["word_emb_eff"], fused["pos_emb"],
        fused["emb_ln_g"], fused["emb_ln_b"],
        fused["q_w"], fused["q_b"],
        fused["kT_w"], fused["kT_b"],
        fused["v_w"], fused["v_b"],
        fused["ao_w"], fused["ao_b"],
        fused["ln1_g"], fused["ln1_b"],
        fused["i_w"], fused["i_b"],
        fused["o_w"], fused["o_b"],
        fused["ln2_g"], fused["ln2_b"],
        fused["cls_w"], fused["cls_b"],
    ]
    # TODO(synk): on v7x (2 TensorCores/chip) the batch could be split over
    # grid=(B,) with dimension_semantics=("parallel",); grid=(1,) is kept here
    # because it is optimal on single-TC v5e/v6e and avoids per-step overhead.
    return pl.pallas_call(
        _fused_forward_kernel,
        out_shape=jax.ShapeDtypeStruct((batch_size, NUM_CLASSES), jnp.float32),
        grid=(1,),
        in_specs=[_full_spec(op.shape) for op in operands],
        out_specs=_full_spec((batch_size, NUM_CLASSES)),
        compiler_params=pltpu.CompilerParams(dimension_semantics=("arbitrary",)),
    )(*operands)


# ------------------------------ parameters ------------------------------
def init_params(key):
    keys = iter(jax.random.split(key, 128))

    def nrm(shape):
        return 0.02 * jax.random.normal(next(keys), shape, jnp.float32)

    params = {
        "word_emb": nrm((VOCAB, HIDDEN)),
        "pos_emb": nrm((MAX_POS, HIDDEN)),
        "type_emb": nrm((N_TYPES, HIDDEN)),
        "emb_ln_g": jnp.ones((HIDDEN,), jnp.float32),
        "emb_ln_b": jnp.zeros((HIDDEN,), jnp.float32),
        "layers": [],
        "cls_w": nrm((HIDDEN, NUM_CLASSES)),
        "cls_b": jnp.zeros((NUM_CLASSES,), jnp.float32),
    }
    for _ in range(N_LAYERS):
        params["layers"].append({
            "q_w": nrm((HIDDEN, HIDDEN)), "q_b": jnp.zeros((HIDDEN,), jnp.float32),
            "k_w": nrm((HIDDEN, HIDDEN)), "k_b": jnp.zeros((HIDDEN,), jnp.float32),
            "v_w": nrm((HIDDEN, HIDDEN)), "v_b": jnp.zeros((HIDDEN,), jnp.float32),
            "ao_w": nrm((HIDDEN, HIDDEN)), "ao_b": jnp.zeros((HIDDEN,), jnp.float32),
            "ln1_g": jnp.ones((HIDDEN,), jnp.float32),
            "ln1_b": jnp.zeros((HIDDEN,), jnp.float32),
            "i_w": nrm((HIDDEN, INTERMEDIATE)), "i_b": jnp.zeros((INTERMEDIATE,), jnp.float32),
            "o_w": nrm((INTERMEDIATE, HIDDEN)), "o_b": jnp.zeros((HIDDEN,), jnp.float32),
            "ln2_g": jnp.ones((HIDDEN,), jnp.float32),
            "ln2_b": jnp.zeros((HIDDEN,), jnp.float32),
        })
    return params


def prepare_fused_params(params):
    """One-time prep: fold type-0 embedding into word_emb, split Q/K/V/out-proj
    weights per head (K pre-transposed), stack per-layer params, hoist reshapes."""
    layers = params["layers"]
    dh = HEAD_DIM
    r1 = lambda a, n: a.reshape(1, n)

    def stack_heads(fn):
        return jnp.stack([jnp.stack([fn(lp, h) for h in range(N_HEADS)])
                          for lp in layers])

    return {
        # token_type_ids are all zeros in this model -> fold type_emb[0] into word_emb
        "word_emb_eff": params["word_emb"] + params["type_emb"][0:1, :],
        "pos_emb": params["pos_emb"],
        "emb_ln_g": r1(params["emb_ln_g"], HIDDEN),
        "emb_ln_b": r1(params["emb_ln_b"], HIDDEN),
        "q_w": stack_heads(lambda lp, h: lp["q_w"][:, h * dh:(h + 1) * dh]),              # (L,nH,H,dh)
        "q_b": stack_heads(lambda lp, h: lp["q_b"][h * dh:(h + 1) * dh].reshape(1, dh)),  # (L,nH,1,dh)
        "kT_w": stack_heads(lambda lp, h: lp["k_w"][:, h * dh:(h + 1) * dh].T),           # (L,nH,dh,H)
        "kT_b": stack_heads(lambda lp, h: lp["k_b"][h * dh:(h + 1) * dh].reshape(dh, 1)), # (L,nH,dh,1)
        "v_w": stack_heads(lambda lp, h: lp["v_w"][:, h * dh:(h + 1) * dh]),              # (L,nH,H,dh)
        "v_b": stack_heads(lambda lp, h: lp["v_b"][h * dh:(h + 1) * dh].reshape(1, dh)),  # (L,nH,1,dh)
        "ao_w": stack_heads(lambda lp, h: lp["ao_w"][h * dh:(h + 1) * dh, :]),            # (L,nH,dh,H)
        "ao_b": jnp.stack([r1(lp["ao_b"], HIDDEN) for lp in layers]),
        "ln1_g": jnp.stack([r1(lp["ln1_g"], HIDDEN) for lp in layers]),
        "ln1_b": jnp.stack([r1(lp["ln1_b"], HIDDEN) for lp in layers]),
        "i_w": jnp.stack([lp["i_w"] for lp in layers]),
        "i_b": jnp.stack([r1(lp["i_b"], INTERMEDIATE) for lp in layers]),
        "o_w": jnp.stack([lp["o_w"] for lp in layers]),
        "o_b": jnp.stack([r1(lp["o_b"], HIDDEN) for lp in layers]),
        "ln2_g": jnp.stack([r1(lp["ln2_g"], HIDDEN) for lp in layers]),
        "ln2_b": jnp.stack([r1(lp["ln2_b"], HIDDEN) for lp in layers]),
        "cls_w": params["cls_w"],
        "cls_b": r1(params["cls_b"], NUM_CLASSES),
    }


# ------------------------------ forward pass ------------------------------
def text_only_spammer_forward(fused, input_ids, attention_mask):
    B, S = input_ids.shape
    # Metadata-only reshapes of the int32 inputs; everything else (embeddings,
    # mask construction, encoder, classifier) is one pallas_call.
    ids_col = input_ids.reshape(B * S, 1).astype(jnp.int32)
    mask_row = attention_mask.reshape(1, B * S).astype(jnp.int32)
    return fused_bert_forward(fused, ids_col, mask_row, B)


# ------------------------------ main ------------------------------
if __name__ == "__main__":
    key = jax.random.PRNGKey(0)
    pkey, ikey = jax.random.split(key)
    params = init_params(pkey)
    fused = prepare_fused_params(params)

    B, S = 2, 8
    input_ids = jax.random.randint(ikey, (B, S), 0, VOCAB, dtype=jnp.int32)
    attention_mask = jnp.ones((B, S), jnp.int32).at[1, 6:].set(0)

    fwd = jax.jit(functools.partial(text_only_spammer_forward, fused))
    logits = fwd(input_ids, attention_mask)
    jax.block_until_ready(logits)
    assert logits.shape == (B, NUM_CLASSES), logits.shape
    print("KERNEL_OK")
</pallas_src>

<mosaic_0001>
module attributes {stable_mosaic.version = 11 : i64} {
  func.func @_fused_forward_kernel(%arg0: i32, %arg1: memref<16x1xi32, #tpu.memory_space<vmem>>, %arg2: memref<1x16xi32, #tpu.memory_space<vmem>>, %arg3: memref<100x32xf32, #tpu.memory_space<vmem>>, %arg4: memref<16x32xf32, #tpu.memory_space<vmem>>, %arg5: memref<1x32xf32, #tpu.memory_space<vmem>>, %arg6: memref<1x32xf32, #tpu.memory_space<vmem>>, %arg7: memref<2x2x32x16xf32, #tpu.memory_space<vmem>>, %arg8: memref<2x2x1x16xf32, #tpu.memory_space<vmem>>, %arg9: memref<2x2x16x32xf32, #tpu.memory_space<vmem>>, %arg10: memref<2x2x16x1xf32, #tpu.memory_space<vmem>>, %arg11: memref<2x2x32x16xf32, #tpu.memory_space<vmem>>, %arg12: memref<2x2x1x16xf32, #tpu.memory_space<vmem>>, %arg13: memref<2x2x16x32xf32, #tpu.memory_space<vmem>>, %arg14: memref<2x1x32xf32, #tpu.memory_space<vmem>>, %arg15: memref<2x1x32xf32, #tpu.memory_space<vmem>>, %arg16: memref<2x1x32xf32, #tpu.memory_space<vmem>>, %arg17: memref<2x32x64xf32, #tpu.memory_space<vmem>>, %arg18: memref<2x1x64xf32, #tpu.memory_space<vmem>>, %arg19: memref<2x64x32xf32, #tpu.memory_space<vmem>>, %arg20: memref<2x1x32xf32, #tpu.memory_space<vmem>>, %arg21: memref<2x1x32xf32, #tpu.memory_space<vmem>>, %arg22: memref<2x1x32xf32, #tpu.memory_space<vmem>>, %arg23: memref<32x2xf32, #tpu.memory_space<vmem>>, %arg24: memref<1x2xf32, #tpu.memory_space<vmem>>, %arg25: memref<2x2xf32, #tpu.memory_space<vmem>>) attributes {dimension_semantics = [#tpu.dimension_semantics<arbitrary>], iteration_bounds = array<i64: 1>, scalar_prefetch = 0 : i64, scratch_operands = 0 : i64, tpu.core_type = #tpu.core_type<tc>, window_params = [{pipeline_mode = #tpu.pipeline_mode<synchronous>, transform_indices = @transform_0, window_bounds = array<i64: 16, 1>}, {pipeline_mode = #tpu.pipeline_mode<synchronous>, transform_indices = @transform_1, window_bounds = array<i64: 1, 16>}, {pipeline_mode = #tpu.pipeline_mode<synchronous>, transform_indices = @transform_2, window_bounds = array<i64: 100, 32>}, {pipeline_mode = #tpu.pipeline_mode<synchronous>, transform_indices = @transform_3, window_bounds = array<i64: 16, 32>}, {pipeline_mode = #tpu.pipeline_mode<synchronous>, transform_indices = @transform_4, window_bounds = array<i64: 1, 32>}, {pipeline_mode = #tpu.pipeline_mode<synchronous>, transform_indices = @transform_5, window_bounds = array<i64: 1, 32>}, {pipeline_mode = #tpu.pipeline_mode<synchronous>, transform_indices = @transform_6, window_bounds = array<i64: 2, 2, 32, 16>}, {pipeline_mode = #tpu.pipeline_mode<synchronous>, transform_indices = @transform_7, window_bounds = array<i64: 2, 2, 1, 16>}, {pipeline_mode = #tpu.pipeline_mode<synchronous>, transform_indices = @transform_8, window_bounds = array<i64: 2, 2, 16, 32>}, {pipeline_mode = #tpu.pipeline_mode<synchronous>, transform_indices = @transform_9, window_bounds = array<i64: 2, 2, 16, 1>}, {pipeline_mode = #tpu.pipeline_mode<synchronous>, transform_indices = @transform_10, window_bounds = array<i64: 2, 2, 32, 16>}, {pipeline_mode = #tpu.pipeline_mode<synchronous>, transform_indices = @transform_11, window_bounds = array<i64: 2, 2, 1, 16>}, {pipeline_mode = #tpu.pipeline_mode<synchronous>, transform_indices = @transform_12, window_bounds = array<i64: 2, 2, 16, 32>}, {pipeline_mode = #tpu.pipeline_mode<synchronous>, transform_indices = @transform_13, window_bounds = array<i64: 2, 1, 32>}, {pipeline_mode = #tpu.pipeline_mode<synchronous>, transform_indices = @transform_14, window_bounds = array<i64: 2, 1, 32>}, {pipeline_mode = #tpu.pipeline_mode<synchronous>, transform_indices = @transform_15, window_bounds = array<i64: 2, 1, 32>}, {pipeline_mode = #tpu.pipeline_mode<synchronous>, transform_indices = @transform_16, window_bounds = array<i64: 2, 32, 64>}, {pipeline_mode = #tpu.pipeline_mode<synchronous>, transform_indices = @transform_17, window_bounds = array<i64: 2, 1, 64>}, {pipeline_mode = #tpu.pipeline_mode<synchronous>, transform_indices = @transform_18, window_bounds = array<i64: 2, 64, 32>}, {pipeline_mode = #tpu.pipeline_mode<synchronous>, transform_indices = @transform_19, window_bounds = array<i64: 2, 1, 32>}, {pipeline_mode = #tpu.pipeline_mode<synchronous>, transform_indices = @transform_20, window_bounds = array<i64: 2, 1, 32>}, {pipeline_mode = #tpu.pipeline_mode<synchronous>, transform_indices = @transform_21, window_bounds = array<i64: 2, 1, 32>}, {pipeline_mode = #tpu.pipeline_mode<synchronous>, transform_indices = @transform_22, window_bounds = array<i64: 32, 2>}, {pipeline_mode = #tpu.pipeline_mode<synchronous>, transform_indices = @transform_23, window_bounds = array<i64: 1, 2>}, {pipeline_mode = #tpu.pipeline_mode<synchronous>, transform_indices = @transform_24, window_bounds = array<i64: 2, 2>}]} {
    %c0 = arith.constant 0 : index
    %c0_0 = arith.constant 0 : index
    %0 = vector.load %arg1[%c0, %c0_0] : memref<16x1xi32, #tpu.memory_space<vmem>>, vector<16x1xi32>
    %1 = tpu.iota {dimensions = array<i32: 1>} : vector<16x100xi32>
    %2 = vector.broadcast %0 : vector<16x1xi32> to vector<16x100xi32>
    %3 = arith.cmpi eq, %1, %2 : vector<16x100xi32>
    %4 = arith.extui %3 : vector<16x100xi1> to vector<16x100xi32>
    %5 = arith.sitofp %4 : vector<16x100xi32> to vector<16x100xf32>
    %c0_1 = arith.constant 0 : index
    %c0_2 = arith.constant 0 : index
    %6 = vector.load %arg3[%c0_1, %c0_2] : memref<100x32xf32, #tpu.memory_space<vmem>>, vector<100x32xf32>
    %cst = arith.constant dense<0.000000e+00> : vector<16x32xf32>
    %7 = tpu.matmul %5, %6, %cst {dimension_numbers = #tpu.dot_dimension_numbers<[1], [0], [0], [1], [0, 0, 1, 1], [], []>} : vector<16x100xf32>, vector<100x32xf32>, vector<16x32xf32> -> vector<16x32xf32>
    %8 = tpu.iota {dimensions = array<i32: 0>} : vector<16x16xi32>
    %9 = tpu.iota {dimensions = array<i32: 1>} : vector<16x16xi32>
    %c8_i32 = arith.constant 8 : i32
    %10 = vector.broadcast %c8_i32 : i32 to vector<16x16xi32>
    %11 = arith.cmpi slt, %9, %10 : vector<16x16xi32>
    %12 = arith.cmpi eq, %8, %9 : vector<16x16xi32>
    %13 = arith.andi %11, %12 : vector<16x16xi1>
    %c8_i32_3 = arith.constant 8 : i32
    %14 = vector.broadcast %c8_i32_3 : i32 to vector<16x16xi32>
    %15 = arith.cmpi slt, %9, %14 : vector<16x16xi32>
    %c8_i32_4 = arith.constant 8 : i32
    %16 = vector.broadcast %c8_i32_4 : i32 to vector<16x16xi32>
    %17 = arith.addi %16, %9 : vector<16x16xi32>
    %18 = arith.cmpi eq, %8, %17 : vector<16x16xi32>
    %19 = arith.andi %15, %18 : vector<16x16xi1>
    %20 = arith.ori %13, %19 : vector<16x16xi1>
    %21 = arith.extui %20 : vector<16x16xi1> to vector<16x16xi32>
    %22 = arith.sitofp %21 : vector<16x16xi32> to vector<16x16xf32>
    %c0_5 = arith.constant 0 : index
    %c0_6 = arith.constant 0 : index
    %23 = vector.load %arg4[%c0_5, %c0_6] : memref<16x32xf32, #tpu.memory_space<vmem>>, vector<16x32xf32>
    %cst_7 = arith.constant dense<0.000000e+00> : vector<16x32xf32>
    %24 = tpu.matmul %22, %23, %cst_7 {dimension_numbers = #tpu.dot_dimension_numbers<[1], [0], [0], [1], [0, 0, 1, 1], [], []>} : vector<16x16xf32>, vector<16x32xf32>, vector<16x32xf32> -> vector<16x32xf32>
    %25 = arith.addf %7, %24 : vector<16x32xf32>
    %c0_8 = arith.constant 0 : index
    %c0_9 = arith.constant 0 : index
    %26 = vector.load %arg5[%c0_8, %c0_9] : memref<1x32xf32, #tpu.memory_space<vmem>>, vector<1x32xf32>
    %c0_10 = arith.constant 0 : index
    %c0_11 = arith.constant 0 : index
    %27 = vector.load %arg6[%c0_10, %c0_11] : memref<1x32xf32, #tpu.memory_space<vmem>>, vector<1x32xf32>
    %cst_12 = arith.constant dense<0.000000e+00> : vector<16xf32>
    %28 = vector.multi_reduction <add>, %25, %cst_12 [1] : vector<16x32xf32> to vector<16xf32>
    %29 = vector.shape_cast %28 : vector<16xf32> to vector<16x1xf32>
    %cst_13 = arith.constant 3.200000e+01 : f32
    %30 = vector.broadcast %cst_13 : f32 to vector<16x1xf32>
    %31 = arith.divf %29, %30 : vector<16x1xf32>
    %32 = arith.mulf %25, %25 : vector<16x32xf32>
    %cst_14 = arith.constant dense<0.000000e+00> : vector<16xf32>
    %33 = vector.multi_reduction <add>, %32, %cst_14 [1] : vector<16x32xf32> to vector<16xf32>
    %34 = vector.shape_cast %33 : vector<16xf32> to vector<16x1xf32>
    %cst_15 = arith.constant 3.200000e+01 : f32
    %35 = vector.broadcast %cst_15 : f32 to vector<16x1xf32>
    %36 = arith.divf %34, %35 : vector<16x1xf32>
    %37 = arith.mulf %31, %31 : vector<16x1xf32>
    %38 = arith.subf %36, %37 : vector<16x1xf32>
    %39 = vector.broadcast %31 : vector<16x1xf32> to vector<16x32xf32>
    %40 = arith.subf %25, %39 : vector<16x32xf32>
    %cst_16 = arith.constant 9.99999996E-13 : f32
    %41 = vector.broadcast %cst_16 : f32 to vector<16x1xf32>
    %42 = arith.addf %38, %41 : vector<16x1xf32>
    %43 = math.rsqrt %42 : vector<16x1xf32>
    %44 = vector.broadcast %43 : vector<16x1xf32> to vector<16x32xf32>
    %45 = arith.mulf %40, %44 : vector<16x32xf32>
    %46 = vector.broadcast %26 : vector<1x32xf32> to vector<16x32xf32>
    %47 = arith.mulf %45, %46 : vector<16x32xf32>
    %48 = vector.broadcast %27 : vector<1x32xf32> to vector<16x32xf32>
    %49 = arith.addf %47, %48 : vector<16x32xf32>
    %50 = tpu.iota {dimensions = array<i32: 0>} : vector<16x16xi32>
    %51 = tpu.iota {dimensions = array<i32: 1>} : vector<16x16xi32>
    %c8_i32_17 = arith.constant 8 : i32
    %52 = vector.broadcast %c8_i32_17 : i32 to vector<16x16xi32>
    %53 = arith.cmpi slt, %50, %52 : vector<16x16xi32>
    %c8_i32_18 = arith.constant 8 : i32
    %54 = vector.broadcast %c8_i32_18 : i32 to vector<16x16xi32>
    %55 = arith.cmpi slt, %51, %54 : vector<16x16xi32>
    %56 = arith.andi %53, %55 : vector<16x16xi1>
    %c8_i32_19 = arith.constant 8 : i32
    %57 = vector.broadcast %c8_i32_19 : i32 to vector<16x16xi32>
    %58 = arith.cmpi sge, %50, %57 : vector<16x16xi32>
    %c16_i32 = arith.constant 16 : i32
    %59 = vector.broadcast %c16_i32 : i32 to vector<16x16xi32>
    %60 = arith.cmpi slt, %50, %59 : vector<16x16xi32>
    %61 = arith.andi %58, %60 : vector<16x16xi1>
    %c8_i32_20 = arith.constant 8 : i32
    %62 = vector.broadcast %c8_i32_20 : i32 to vector<16x16xi32>
    %63 = arith.cmpi sge, %51, %62 : vector<16x16xi32>
    %64 = arith.andi %61, %63 : vector<16x16xi1>
    %c16_i32_21 = arith.constant 16 : i32
    %65 = vector.broadcast %c16_i32_21 : i32 to vector<16x16xi32>
    %66 = arith.cmpi slt, %51, %65 : vector<16x16xi32>
    %67 = arith.andi %64, %66 : vector<16x16xi1>
    %68 = arith.ori %56, %67 : vector<16x16xi1>
    %c0_22 = arith.constant 0 : index
    %c0_23 = arith.constant 0 : index
    %69 = vector.load %arg2[%c0_22, %c0_23] : memref<1x16xi32, #tpu.memory_space<vmem>>, vector<1x16xi32>
    %c0_i32 = arith.constant 0 : i32
    %70 = vector.broadcast %c0_i32 : i32 to vector<1x16xi32>
    %71 = arith.cmpi sgt, %69, %70 : vector<1x16xi32>
    %72 = vector.broadcast %71 : vector<1x16xi1> to vector<16x16xi1>
    %73 = arith.andi %68, %72 : vector<16x16xi1>
    %cst_24 = arith.constant 0.000000e+00 : f32
    %cst_25 = arith.constant -1.000000e+09 : f32
    %74 = vector.broadcast %cst_24 : f32 to vector<16x16xf32>
    %75 = vector.broadcast %cst_25 : f32 to vector<16x16xf32>
    %76 = arith.select %73, %74, %75 : vector<16x16xi1>, vector<16x16xf32>
    %77 = tpu.transpose %49, [1, 0] : vector<16x32xf32> -> vector<32x16xf32>
    %c0_26 = arith.constant 0 : index
    %c0_27 = arith.constant 0 : index
    %c0_28 = arith.constant 0 : index
    %78 = vector.load %arg14[%c0_26, %c0_27, %c0_28] : memref<2x1x32xf32, #tpu.memory_space<vmem>>, vector<1x1x32xf32>
    %79 = vector.shape_cast %78 : vector<1x1x32xf32> to vector<1x32xf32>
    %c0_29 = arith.constant 0 : index
    %c0_30 = arith.constant 0 : index
    %c0_31 = arith.constant 0 : index
    %c0_32 = arith.constant 0 : index
    %80 = vector.load %arg7[%c0_29, %c0_30, %c0_31, %c0_32] : memref<2x2x32x16xf32, #tpu.memory_space<vmem>>, vector<1x1x32x16xf32>
    %81 = vector.shape_cast %80 : vector<1x1x32x16xf32> to vector<32x16xf32>
    %cst_33 = arith.constant dense<0.000000e+00> : vector<16x16xf32>
    %82 = tpu.matmul %49, %81, %cst_33 {dimension_numbers = #tpu.dot_dimension_numbers<[1], [0], [0], [1], [0, 0, 1, 1], [], []>} : vector<16x32xf32>, vector<32x16xf32>, vector<16x16xf32> -> vector<16x16xf32>
    %c0_34 = arith.constant 0 : index
    %c0_35 = arith.constant 0 : index
    %c0_36 = arith.constant 0 : index
    %c0_37 = arith.constant 0 : index
    %83 = vector.load %arg8[%c0_34, %c0_35, %c0_36, %c0_37] : memref<2x2x1x16xf32, #tpu.memory_space<vmem>>, vector<1x1x1x16xf32>
    %84 = vector.shape_cast %83 : vector<1x1x1x16xf32> to vector<1x16xf32>
    %85 = vector.broadcast %84 : vector<1x16xf32> to vector<16x16xf32>
    %86 = arith.addf %82, %85 : vector<16x16xf32>
    %c0_38 = arith.constant 0 : index
    %c0_39 = arith.constant 0 : index
    %c0_40 = arith.constant 0 : index
    %c0_41 = arith.constant 0 : index
    %87 = vector.load %arg9[%c0_38, %c0_39, %c0_40, %c0_41] : memref<2x2x16x32xf32, #tpu.memory_space<vmem>>, vector<1x1x16x32xf32>
    %88 = vector.shape_cast %87 : vector<1x1x16x32xf32> to vector<16x32xf32>
    %cst_42 = arith.constant dense<0.000000e+00> : vector<16x16xf32>
    %89 = tpu.matmul %88, %77, %cst_42 {dimension_numbers = #tpu.dot_dimension_numbers<[1], [0], [0], [1], [0, 0, 1, 1], [], []>} : vector<16x32xf32>, vector<32x16xf32>, vector<16x16xf32> -> vector<16x16xf32>
    %c0_43 = arith.constant 0 : index
    %c0_44 = arith.constant 0 : index
    %c0_45 = arith.constant 0 : index
    %c0_46 = arith.constant 0 : index
    %90 = vector.load %arg10[%c0_43, %c0_44, %c0_45, %c0_46] : memref<2x2x16x1xf32, #tpu.memory_space<vmem>>, vector<1x1x16x1xf32>
    %91 = vector.shape_cast %90 : vector<1x1x16x1xf32> to vector<16x1xf32>
    %92 = vector.broadcast %91 : vector<16x1xf32> to vector<16x16xf32>
    %93 = arith.addf %89, %92 : vector<16x16xf32>
    %c0_47 = arith.constant 0 : index
    %c0_48 = arith.constant 0 : index
    %c0_49 = arith.constant 0 : index
    %c0_50 = arith.constant 0 : index
    %94 = vector.load %arg11[%c0_47, %c0_48, %c0_49, %c0_50] : memref<2x2x32x16xf32, #tpu.memory_space<vmem>>, vector<1x1x32x16xf32>
    %95 = vector.shape_cast %94 : vector<1x1x32x16xf32> to vector<32x16xf32>
    %cst_51 = arith.constant dense<0.000000e+00> : vector<16x16xf32>
    %96 = tpu.matmul %49, %95, %cst_51 {dimension_numbers = #tpu.dot_dimension_numbers<[1], [0], [0], [1], [0, 0, 1, 1], [], []>} : vector<16x32xf32>, vector<32x16xf32>, vector<16x16xf32> -> vector<16x16xf32>
    %c0_52 = arith.constant 0 : index
    %c0_53 = arith.constant 0 : index
    %c0_54 = arith.constant 0 : index
    %c0_55 = arith.constant 0 : index
    %97 = vector.load %arg12[%c0_52, %c0_53, %c0_54, %c0_55] : memref<2x2x1x16xf32, #tpu.memory_space<vmem>>, vector<1x1x1x16xf32>
    %98 = vector.shape_cast %97 : vector<1x1x1x16xf32> to vector<1x16xf32>
    %99 = vector.broadcast %98 : vector<1x16xf32> to vector<16x16xf32>
    %100 = arith.addf %96, %99 : vector<16x16xf32>
    %cst_56 = arith.constant dense<0.000000e+00> : vector<16x16xf32>
    %101 = tpu.matmul %86, %93, %cst_56 {dimension_numbers = #tpu.dot_dimension_numbers<[1], [0], [0], [1], [0, 0, 1, 1], [], []>} : vector<16x16xf32>, vector<16x16xf32>, vector<16x16xf32> -> vector<16x16xf32>
    %cst_57 = arith.constant 2.500000e-01 : f32
    %102 = vector.broadcast %cst_57 : f32 to vector<16x16xf32>
    %103 = arith.mulf %101, %102 : vector<16x16xf32>
    %104 = arith.addf %103, %76 : vector<16x16xf32>
    %cst_58 = arith.constant dense<0xFF800000> : vector<16xf32>
    %105 = vector.multi_reduction <maximumf>, %104, %cst_58 [1] : vector<16x16xf32> to vector<16xf32>
    %106 = vector.shape_cast %105 : vector<16xf32> to vector<16x1xf32>
    %107 = vector.broadcast %106 : vector<16x1xf32> to vector<16x16xf32>
    %108 = arith.subf %104, %107 : vector<16x16xf32>
    %109 = math.exp %108 : vector<16x16xf32>
    %cst_59 = arith.constant dense<0.000000e+00> : vector<16xf32>
    %110 = vector.multi_reduction <add>, %109, %cst_59 [1] : vector<16x16xf32> to vector<16xf32>
    %111 = vector.shape_cast %110 : vector<16xf32> to vector<16x1xf32>
    %112 = tpu.reciprocal %111 {approx = true} : vector<16x1xf32> -> vector<16x1xf32>
    %113 = vector.broadcast %112 : vector<16x1xf32> to vector<16x16xf32>
    %114 = arith.mulf %109, %113 : vector<16x16xf32>
    %cst_60 = arith.constant dense<0.000000e+00> : vector<16x16xf32>
    %115 = tpu.matmul %114, %100, %cst_60 {dimension_numbers = #tpu.dot_dimension_numbers<[1], [0], [0], [1], [0, 0, 1, 1], [], []>} : vector<16x16xf32>, vector<16x16xf32>, vector<16x16xf32> -> vector<16x16xf32>
    %c0_61 = arith.constant 0 : index
    %c0_62 = arith.constant 0 : index
    %c0_63 = arith.constant 0 : index
    %c0_64 = arith.constant 0 : index
    %116 = vector.load %arg13[%c0_61, %c0_62, %c0_63, %c0_64] : memref<2x2x16x32xf32, #tpu.memory_space<vmem>>, vector<1x1x16x32xf32>
    %117 = vector.shape_cast %116 : vector<1x1x16x32xf32> to vector<16x32xf32>
    %cst_65 = arith.constant dense<0.000000e+00> : vector<16x32xf32>
    %118 = tpu.matmul %115, %117, %cst_65 {dimension_numbers = #tpu.dot_dimension_numbers<[1], [0], [0], [1], [0, 0, 1, 1], [], []>} : vector<16x16xf32>, vector<16x32xf32>, vector<16x32xf32> -> vector<16x32xf32>
    %119 = vector.broadcast %79 : vector<1x32xf32> to vector<16x32xf32>
    %120 = arith.addf %119, %118 : vector<16x32xf32>
    %c0_66 = arith.constant 0 : index
    %c1 = arith.constant 1 : index
    %c0_67 = arith.constant 0 : index
    %c0_68 = arith.constant 0 : index
    %121 = vector.load %arg7[%c0_66, %c1, %c0_67, %c0_68] : memref<2x2x32x16xf32, #tpu.memory_space<vmem>>, vector<1x1x32x16xf32>
    %122 = vector.shape_cast %121 : vector<1x1x32x16xf32> to vector<32x16xf32>
    %cst_69 = arith.constant dense<0.000000e+00> : vector<16x16xf32>
    %123 = tpu.matmul %49, %122, %cst_69 {dimension_numbers = #tpu.dot_dimension_numbers<[1], [0], [0], [1], [0, 0, 1, 1], [], []>} : vector<16x32xf32>, vector<32x16xf32>, vector<16x16xf32> -> vector<16x16xf32>
    %c0_70 = arith.constant 0 : index
    %c1_71 = arith.constant 1 : index
    %c0_72 = arith.constant 0 : index
    %c0_73 = arith.constant 0 : index
    %124 = vector.load %arg8[%c0_70, %c1_71, %c0_72, %c0_73] : memref<2x2x1x16xf32, #tpu.memory_space<vmem>>, vector<1x1x1x16xf32>
    %125 = vector.shape_cast %124 : vector<1x1x1x16xf32> to vector<1x16xf32>
    %126 = vector.broadcast %125 : vector<1x16xf32> to vector<16x16xf32>
    %127 = arith.addf %123, %126 : vector<16x16xf32>
    %c0_74 = arith.constant 0 : index
    %c1_75 = arith.constant 1 : index
    %c0_76 = arith.constant 0 : index
    %c0_77 = arith.constant 0 : index
    %128 = vector.load %arg9[%c0_74, %c1_75, %c0_76, %c0_77] : memref<2x2x16x32xf32, #tpu.memory_space<vmem>>, vector<1x1x16x32xf32>
    %129 = vector.shape_cast %128 : vector<1x1x16x32xf32> to vector<16x32xf32>
    %cst_78 = arith.constant dense<0.000000e+00> : vector<16x16xf32>
    %130 = tpu.matmul %129, %77, %cst_78 {dimension_numbers = #tpu.dot_dimension_numbers<[1], [0], [0], [1], [0, 0, 1, 1], [], []>} : vector<16x32xf32>, vector<32x16xf32>, vector<16x16xf32> -> vector<16x16xf32>
    %c0_79 = arith.constant 0 : index
    %c1_80 = arith.constant 1 : index
    %c0_81 = arith.constant 0 : index
    %c0_82 = arith.constant 0 : index
    %131 = vector.load %arg10[%c0_79, %c1_80, %c0_81, %c0_82] : memref<2x2x16x1xf32, #tpu.memory_space<vmem>>, vector<1x1x16x1xf32>
    %132 = vector.shape_cast %131 : vector<1x1x16x1xf32> to vector<16x1xf32>
    %133 = vector.broadcast %132 : vector<16x1xf32> to vector<16x16xf32>
    %134 = arith.addf %130, %133 : vector<16x16xf32>
    %c0_83 = arith.constant 0 : index
    %c1_84 = arith.constant 1 : index
    %c0_85 = arith.constant 0 : index
    %c0_86 = arith.constant 0 : index
    %135 = vector.load %arg11[%c0_83, %c1_84, %c0_85, %c0_86] : memref<2x2x32x16xf32, #tpu.memory_space<vmem>>, vector<1x1x32x16xf32>
    %136 = vector.shape_cast %135 : vector<1x1x32x16xf32> to vector<32x16xf32>
    %cst_87 = arith.constant dense<0.000000e+00> : vector<16x16xf32>
    %137 = tpu.matmul %49, %136, %cst_87 {dimension_numbers = #tpu.dot_dimension_numbers<[1], [0], [0], [1], [0, 0, 1, 1], [], []>} : vector<16x32xf32>, vector<32x16xf32>, vector<16x16xf32> -> vector<16x16xf32>
    %c0_88 = arith.constant 0 : index
    %c1_89 = arith.constant 1 : index
    %c0_90 = arith.constant 0 : index
    %c0_91 = arith.constant 0 : index
    %138 = vector.load %arg12[%c0_88, %c1_89, %c0_90, %c0_91] : memref<2x2x1x16xf32, #tpu.memory_space<vmem>>, vector<1x1x1x16xf32>
    %139 = vector.shape_cast %138 : vector<1x1x1x16xf32> to vector<1x16xf32>
    %140 = vector.broadcast %139 : vector<1x16xf32> to vector<16x16xf32>
    %141 = arith.addf %137, %140 : vector<16x16xf32>
    %cst_92 = arith.constant dense<0.000000e+00> : vector<16x16xf32>
    %142 = tpu.matmul %127, %134, %cst_92 {dimension_numbers = #tpu.dot_dimension_numbers<[1], [0], [0], [1], [0, 0, 1, 1], [], []>} : vector<16x16xf32>, vector<16x16xf32>, vector<16x16xf32> -> vector<16x16xf32>
    %cst_93 = arith.constant 2.500000e-01 : f32
    %143 = vector.broadcast %cst_93 : f32 to vector<16x16xf32>
    %144 = arith.mulf %142, %143 : vector<16x16xf32>
    %145 = arith.addf %144, %76 : vector<16x16xf32>
    %cst_94 = arith.constant dense<0xFF800000> : vector<16xf32>
    %146 = vector.multi_reduction <maximumf>, %145, %cst_94 [1] : vector<16x16xf32> to vector<16xf32>
    %147 = vector.shape_cast %146 : vector<16xf32> to vector<16x1xf32>
    %148 = vector.broadcast %147 : vector<16x1xf32> to vector<16x16xf32>
    %149 = arith.subf %145, %148 : vector<16x16xf32>
    %150 = math.exp %149 : vector<16x16xf32>
    %cst_95 = arith.constant dense<0.000000e+00> : vector<16xf32>
    %151 = vector.multi_reduction <add>, %150, %cst_95 [1] : vector<16x16xf32> to vector<16xf32>
    %152 = vector.shape_cast %151 : vector<16xf32> to vector<16x1xf32>
    %153 = tpu.reciprocal %152 {approx = true} : vector<16x1xf32> -> vector<16x1xf32>
    %154 = vector.broadcast %153 : vector<16x1xf32> to vector<16x16xf32>
    %155 = arith.mulf %150, %154 : vector<16x16xf32>
    %cst_96 = arith.constant dense<0.000000e+00> : vector<16x16xf32>
    %156 = tpu.matmul %155, %141, %cst_96 {dimension_numbers = #tpu.dot_dimension_numbers<[1], [0], [0], [1], [0, 0, 1, 1], [], []>} : vector<16x16xf32>, vector<16x16xf32>, vector<16x16xf32> -> vector<16x16xf32>
    %c0_97 = arith.constant 0 : index
    %c1_98 = arith.constant 1 : index
    %c0_99 = arith.constant 0 : index
    %c0_100 = arith.constant 0 : index
    %157 = vector.load %arg13[%c0_97, %c1_98, %c0_99, %c0_100] : memref<2x2x16x32xf32, #tpu.memory_space<vmem>>, vector<1x1x16x32xf32>
    %158 = vector.shape_cast %157 : vector<1x1x16x32xf32> to vector<16x32xf32>
    %cst_101 = arith.constant dense<0.000000e+00> : vector<16x32xf32>
    %159 = tpu.matmul %156, %158, %cst_101 {dimension_numbers = #tpu.dot_dimension_numbers<[1], [0], [0], [1], [0, 0, 1, 1], [], []>} : vector<16x16xf32>, vector<16x32xf32>, vector<16x32xf32> -> vector<16x32xf32>
    %160 = arith.addf %120, %159 : vector<16x32xf32>
    %161 = arith.addf %160, %49 : vector<16x32xf32>
    %c0_102 = arith.constant 0 : index
    %c0_103 = arith.constant 0 : index
    %c0_104 = arith.constant 0 : index
    %162 = vector.load %arg15[%c0_102, %c0_103, %c0_104] : memref<2x1x32xf32, #tpu.memory_space<vmem>>, vector<1x1x32xf32>
    %163 = vector.shape_cast %162 : vector<1x1x32xf32> to vector<1x32xf32>
    %c0_105 = arith.constant 0 : index
    %c0_106 = arith.constant 0 : index
    %c0_107 = arith.constant 0 : index
    %164 = vector.load %arg16[%c0_105, %c0_106, %c0_107] : memref<2x1x32xf32, #tpu.memory_space<vmem>>, vector<1x1x32xf32>
    %165 = vector.shape_cast %164 : vector<1x1x32xf32> to vector<1x32xf32>
    %cst_108 = arith.constant dense<0.000000e+00> : vector<16xf32>
    %166 = vector.multi_reduction <add>, %161, %cst_108 [1] : vector<16x32xf32> to vector<16xf32>
    %167 = vector.shape_cast %166 : vector<16xf32> to vector<16x1xf32>
    %cst_109 = arith.constant 3.200000e+01 : f32
    %168 = vector.broadcast %cst_109 : f32 to vector<16x1xf32>
    %169 = arith.divf %167, %168 : vector<16x1xf32>
    %170 = arith.mulf %161, %161 : vector<16x32xf32>
    %cst_110 = arith.constant dense<0.000000e+00> : vector<16xf32>
    %171 = vector.multi_reduction <add>, %170, %cst_110 [1] : vector<16x32xf32> to vector<16xf32>
    %172 = vector.shape_cast %171 : vector<16xf32> to vector<16x1xf32>
    %cst_111 = arith.constant 3.200000e+01 : f32
    %173 = vector.broadcast %cst_111 : f32 to vector<16x1xf32>
    %174 = arith.divf %172, %173 : vector<16x1xf32>
    %175 = arith.mulf %169, %169 : vector<16x1xf32>
    %176 = arith.subf %174, %175 : vector<16x1xf32>
    %177 = vector.broadcast %169 : vector<16x1xf32> to vector<16x32xf32>
    %178 = arith.subf %161, %177 : vector<16x32xf32>
    %cst_112 = arith.constant 9.99999996E-13 : f32
    %179 = vector.broadcast %cst_112 : f32 to vector<16x1xf32>
    %180 = arith.addf %176, %179 : vector<16x1xf32>
    %181 = math.rsqrt %180 : vector<16x1xf32>
    %182 = vector.broadcast %181 : vector<16x1xf32> to vector<16x32xf32>
    %183 = arith.mulf %178, %182 : vector<16x32xf32>
    %184 = vector.broadcast %163 : vector<1x32xf32> to vector<16x32xf32>
    %185 = arith.mulf %183, %184 : vector<16x32xf32>
    %186 = vector.broadcast %165 : vector<1x32xf32> to vector<16x32xf32>
    %187 = arith.addf %185, %186 : vector<16x32xf32>
    %c0_113 = arith.constant 0 : index
    %c0_114 = arith.constant 0 : index
    %c0_115 = arith.constant 0 : index
    %188 = vector.load %arg17[%c0_113, %c0_114, %c0_115] : memref<2x32x64xf32, #tpu.memory_space<vmem>>, vector<1x32x64xf32>
    %189 = vector.shape_cast %188 : vector<1x32x64xf32> to vector<32x64xf32>
    %cst_116 = arith.constant dense<0.000000e+00> : vector<16x64xf32>
    %190 = tpu.matmul %187, %189, %cst_116 {dimension_numbers = #tpu.dot_dimension_numbers<[1], [0], [0], [1], [0, 0, 1, 1], [], []>} : vector<16x32xf32>, vector<32x64xf32>, vector<16x64xf32> -> vector<16x64xf32>
    %c0_117 = arith.constant 0 : index
    %c0_118 = arith.constant 0 : index
    %c0_119 = arith.constant 0 : index
    %191 = vector.load %arg18[%c0_117, %c0_118, %c0_119] : memref<2x1x64xf32, #tpu.memory_space<vmem>>, vector<1x1x64xf32>
    %192 = vector.shape_cast %191 : vector<1x1x64xf32> to vector<1x64xf32>
    %193 = vector.broadcast %192 : vector<1x64xf32> to vector<16x64xf32>
    %194 = arith.addf %190, %193 : vector<16x64xf32>
    %195 = arith.mulf %194, %194 : vector<16x64xf32>
    %196 = arith.mulf %194, %195 : vector<16x64xf32>
    %cst_120 = arith.constant 4.471500e-02 : f32
    %197 = vector.broadcast %cst_120 : f32 to vector<16x64xf32>
    %198 = arith.mulf %197, %196 : vector<16x64xf32>
    %199 = arith.addf %194, %198 : vector<16x64xf32>
    %cst_121 = arith.constant 0.797884583 : f32
    %200 = vector.broadcast %cst_121 : f32 to vector<16x64xf32>
    %201 = arith.mulf %200, %199 : vector<16x64xf32>
    %202 = math.tanh %201 : vector<16x64xf32>
    %cst_122 = arith.constant 1.000000e+00 : f32
    %203 = vector.broadcast %cst_122 : f32 to vector<16x64xf32>
    %204 = arith.addf %203, %202 : vector<16x64xf32>
    %cst_123 = arith.constant 5.000000e-01 : f32
    %205 = vector.broadcast %cst_123 : f32 to vector<16x64xf32>
    %206 = arith.mulf %205, %204 : vector<16x64xf32>
    %207 = arith.mulf %194, %206 : vector<16x64xf32>
    %c0_124 = arith.constant 0 : index
    %c0_125 = arith.constant 0 : index
    %c0_126 = arith.constant 0 : index
    %208 = vector.load %arg19[%c0_124, %c0_125, %c0_126] : memref<2x64x32xf32, #tpu.memory_space<vmem>>, vector<1x64x32xf32>
    %209 = vector.shape_cast %208 : vector<1x64x32xf32> to vector<64x32xf32>
    %cst_127 = arith.constant dense<0.000000e+00> : vector<16x32xf32>
    %210 = tpu.matmul %207, %209, %cst_127 {dimension_numbers = #tpu.dot_dimension_numbers<[1], [0], [0], [1], [0, 0, 1, 1], [], []>} : vector<16x64xf32>, vector<64x32xf32>, vector<16x32xf32> -> vector<16x32xf32>
    %c0_128 = arith.constant 0 : index
    %c0_129 = arith.constant 0 : index
    %c0_130 = arith.constant 0 : index
    %211 = vector.load %arg20[%c0_128, %c0_129, %c0_130] : memref<2x1x32xf32, #tpu.memory_space<vmem>>, vector<1x1x32xf32>
    %212 = vector.shape_cast %211 : vector<1x1x32xf32> to vector<1x32xf32>
    %213 = vector.broadcast %212 : vector<1x32xf32> to vector<16x32xf32>
    %214 = arith.addf %210, %213 : vector<16x32xf32>
    %215 = arith.addf %214, %187 : vector<16x32xf32>
    %c0_131 = arith.constant 0 : index
    %c0_132 = arith.constant 0 : index
    %c0_133 = arith.constant 0 : index
    %216 = vector.load %arg21[%c0_131, %c0_132, %c0_133] : memref<2x1x32xf32, #tpu.memory_space<vmem>>, vector<1x1x32xf32>
    %217 = vector.shape_cast %216 : vector<1x1x32xf32> to vector<1x32xf32>
    %c0_134 = arith.constant 0 : index
    %c0_135 = arith.constant 0 : index
    %c0_136 = arith.constant 0 : index
    %218 = vector.load %arg22[%c0_134, %c0_135, %c0_136] : memref<2x1x32xf32, #tpu.memory_space<vmem>>, vector<1x1x32xf32>
    %219 = vector.shape_cast %218 : vector<1x1x32xf32> to vector<1x32xf32>
    %cst_137 = arith.constant dense<0.000000e+00> : vector<16xf32>
    %220 = vector.multi_reduction <add>, %215, %cst_137 [1] : vector<16x32xf32> to vector<16xf32>
    %221 = vector.shape_cast %220 : vector<16xf32> to vector<16x1xf32>
    %cst_138 = arith.constant 3.200000e+01 : f32
    %222 = vector.broadcast %cst_138 : f32 to vector<16x1xf32>
    %223 = arith.divf %221, %222 : vector<16x1xf32>
    %224 = arith.mulf %215, %215 : vector<16x32xf32>
    %cst_139 = arith.constant dense<0.000000e+00> : vector<16xf32>
    %225 = vector.multi_reduction <add>, %224, %cst_139 [1] : vector<16x32xf32> to vector<16xf32>
    %226 = vector.shape_cast %225 : vector<16xf32> to vector<16x1xf32>
    %cst_140 = arith.constant 3.200000e+01 : f32
    %227 = vector.broadcast %cst_140 : f32 to vector<16x1xf32>
    %228 = arith.divf %226, %227 : vector<16x1xf32>
    %229 = arith.mulf %223, %223 : vector<16x1xf32>
    %230 = arith.subf %228, %229 : vector<16x1xf32>
    %231 = vector.broadcast %223 : vector<16x1xf32> to vector<16x32xf32>
    %232 = arith.subf %215, %231 : vector<16x32xf32>
    %cst_141 = arith.constant 9.99999996E-13 : f32
    %233 = vector.broadcast %cst_141 : f32 to vector<16x1xf32>
    %234 = arith.addf %230, %233 : vector<16x1xf32>
    %235 = math.rsqrt %234 : vector<16x1xf32>
    %236 = vector.broadcast %235 : vector<16x1xf32> to vector<16x32xf32>
    %237 = arith.mulf %232, %236 : vector<16x32xf32>
    %238 = vector.broadcast %217 : vector<1x32xf32> to vector<16x32xf32>
    %239 = arith.mulf %237, %238 : vector<16x32xf32>
    %240 = vector.broadcast %219 : vector<1x32xf32> to vector<16x32xf32>
    %241 = arith.addf %239, %240 : vector<16x32xf32>
    %242 = tpu.transpose %241, [1, 0] : vector<16x32xf32> -> vector<32x16xf32>
    %c1_142 = arith.constant 1 : index
    %c0_143 = arith.constant 0 : index
    %c0_144 = arith.constant 0 : index
    %243 = vector.load %arg14[%c1_142, %c0_143, %c0_144] : memref<2x1x32xf32, #tpu.memory_space<vmem>>, vector<1x1x32xf32>
    %244 = vector.shape_cast %243 : vector<1x1x32xf32> to vector<1x32xf32>
    %c1_145 = arith.constant 1 : index
    %c0_146 = arith.constant 0 : index
    %c0_147 = arith.constant 0 : index
    %c0_148 = arith.constant 0 : index
    %245 = vector.load %arg7[%c1_145, %c0_146, %c0_147, %c0_148] : memref<2x2x32x16xf32, #tpu.memory_space<vmem>>, vector<1x1x32x16xf32>
    %246 = vector.shape_cast %245 : vector<1x1x32x16xf32> to vector<32x16xf32>
    %cst_149 = arith.constant dense<0.000000e+00> : vector<16x16xf32>
    %247 = tpu.matmul %241, %246, %cst_149 {dimension_numbers = #tpu.dot_dimension_numbers<[1], [0], [0], [1], [0, 0, 1, 1], [], []>} : vector<16x32xf32>, vector<32x16xf32>, vector<16x16xf32> -> vector<16x16xf32>
    %c1_150 = arith.constant 1 : index
    %c0_151 = arith.constant 0 : index
    %c0_152 = arith.constant 0 : index
    %c0_153 = arith.constant 0 : index
    %248 = vector.load %arg8[%c1_150, %c0_151, %c0_152, %c0_153] : memref<2x2x1x16xf32, #tpu.memory_space<vmem>>, vector<1x1x1x16xf32>
    %249 = vector.shape_cast %248 : vector<1x1x1x16xf32> to vector<1x16xf32>
    %250 = vector.broadcast %249 : vector<1x16xf32> to vector<16x16xf32>
    %251 = arith.addf %247, %250 : vector<16x16xf32>
    %c1_154 = arith.constant 1 : index
    %c0_155 = arith.constant 0 : index
    %c0_156 = arith.constant 0 : index
    %c0_157 = arith.constant 0 : index
    %252 = vector.load %arg9[%c1_154, %c0_155, %c0_156, %c0_157] : memref<2x2x16x32xf32, #tpu.memory_space<vmem>>, vector<1x1x16x32xf32>
    %253 = vector.shape_cast %252 : vector<1x1x16x32xf32> to vector<16x32xf32>
    %cst_158 = arith.constant dense<0.000000e+00> : vector<16x16xf32>
    %254 = tpu.matmul %253, %242, %cst_158 {dimension_numbers = #tpu.dot_dimension_numbers<[1], [0], [0], [1], [0, 0, 1, 1], [], []>} : vector<16x32xf32>, vector<32x16xf32>, vector<16x16xf32> -> vector<16x16xf32>
    %c1_159 = arith.constant 1 : index
    %c0_160 = arith.constant 0 : index
    %c0_161 = arith.constant 0 : index
    %c0_162 = arith.constant 0 : index
    %255 = vector.load %arg10[%c1_159, %c0_160, %c0_161, %c0_162] : memref<2x2x16x1xf32, #tpu.memory_space<vmem>>, vector<1x1x16x1xf32>
    %256 = vector.shape_cast %255 : vector<1x1x16x1xf32> to vector<16x1xf32>
    %257 = vector.broadcast %256 : vector<16x1xf32> to vector<16x16xf32>
    %258 = arith.addf %254, %257 : vector<16x16xf32>
    %c1_163 = arith.constant 1 : index
    %c0_164 = arith.constant 0 : index
    %c0_165 = arith.constant 0 : index
    %c0_166 = arith.constant 0 : index
    %259 = vector.load %arg11[%c1_163, %c0_164, %c0_165, %c0_166] : memref<2x2x32x16xf32, #tpu.memory_space<vmem>>, vector<1x1x32x16xf32>
    %260 = vector.shape_cast %259 : vector<1x1x32x16xf32> to vector<32x16xf32>
    %cst_167 = arith.constant dense<0.000000e+00> : vector<16x16xf32>
    %261 = tpu.matmul %241, %260, %cst_167 {dimension_numbers = #tpu.dot_dimension_numbers<[1], [0], [0], [1], [0, 0, 1, 1], [], []>} : vector<16x32xf32>, vector<32x16xf32>, vector<16x16xf32> -> vector<16x16xf32>
    %c1_168 = arith.constant 1 : index
    %c0_169 = arith.constant 0 : index
    %c0_170 = arith.constant 0 : index
    %c0_171 = arith.constant 0 : index
    %262 = vector.load %arg12[%c1_168, %c0_169, %c0_170, %c0_171] : memref<2x2x1x16xf32, #tpu.memory_space<vmem>>, vector<1x1x1x16xf32>
    %263 = vector.shape_cast %262 : vector<1x1x1x16xf32> to vector<1x16xf32>
    %264 = vector.broadcast %263 : vector<1x16xf32> to vector<16x16xf32>
    %265 = arith.addf %261, %264 : vector<16x16xf32>
    %cst_172 = arith.constant dense<0.000000e+00> : vector<16x16xf32>
    %266 = tpu.matmul %251, %258, %cst_172 {dimension_numbers = #tpu.dot_dimension_numbers<[1], [0], [0], [1], [0, 0, 1, 1], [], []>} : vector<16x16xf32>, vector<16x16xf32>, vector<16x16xf32> -> vector<16x16xf32>
    %cst_173 = arith.constant 2.500000e-01 : f32
    %267 = vector.broadcast %cst_173 : f32 to vector<16x16xf32>
    %268 = arith.mulf %266, %267 : vector<16x16xf32>
    %269 = arith.addf %268, %76 : vector<16x16xf32>
    %cst_174 = arith.constant dense<0xFF800000> : vector<16xf32>
    %270 = vector.multi_reduction <maximumf>, %269, %cst_174 [1] : vector<16x16xf32> to vector<16xf32>
    %271 = vector.shape_cast %270 : vector<16xf32> to vector<16x1xf32>
    %272 = vector.broadcast %271 : vector<16x1xf32> to vector<16x16xf32>
    %273 = arith.subf %269, %272 : vector<16x16xf32>
    %274 = math.exp %273 : vector<16x16xf32>
    %cst_175 = arith.constant dense<0.000000e+00> : vector<16xf32>
    %275 = vector.multi_reduction <add>, %274, %cst_175 [1] : vector<16x16xf32> to vector<16xf32>
    %276 = vector.shape_cast %275 : vector<16xf32> to vector<16x1xf32>
    %277 = tpu.reciprocal %276 {approx = true} : vector<16x1xf32> -> vector<16x1xf32>
    %278 = vector.broadcast %277 : vector<16x1xf32> to vector<16x16xf32>
    %279 = arith.mulf %274, %278 : vector<16x16xf32>
    %cst_176 = arith.constant dense<0.000000e+00> : vector<16x16xf32>
    %280 = tpu.matmul %279, %265, %cst_176 {dimension_numbers = #tpu.dot_dimension_numbers<[1], [0], [0], [1], [0, 0, 1, 1], [], []>} : vector<16x16xf32>, vector<16x16xf32>, vector<16x16xf32> -> vector<16x16xf32>
    %c1_177 = arith.constant 1 : index
    %c0_178 = arith.constant 0 : index
    %c0_179 = arith.constant 0 : index
    %c0_180 = arith.constant 0 : index
    %281 = vector.load %arg13[%c1_177, %c0_178, %c0_179, %c0_180] : memref<2x2x16x32xf32, #tpu.memory_space<vmem>>, vector<1x1x16x32xf32>
    %282 = vector.shape_cast %281 : vector<1x1x16x32xf32> to vector<16x32xf32>
    %cst_181 = arith.constant dense<0.000000e+00> : vector<16x32xf32>
    %283 = tpu.matmul %280, %282, %cst_181 {dimension_numbers = #tpu.dot_dimension_numbers<[1], [0], [0], [1], [0, 0, 1, 1], [], []>} : vector<16x16xf32>, vector<16x32xf32>, vector<16x32xf32> -> vector<16x32xf32>
    %284 = vector.broadcast %244 : vector<1x32xf32> to vector<16x32xf32>
    %285 = arith.addf %284, %283 : vector<16x32xf32>
    %c1_182 = arith.constant 1 : index
    %c1_183 = arith.constant 1 : index
    %c0_184 = arith.constant 0 : index
    %c0_185 = arith.constant 0 : index
    %286 = vector.load %arg7[%c1_182, %c1_183, %c0_184, %c0_185] : memref<2x2x32x16xf32, #tpu.memory_space<vmem>>, vector<1x1x32x16xf32>
    %287 = vector.shape_cast %286 : vector<1x1x32x16xf32> to vector<32x16xf32>
    %cst_186 = arith.constant dense<0.000000e+00> : vector<16x16xf32>
    %288 = tpu.matmul %241, %287, %cst_186 {dimension_numbers = #tpu.dot_dimension_numbers<[1], [0], [0], [1], [0, 0, 1, 1], [], []>} : vector<16x32xf32>, vector<32x16xf32>, vector<16x16xf32> -> vector<16x16xf32>
    %c1_187 = arith.constant 1 : index
    %c1_188 = arith.constant 1 : index
    %c0_189 = arith.constant 0 : index
    %c0_190 = arith.constant 0 : index
    %289 = vector.load %arg8[%c1_187, %c1_188, %c0_189, %c0_190] : memref<2x2x1x16xf32, #tpu.memory_space<vmem>>, vector<1x1x1x16xf32>
    %290 = vector.shape_cast %289 : vector<1x1x1x16xf32> to vector<1x16xf32>
    %291 = vector.broadcast %290 : vector<1x16xf32> to vector<16x16xf32>
    %292 = arith.addf %288, %291 : vector<16x16xf32>
    %c1_191 = arith.constant 1 : index
    %c1_192 = arith.constant 1 : index
    %c0_193 = arith.constant 0 : index
    %c0_194 = arith.constant 0 : index
    %293 = vector.load %arg9[%c1_191, %c1_192, %c0_193, %c0_194] : memref<2x2x16x32xf32, #tpu.memory_space<vmem>>, vector<1x1x16x32xf32>
    %294 = vector.shape_cast %293 : vector<1x1x16x32xf32> to vector<16x32xf32>
    %cst_195 = arith.constant dense<0.000000e+00> : vector<16x16xf32>
    %295 = tpu.matmul %294, %242, %cst_195 {dimension_numbers = #tpu.dot_dimension_numbers<[1], [0], [0], [1], [0, 0, 1, 1], [], []>} : vector<16x32xf32>, vector<32x16xf32>, vector<16x16xf32> -> vector<16x16xf32>
    %c1_196 = arith.constant 1 : index
    %c1_197 = arith.constant 1 : index
    %c0_198 = arith.constant 0 : index
    %c0_199 = arith.constant 0 : index
    %296 = vector.load %arg10[%c1_196, %c1_197, %c0_198, %c0_199] : memref<2x2x16x1xf32, #tpu.memory_space<vmem>>, vector<1x1x16x1xf32>
    %297 = vector.shape_cast %296 : vector<1x1x16x1xf32> to vector<16x1xf32>
    %298 = vector.broadcast %297 : vector<16x1xf32> to vector<16x16xf32>
    %299 = arith.addf %295, %298 : vector<16x16xf32>
    %c1_200 = arith.constant 1 : index
    %c1_201 = arith.constant 1 : index
    %c0_202 = arith.constant 0 : index
    %c0_203 = arith.constant 0 : index
    %300 = vector.load %arg11[%c1_200, %c1_201, %c0_202, %c0_203] : memref<2x2x32x16xf32, #tpu.memory_space<vmem>>, vector<1x1x32x16xf32>
    %301 = vector.shape_cast %300 : vector<1x1x32x16xf32> to vector<32x16xf32>
    %cst_204 = arith.constant dense<0.000000e+00> : vector<16x16xf32>
    %302 = tpu.matmul %241, %301, %cst_204 {dimension_numbers = #tpu.dot_dimension_numbers<[1], [0], [0], [1], [0, 0, 1, 1], [], []>} : vector<16x32xf32>, vector<32x16xf32>, vector<16x16xf32> -> vector<16x16xf32>
    %c1_205 = arith.constant 1 : index
    %c1_206 = arith.constant 1 : index
    %c0_207 = arith.constant 0 : index
    %c0_208 = arith.constant 0 : index
    %303 = vector.load %arg12[%c1_205, %c1_206, %c0_207, %c0_208] : memref<2x2x1x16xf32, #tpu.memory_space<vmem>>, vector<1x1x1x16xf32>
    %304 = vector.shape_cast %303 : vector<1x1x1x16xf32> to vector<1x16xf32>
    %305 = vector.broadcast %304 : vector<1x16xf32> to vector<16x16xf32>
    %306 = arith.addf %302, %305 : vector<16x16xf32>
    %cst_209 = arith.constant dense<0.000000e+00> : vector<16x16xf32>
    %307 = tpu.matmul %292, %299, %cst_209 {dimension_numbers = #tpu.dot_dimension_numbers<[1], [0], [0], [1], [0, 0, 1, 1], [], []>} : vector<16x16xf32>, vector<16x16xf32>, vector<16x16xf32> -> vector<16x16xf32>
    %cst_210 = arith.constant 2.500000e-01 : f32
    %308 = vector.broadcast %cst_210 : f32 to vector<16x16xf32>
    %309 = arith.mulf %307, %308 : vector<16x16xf32>
    %310 = arith.addf %309, %76 : vector<16x16xf32>
    %cst_211 = arith.constant dense<0xFF800000> : vector<16xf32>
    %311 = vector.multi_reduction <maximumf>, %310, %cst_211 [1] : vector<16x16xf32> to vector<16xf32>
    %312 = vector.shape_cast %311 : vector<16xf32> to vector<16x1xf32>
    %313 = vector.broadcast %312 : vector<16x1xf32> to vector<16x16xf32>
    %314 = arith.subf %310, %313 : vector<16x16xf32>
    %315 = math.exp %314 : vector<16x16xf32>
    %cst_212 = arith.constant dense<0.000000e+00> : vector<16xf32>
    %316 = vector.multi_reduction <add>, %315, %cst_212 [1] : vector<16x16xf32> to vector<16xf32>
    %317 = vector.shape_cast %316 : vector<16xf32> to vector<16x1xf32>
    %318 = tpu.reciprocal %317 {approx = true} : vector<16x1xf32> -> vector<16x1xf32>
    %319 = vector.broadcast %318 : vector<16x1xf32> to vector<16x16xf32>
    %320 = arith.mulf %315, %319 : vector<16x16xf32>
    %cst_213 = arith.constant dense<0.000000e+00> : vector<16x16xf32>
    %321 = tpu.matmul %320, %306, %cst_213 {dimension_numbers = #tpu.dot_dimension_numbers<[1], [0], [0], [1], [0, 0, 1, 1], [], []>} : vector<16x16xf32>, vector<16x16xf32>, vector<16x16xf32> -> vector<16x16xf32>
    %c1_214 = arith.constant 1 : index
    %c1_215 = arith.constant 1 : index
    %c0_216 = arith.constant 0 : index
    %c0_217 = arith.constant 0 : index
    %322 = vector.load %arg13[%c1_214, %c1_215, %c0_216, %c0_217] : memref<2x2x16x32xf32, #tpu.memory_space<vmem>>, vector<1x1x16x32xf32>
    %323 = vector.shape_cast %322 : vector<1x1x16x32xf32> to vector<16x32xf32>
    %cst_218 = arith.constant dense<0.000000e+00> : vector<16x32xf32>
    %324 = tpu.matmul %321, %323, %cst_218 {dimension_numbers = #tpu.dot_dimension_numbers<[1], [0], [0], [1], [0, 0, 1, 1], [], []>} : vector<16x16xf32>, vector<16x32xf32>, vector<16x32xf32> -> vector<16x32xf32>
    %325 = arith.addf %285, %324 : vector<16x32xf32>
    %326 = arith.addf %325, %241 : vector<16x32xf32>
    %c1_219 = arith.constant 1 : index
    %c0_220 = arith.constant 0 : index
    %c0_221 = arith.constant 0 : index
    %327 = vector.load %arg15[%c1_219, %c0_220, %c0_221] : memref<2x1x32xf32, #tpu.memory_space<vmem>>, vector<1x1x32xf32>
    %328 = vector.shape_cast %327 : vector<1x1x32xf32> to vector<1x32xf32>
    %c1_222 = arith.constant 1 : index
    %c0_223 = arith.constant 0 : index
    %c0_224 = arith.constant 0 : index
    %329 = vector.load %arg16[%c1_222, %c0_223, %c0_224] : memref<2x1x32xf32, #tpu.memory_space<vmem>>, vector<1x1x32xf32>
    %330 = vector.shape_cast %329 : vector<1x1x32xf32> to vector<1x32xf32>
    %cst_225 = arith.constant dense<0.000000e+00> : vector<16xf32>
    %331 = vector.multi_reduction <add>, %326, %cst_225 [1] : vector<16x32xf32> to vector<16xf32>
    %332 = vector.shape_cast %331 : vector<16xf32> to vector<16x1xf32>
    %cst_226 = arith.constant 3.200000e+01 : f32
    %333 = vector.broadcast %cst_226 : f32 to vector<16x1xf32>
    %334 = arith.divf %332, %333 : vector<16x1xf32>
    %335 = arith.mulf %326, %326 : vector<16x32xf32>
    %cst_227 = arith.constant dense<0.000000e+00> : vector<16xf32>
    %336 = vector.multi_reduction <add>, %335, %cst_227 [1] : vector<16x32xf32> to vector<16xf32>
    %337 = vector.shape_cast %336 : vector<16xf32> to vector<16x1xf32>
    %cst_228 = arith.constant 3.200000e+01 : f32
    %338 = vector.broadcast %cst_228 : f32 to vector<16x1xf32>
    %339 = arith.divf %337, %338 : vector<16x1xf32>
    %340 = arith.mulf %334, %334 : vector<16x1xf32>
    %341 = arith.subf %339, %340 : vector<16x1xf32>
    %342 = vector.broadcast %334 : vector<16x1xf32> to vector<16x32xf32>
    %343 = arith.subf %326, %342 : vector<16x32xf32>
    %cst_229 = arith.constant 9.99999996E-13 : f32
    %344 = vector.broadcast %cst_229 : f32 to vector<16x1xf32>
    %345 = arith.addf %341, %344 : vector<16x1xf32>
    %346 = math.rsqrt %345 : vector<16x1xf32>
    %347 = vector.broadcast %346 : vector<16x1xf32> to vector<16x32xf32>
    %348 = arith.mulf %343, %347 : vector<16x32xf32>
    %349 = vector.broadcast %328 : vector<1x32xf32> to vector<16x32xf32>
    %350 = arith.mulf %348, %349 : vector<16x32xf32>
    %351 = vector.broadcast %330 : vector<1x32xf32> to vector<16x32xf32>
    %352 = arith.addf %350, %351 : vector<16x32xf32>
    %c1_230 = arith.constant 1 : index
    %c0_231 = arith.constant 0 : index
    %c0_232 = arith.constant 0 : index
    %353 = vector.load %arg17[%c1_230, %c0_231, %c0_232] : memref<2x32x64xf32, #tpu.memory_space<vmem>>, vector<1x32x64xf32>
    %354 = vector.shape_cast %353 : vector<1x32x64xf32> to vector<32x64xf32>
    %cst_233 = arith.constant dense<0.000000e+00> : vector<16x64xf32>
    %355 = tpu.matmul %352, %354, %cst_233 {dimension_numbers = #tpu.dot_dimension_numbers<[1], [0], [0], [1], [0, 0, 1, 1], [], []>} : vector<16x32xf32>, vector<32x64xf32>, vector<16x64xf32> -> vector<16x64xf32>
    %c1_234 = arith.constant 1 : index
    %c0_235 = arith.constant 0 : index
    %c0_236 = arith.constant 0 : index
    %356 = vector.load %arg18[%c1_234, %c0_235, %c0_236] : memref<2x1x64xf32, #tpu.memory_space<vmem>>, vector<1x1x64xf32>
    %357 = vector.shape_cast %356 : vector<1x1x64xf32> to vector<1x64xf32>
    %358 = vector.broadcast %357 : vector<1x64xf32> to vector<16x64xf32>
    %359 = arith.addf %355, %358 : vector<16x64xf32>
    %360 = arith.mulf %359, %359 : vector<16x64xf32>
    %361 = arith.mulf %359, %360 : vector<16x64xf32>
    %cst_237 = arith.constant 4.471500e-02 : f32
    %362 = vector.broadcast %cst_237 : f32 to vector<16x64xf32>
    %363 = arith.mulf %362, %361 : vector<16x64xf32>
    %364 = arith.addf %359, %363 : vector<16x64xf32>
    %cst_238 = arith.constant 0.797884583 : f32
    %365 = vector.broadcast %cst_238 : f32 to vector<16x64xf32>
    %366 = arith.mulf %365, %364 : vector<16x64xf32>
    %367 = math.tanh %366 : vector<16x64xf32>
    %cst_239 = arith.constant 1.000000e+00 : f32
    %368 = vector.broadcast %cst_239 : f32 to vector<16x64xf32>
    %369 = arith.addf %368, %367 : vector<16x64xf32>
    %cst_240 = arith.constant 5.000000e-01 : f32
    %370 = vector.broadcast %cst_240 : f32 to vector<16x64xf32>
    %371 = arith.mulf %370, %369 : vector<16x64xf32>
    %372 = arith.mulf %359, %371 : vector<16x64xf32>
    %c1_241 = arith.constant 1 : index
    %c0_242 = arith.constant 0 : index
    %c0_243 = arith.constant 0 : index
    %373 = vector.load %arg19[%c1_241, %c0_242, %c0_243] : memref<2x64x32xf32, #tpu.memory_space<vmem>>, vector<1x64x32xf32>
    %374 = vector.shape_cast %373 : vector<1x64x32xf32> to vector<64x32xf32>
    %cst_244 = arith.constant dense<0.000000e+00> : vector<16x32xf32>
    %375 = tpu.matmul %372, %374, %cst_244 {dimension_numbers = #tpu.dot_dimension_numbers<[1], [0], [0], [1], [0, 0, 1, 1], [], []>} : vector<16x64xf32>, vector<64x32xf32>, vector<16x32xf32> -> vector<16x32xf32>
    %c1_245 = arith.constant 1 : index
    %c0_246 = arith.constant 0 : index
    %c0_247 = arith.constant 0 : index
    %376 = vector.load %arg20[%c1_245, %c0_246, %c0_247] : memref<2x1x32xf32, #tpu.memory_space<vmem>>, vector<1x1x32xf32>
    %377 = vector.shape_cast %376 : vector<1x1x32xf32> to vector<1x32xf32>
    %378 = vector.broadcast %377 : vector<1x32xf32> to vector<16x32xf32>
    %379 = arith.addf %375, %378 : vector<16x32xf32>
    %380 = arith.addf %379, %352 : vector<16x32xf32>
    %c1_248 = arith.constant 1 : index
    %c0_249 = arith.constant 0 : index
    %c0_250 = arith.constant 0 : index
    %381 = vector.load %arg21[%c1_248, %c0_249, %c0_250] : memref<2x1x32xf32, #tpu.memory_space<vmem>>, vector<1x1x32xf32>
    %382 = vector.shape_cast %381 : vector<1x1x32xf32> to vector<1x32xf32>
    %c1_251 = arith.constant 1 : index
    %c0_252 = arith.constant 0 : index
    %c0_253 = arith.constant 0 : index
    %383 = vector.load %arg22[%c1_251, %c0_252, %c0_253] : memref<2x1x32xf32, #tpu.memory_space<vmem>>, vector<1x1x32xf32>
    %384 = vector.shape_cast %383 : vector<1x1x32xf32> to vector<1x32xf32>
    %cst_254 = arith.constant dense<0.000000e+00> : vector<16xf32>
    %385 = vector.multi_reduction <add>, %380, %cst_254 [1] : vector<16x32xf32> to vector<16xf32>
    %386 = vector.shape_cast %385 : vector<16xf32> to vector<16x1xf32>
    %cst_255 = arith.constant 3.200000e+01 : f32
    %387 = vector.broadcast %cst_255 : f32 to vector<16x1xf32>
    %388 = arith.divf %386, %387 : vector<16x1xf32>
    %389 = arith.mulf %380, %380 : vector<16x32xf32>
    %cst_256 = arith.constant dense<0.000000e+00> : vector<16xf32>
    %390 = vector.multi_reduction <add>, %389, %cst_256 [1] : vector<16x32xf32> to vector<16xf32>
    %391 = vector.shape_cast %390 : vector<16xf32> to vector<16x1xf32>
    %cst_257 = arith.constant 3.200000e+01 : f32
    %392 = vector.broadcast %cst_257 : f32 to vector<16x1xf32>
    %393 = arith.divf %391, %392 : vector<16x1xf32>
    %394 = arith.mulf %388, %388 : vector<16x1xf32>
    %395 = arith.subf %393, %394 : vector<16x1xf32>
    %396 = vector.broadcast %388 : vector<16x1xf32> to vector<16x32xf32>
    %397 = arith.subf %380, %396 : vector<16x32xf32>
    %cst_258 = arith.constant 9.99999996E-13 : f32
    %398 = vector.broadcast %cst_258 : f32 to vector<16x1xf32>
    %399 = arith.addf %395, %398 : vector<16x1xf32>
    %400 = math.rsqrt %399 : vector<16x1xf32>
    %401 = vector.broadcast %400 : vector<16x1xf32> to vector<16x32xf32>
    %402 = arith.mulf %397, %401 : vector<16x32xf32>
    %403 = vector.broadcast %382 : vector<1x32xf32> to vector<16x32xf32>
    %404 = arith.mulf %402, %403 : vector<16x32xf32>
    %405 = vector.broadcast %384 : vector<1x32xf32> to vector<16x32xf32>
    %406 = arith.addf %404, %405 : vector<16x32xf32>
    %c0_259 = arith.constant 0 : index
    %c0_260 = arith.constant 0 : index
    %407 = vector.load %arg23[%c0_259, %c0_260] : memref<32x2xf32, #tpu.memory_space<vmem>>, vector<32x2xf32>
    %cst_261 = arith.constant dense<0.000000e+00> : vector<16x2xf32>
    %408 = tpu.matmul %406, %407, %cst_261 {dimension_numbers = #tpu.dot_dimension_numbers<[1], [0], [0], [1], [0, 0, 1, 1], [], []>} : vector<16x32xf32>, vector<32x2xf32>, vector<16x2xf32> -> vector<16x2xf32>
    %c0_262 = arith.constant 0 : index
    %c0_263 = arith.constant 0 : index
    %409 = vector.load %arg24[%c0_262, %c0_263] : memref<1x2xf32, #tpu.memory_space<vmem>>, vector<1x2xf32>
    %410 = vector.broadcast %409 : vector<1x2xf32> to vector<16x2xf32>
    %411 = arith.addf %408, %410 : vector<16x2xf32>
    %412 = vector.extract_strided_slice %411 {offsets = [0, 0], sizes = [1, 2], strides = [1, 1]} : vector<16x2xf32> to vector<1x2xf32>
    %c0_264 = arith.constant 0 : index
    %c0_265 = arith.constant 0 : index
    %413 = vector.load %arg25[%c0_264, %c0_265] : memref<2x2xf32, #tpu.memory_space<vmem>>, vector<1x2xf32>
    tpu.vector_store %arg25[%c0_264, %c0_265], %412 {strides = array<i32>} : memref<2x2xf32, #tpu.memory_space<vmem>>, vector<1x2xf32>,
    %414 = vector.extract_strided_slice %411 {offsets = [8, 0], sizes = [1, 2], strides = [1, 1]} : vector<16x2xf32> to vector<1x2xf32>
    %c1_266 = arith.constant 1 : index
    %c0_267 = arith.constant 0 : index
    %415 = vector.load %arg25[%c1_266, %c0_267] : memref<2x2xf32, #tpu.memory_space<vmem>>, vector<1x2xf32>
    tpu.vector_store %arg25[%c1_266, %c0_267], %414 {strides = array<i32>} : memref<2x2xf32, #tpu.memory_space<vmem>>, vector<1x2xf32>,
    return
  }
  func.func @transform_0(%arg0: i32) -> (i32, i32) {
    %c0_i32 = arith.constant 0 : i32
    %c0_i32_0 = arith.constant 0 : i32
    %c0_i32_1 = arith.constant 0 : i32
    return %c0_i32, %c0_i32_0 : i32, i32
  }
  func.func @transform_1(%arg0: i32) -> (i32, i32) {
    %c0_i32 = arith.constant 0 : i32
    %c0_i32_0 = arith.constant 0 : i32
    %c0_i32_1 = arith.constant 0 : i32
    return %c0_i32, %c0_i32_0 : i32, i32
  }
  func.func @transform_2(%arg0: i32) -> (i32, i32) {
    %c0_i32 = arith.constant 0 : i32
    %c0_i32_0 = arith.constant 0 : i32
    %c0_i32_1 = arith.constant 0 : i32
    return %c0_i32, %c0_i32_0 : i32, i32
  }
  func.func @transform_3(%arg0: i32) -> (i32, i32) {
    %c0_i32 = arith.constant 0 : i32
    %c0_i32_0 = arith.constant 0 : i32
    %c0_i32_1 = arith.constant 0 : i32
    return %c0_i32, %c0_i32_0 : i32, i32
  }
  func.func @transform_4(%arg0: i32) -> (i32, i32) {
    %c0_i32 = arith.constant 0 : i32
    %c0_i32_0 = arith.constant 0 : i32
    %c0_i32_1 = arith.constant 0 : i32
    return %c0_i32, %c0_i32_0 : i32, i32
  }
  func.func @transform_5(%arg0: i32) -> (i32, i32) {
    %c0_i32 = arith.constant 0 : i32
    %c0_i32_0 = arith.constant 0 : i32
    %c0_i32_1 = arith.constant 0 : i32
    return %c0_i32, %c0_i32_0 : i32, i32
  }
  func.func @transform_6(%arg0: i32) -> (i32, i32, i32, i32) {
    %c0_i32 = arith.constant 0 : i32
    %c0_i32_0 = arith.constant 0 : i32
    %c0_i32_1 = arith.constant 0 : i32
    %c0_i32_2 = arith.constant 0 : i32
    %c0_i32_3 = arith.constant 0 : i32
    return %c0_i32, %c0_i32_0, %c0_i32_1, %c0_i32_2 : i32, i32, i32, i32
  }
  func.func @transform_7(%arg0: i32) -> (i32, i32, i32, i32) {
    %c0_i32 = arith.constant 0 : i32
    %c0_i32_0 = arith.constant 0 : i32
    %c0_i32_1 = arith.constant 0 : i32
    %c0_i32_2 = arith.constant 0 : i32
    %c0_i32_3 = arith.constant 0 : i32
    return %c0_i32, %c0_i32_0, %c0_i32_1, %c0_i32_2 : i32, i32, i32, i32
  }
  func.func @transform_8(%arg0: i32) -> (i32, i32, i32, i32) {
    %c0_i32 = arith.constant 0 : i32
    %c0_i32_0 = arith.constant 0 : i32
    %c0_i32_1 = arith.constant 0 : i32
    %c0_i32_2 = arith.constant 0 : i32
    %c0_i32_3 = arith.constant 0 : i32
    return %c0_i32, %c0_i32_0, %c0_i32_1, %c0_i32_2 : i32, i32, i32, i32
  }
  func.func @transform_9(%arg0: i32) -> (i32, i32, i32, i32) {
    %c0_i32 = arith.constant 0 : i32
    %c0_i32_0 = arith.constant 0 : i32
    %c0_i32_1 = arith.constant 0 : i32
    %c0_i32_2 = arith.constant 0 : i32
    %c0_i32_3 = arith.constant 0 : i32
    return %c0_i32, %c0_i32_0, %c0_i32_1, %c0_i32_2 : i32, i32, i32, i32
  }
  func.func @transform_10(%arg0: i32) -> (i32, i32, i32, i32) {
    %c0_i32 = arith.constant 0 : i32
    %c0_i32_0 = arith.constant 0 : i32
    %c0_i32_1 = arith.constant 0 : i32
    %c0_i32_2 = arith.constant 0 : i32
    %c0_i32_3 = arith.constant 0 : i32
    return %c0_i32, %c0_i32_0, %c0_i32_1, %c0_i32_2 : i32, i32, i32, i32
  }
  func.func @transform_11(%arg0: i32) -> (i32, i32, i32, i32) {
    %c0_i32 = arith.constant 0 : i32
    %c0_i32_0 = arith.constant 0 : i32
    %c0_i32_1 = arith.constant 0 : i32
    %c0_i32_2 = arith.constant 0 : i32
    %c0_i32_3 = arith.constant 0 : i32
    return %c0_i32, %c0_i32_0, %c0_i32_1, %c0_i32_2 : i32, i32, i32, i32
  }
  func.func @transform_12(%arg0: i32) -> (i32, i32, i32, i32) {
    %c0_i32 = arith.constant 0 : i32
    %c0_i32_0 = arith.constant 0 : i32
    %c0_i32_1 = arith.constant 0 : i32
    %c0_i32_2 = arith.constant 0 : i32
    %c0_i32_3 = arith.constant 0 : i32
    return %c0_i32, %c0_i32_0, %c0_i32_1, %c0_i32_2 : i32, i32, i32, i32
  }
  func.func @transform_13(%arg0: i32) -> (i32, i32, i32) {
    %c0_i32 = arith.constant 0 : i32
    %c0_i32_0 = arith.constant 0 : i32
    %c0_i32_1 = arith.constant 0 : i32
    %c0_i32_2 = arith.constant 0 : i32
    return %c0_i32, %c0_i32_0, %c0_i32_1 : i32, i32, i32
  }
  func.func @transform_14(%arg0: i32) -> (i32, i32, i32) {
    %c0_i32 = arith.constant 0 : i32
    %c0_i32_0 = arith.constant 0 : i32
    %c0_i32_1 = arith.constant 0 : i32
    %c0_i32_2 = arith.constant 0 : i32
    return %c0_i32, %c0_i32_0, %c0_i32_1 : i32, i32, i32
  }
  func.func @transform_15(%arg0: i32) -> (i32, i32, i32) {
    %c0_i32 = arith.constant 0 : i32
    %c0_i32_0 = arith.constant 0 : i32
    %c0_i32_1 = arith.constant 0 : i32
    %c0_i32_2 = arith.constant 0 : i32
    return %c0_i32, %c0_i32_0, %c0_i32_1 : i32, i32, i32
  }
  func.func @transform_16(%arg0: i32) -> (i32, i32, i32) {
    %c0_i32 = arith.constant 0 : i32
    %c0_i32_0 = arith.constant 0 : i32
    %c0_i32_1 = arith.constant 0 : i32
    %c0_i32_2 = arith.constant 0 : i32
    return %c0_i32, %c0_i32_0, %c0_i32_1 : i32, i32, i32
  }
  func.func @transform_17(%arg0: i32) -> (i32, i32, i32) {
    %c0_i32 = arith.constant 0 : i32
    %c0_i32_0 = arith.constant 0 : i32
    %c0_i32_1 = arith.constant 0 : i32
    %c0_i32_2 = arith.constant 0 : i32
    return %c0_i32, %c0_i32_0, %c0_i32_1 : i32, i32, i32
  }
  func.func @transform_18(%arg0: i32) -> (i32, i32, i32) {
    %c0_i32 = arith.constant 0 : i32
    %c0_i32_0 = arith.constant 0 : i32
    %c0_i32_1 = arith.constant 0 : i32
    %c0_i32_2 = arith.constant 0 : i32
    return %c0_i32, %c0_i32_0, %c0_i32_1 : i32, i32, i32
  }
  func.func @transform_19(%arg0: i32) -> (i32, i32, i32) {
    %c0_i32 = arith.constant 0 : i32
    %c0_i32_0 = arith.constant 0 : i32
    %c0_i32_1 = arith.constant 0 : i32
    %c0_i32_2 = arith.constant 0 : i32
    return %c0_i32, %c0_i32_0, %c0_i32_1 : i32, i32, i32
  }
  func.func @transform_20(%arg0: i32) -> (i32, i32, i32) {
    %c0_i32 = arith.constant 0 : i32
    %c0_i32_0 = arith.constant 0 : i32
    %c0_i32_1 = arith.constant 0 : i32
    %c0_i32_2 = arith.constant 0 : i32
    return %c0_i32, %c0_i32_0, %c0_i32_1 : i32, i32, i32
  }
  func.func @transform_21(%arg0: i32) -> (i32, i32, i32) {
    %c0_i32 = arith.constant 0 : i32
    %c0_i32_0 = arith.constant 0 : i32
    %c0_i32_1 = arith.constant 0 : i32
    %c0_i32_2 = arith.constant 0 : i32
    return %c0_i32, %c0_i32_0, %c0_i32_1 : i32, i32, i32
  }
  func.func @transform_22(%arg0: i32) -> (i32, i32) {
    %c0_i32 = arith.constant 0 : i32
    %c0_i32_0 = arith.constant 0 : i32
    %c0_i32_1 = arith.constant 0 : i32
    return %c0_i32, %c0_i32_0 : i32, i32
  }
  func.func @transform_23(%arg0: i32) -> (i32, i32) {
    %c0_i32 = arith.constant 0 : i32
    %c0_i32_0 = arith.constant 0 : i32
    %c0_i32_1 = arith.constant 0 : i32
    return %c0_i32, %c0_i32_0 : i32, i32
  }
  func.func @transform_24(%arg0: i32) -> (i32, i32) {
    %c0_i32 = arith.constant 0 : i32
    %c0_i32_0 = arith.constant 0 : i32
    %c0_i32_1 = arith.constant 0 : i32
    return %c0_i32, %c0_i32_0 : i32, i32
  }
}

</mosaic_0001>

<llo_original>
// kernel: text_only_spammer_forward.1
$region0: #{text_only_spammer_forward.1}
  #allocation0 [shape = 'u32[]', space=smem, size = 0x4, offset = 0x4, fixed_abs, tag = 'smem constant byte address 0x4 - core index']
  #allocation1 [shape = 'u32[144,128]{1,0:T(1,128)}', space=vmem, size = 0x12000, scoped, tag = 'internal scratch']
  %s0 = inlined_call_operand.vmem [shape: s32[16,1], index: 0, kind: input, shape index: {}]
  %s1 = inlined_call_operand.vmem [shape: s32[1,16], index: 1, kind: input, shape index: {}]
  %s2 = inlined_call_operand.vmem [shape: f32[100,32], index: 2, kind: input, shape index: {}]
  %s3 = inlined_call_operand.hbm [shape: f32[16,32], index: 3, kind: input, shape index: {}]
  %s4 = inlined_call_operand.vmem [shape: f32[1,32], index: 4, kind: input, shape index: {}]
  %s5 = inlined_call_operand.vmem [shape: f32[1,32], index: 5, kind: input, shape index: {}]
  %s6 = inlined_call_operand.hbm [shape: f32[2,2,32,16], index: 6, kind: input, shape index: {}]
  %s7 = inlined_call_operand.vmem [shape: f32[2,2,1,16], index: 7, kind: input, shape index: {}, may-alias: {7,11}]
  %s8 = inlined_call_operand.hbm [shape: f32[2,2,16,32], index: 8, kind: input, shape index: {}]
  %s9 = inlined_call_operand.vmem [shape: f32[2,2,16,1], index: 9, kind: input, shape index: {}]
  %s10 = inlined_call_operand.hbm [shape: f32[2,2,32,16], index: 10, kind: input, shape index: {}]
  %s11 = inlined_call_operand.vmem [shape: f32[2,2,1,16], index: 11, kind: input, shape index: {}, may-alias: {7,11}]
  %s12 = inlined_call_operand.hbm [shape: f32[2,2,16,32], index: 12, kind: input, shape index: {}]
  %s13 = inlined_call_operand.vmem [shape: f32[2,1,32], index: 13, kind: input, shape index: {}, may-alias: {13,15,19,21}]
  %s14 = inlined_call_operand.vmem [shape: f32[2,1,32], index: 14, kind: input, shape index: {}, may-alias: {14,20}]
  %s15 = inlined_call_operand.vmem [shape: f32[2,1,32], index: 15, kind: input, shape index: {}, may-alias: {13,15,19,21}]
  %s16 = inlined_call_operand.hbm [shape: f32[2,32,64], index: 16, kind: input, shape index: {}]
  %s17 = inlined_call_operand.vmem [shape: f32[2,1,64], index: 17, kind: input, shape index: {}]
  %s18 = inlined_call_operand.hbm [shape: f32[2,64,32], index: 18, kind: input, shape index: {}]
  %s19 = inlined_call_operand.vmem [shape: f32[2,1,32], index: 19, kind: input, shape index: {}, may-alias: {13,15,19,21}]
  %s20 = inlined_call_operand.vmem [shape: f32[2,1,32], index: 20, kind: input, shape index: {}, may-alias: {14,20}]
  %s21 = inlined_call_operand.vmem [shape: f32[2,1,32], index: 21, kind: input, shape index: {}, may-alias: {13,15,19,21}]
  %s22 = inlined_call_operand.hbm [shape: f32[32,2], index: 22, kind: input, shape index: {}]
  %s23 = inlined_call_operand.vmem [shape: f32[1,2], index: 23, kind: input, shape index: {}]
  %s24 = inlined_call_operand.hbm [shape: f32[2,2], index: 24, kind: output, shape index: {}]
  %s25 = sld [smem:[#allocation0]]
  $region138: #{text_only_spammer_forward.1} parent=0
    _
  %s27 = ssub.s32 1, %s25
  %s28 = scalar_select 0, %s27, %s25
  $region1: #{text_only_spammer_forward.1} parent=0
    #allocation2 [shape = 'u8[8192]{0}', space=vmem, size = 0x2000, scoped, tag = 'input window, operand 3, single buffered']
    #allocation3 [shape = 's32[1]{0}', space=sflag, size = 0x4, scoped, tag = 'scoped memory for text_only_spammer_forward.1']
    #allocation4 [shape = 's32[1]{0}', space=sflag, size = 0x4, scoped, tag = 'scoped memory for text_only_spammer_forward.1']
    #allocation5 [shape = 'u8[65536]{0}', space=vmem, size = 0x10000, scoped, tag = 'input window, operand 6, single buffered']
    #allocation6 [shape = 's32[1]{0}', space=sflag, size = 0x4, scoped, tag = 'scoped memory for text_only_spammer_forward.1']
    #allocation7 [shape = 'u8[32768]{0}', space=vmem, size = 0x8000, scoped, tag = 'input window, operand 8, single buffered']
    #allocation8 [shape = 'u8[65536]{0}', space=vmem, size = 0x10000, scoped, tag = 'input window, operand 10, single buffered']
    #allocation9 [shape = 's32[1]{0}', space=sflag, size = 0x4, scoped, tag = 'scoped memory for text_only_spammer_forward.1']
    #allocation10 [shape = 'u8[32768]{0}', space=vmem, size = 0x8000, scoped, tag = 'input window, operand 12, single buffered']
    #allocation11 [shape = 'u8[32768]{0}', space=vmem, size = 0x8000, scoped, tag = 'input window, operand 16, single buffered']
    #allocation12 [shape = 's32[1]{0}', space=sflag, size = 0x4, scoped, tag = 'scoped memory for text_only_spammer_forward.1']
    #allocation13 [shape = 'u8[65536]{0}', space=vmem, size = 0x10000, scoped, tag = 'input window, operand 18, single buffered']
    #allocation14 [shape = 'u8[16384]{0}', space=vmem, size = 0x4000, scoped, tag = 'input window, operand 22, single buffered']
    #allocation15 [shape = 's32[1]{0}', space=sflag, size = 0x4, scoped, tag = 'scoped memory for text_only_spammer_forward.1']
    #allocation16 [shape = 'u8[1024]{0}', space=vmem, size = 0x400, scoped, tag = 'output window, operand 0, single buffered']
    %29 = vsyncpa [#allocation3], 0
    %30 = vsyncpa [#allocation6], 0
    %31 = vsyncpa [#allocation9], 0
    %32 = vsyncpa [#allocation12], 0
    %33 = vsyncpa [#allocation15], 0
    %34 = vsyncpa [#allocation4], 0
    // Predicated region
    $region2: #{text_only_spammer_forward.1} parent=1 // pred_check
      _
    $region3: #{text_only_spammer_forward.1} parent=1 // pred_check_branch
      %36 = sbr.rel (0) target = $region5
    $region4: #{text_only_spammer_forward.1} parent=1 // pred_region
      _
    $region5: #{text_only_spammer_forward.1} parent=1 // pred_fallthru
      _
    // Predicated region
    $region6: #{text_only_spammer_forward.1} parent=1 // pred_check
      _
    $region7: #{text_only_spammer_forward.1} parent=1 // pred_check_branch
      %38 = sbr.rel (0) target = $region9
    $region8: #{text_only_spammer_forward.1} parent=1 // pred_region
      _
    $region9: #{text_only_spammer_forward.1} parent=1 // pred_fallthru
      _
    // Predicated region
    $region10: #{text_only_spammer_forward.1} parent=1 // pred_check
      _
    $region11: #{text_only_spammer_forward.1} parent=1 // pred_check_branch
      %40 = sbr.rel (0) target = $region13
    $region12: #{text_only_spammer_forward.1} parent=1 // pred_region
      _
    $region13: #{text_only_spammer_forward.1} parent=1 // pred_fallthru
      _
    // Predicated region
    $region14: #{text_only_spammer_forward.1} parent=1 // pred_check
      _
    $region15: #{text_only_spammer_forward.1} parent=1 // pred_check_branch
      %42 = sbr.rel (0) target = $region17
    $region16: #{text_only_spammer_forward.1} parent=1 // pred_region
      %s44 = ssub.s32 256, 256
      %45 = vsyncadd [#allocation3], %s44
      %s46 = sshll.u32 [#allocation2], 4
      %s47 = int_to_ptr.vmem [resolvable:$true] %s46
      %52 = dma.hbm_to_vmem [thread:$0]  %s3, 256, %s47, [#allocation3], 128, 128, 8
    $region17: #{text_only_spammer_forward.1} parent=1 // pred_fallthru
      _
    // Predicated region
    $region18: #{text_only_spammer_forward.1} parent=1 // pred_check
      _
    $region19: #{text_only_spammer_forward.1} parent=1 // pred_check_branch
      %54 = sbr.rel (0) target = $region21
    $region20: #{text_only_spammer_forward.1} parent=1 // pred_region
      _
    $region21: #{text_only_spammer_forward.1} parent=1 // pred_fallthru
      _
    // Predicated region
    $region22: #{text_only_spammer_forward.1} parent=1 // pred_check
      _
    $region23: #{text_only_spammer_forward.1} parent=1 // pred_check_branch
      %56 = sbr.rel (0) target = $region25
    $region24: #{text_only_spammer_forward.1} parent=1 // pred_region
      _
    $region25: #{text_only_spammer_forward.1} parent=1 // pred_fallthru
      _
    // Predicated region
    $region26: #{text_only_spammer_forward.1} parent=1 // pred_check
      _
    $region27: #{text_only_spammer_forward.1} parent=1 // pred_check_branch
      %58 = sbr.rel (0) target = $region29
    $region28: #{text_only_spammer_forward.1} parent=1 // pred_region
      %s60 = ssub.s32 2048, 2048
      %61 = vsyncadd [#allocation6], %s60
      %s62 = sshll.u32 [#allocation5], 4
      %s63 = int_to_ptr.vmem [resolvable:$true] %s62
      %68 = dma.hbm_to_vmem [thread:$0]  %s6, 2048, %s63, [#allocation6], 128, 128, 8
    $region29: #{text_only_spammer_forward.1} parent=1 // pred_fallthru
      _
    // Predicated region
    $region30: #{text_only_spammer_forward.1} parent=1 // pred_check
      _
    $region31: #{text_only_spammer_forward.1} parent=1 // pred_check_branch
      %70 = sbr.rel (0) target = $region33
    $region32: #{text_only_spammer_forward.1} parent=1 // pred_region
      _
    $region33: #{text_only_spammer_forward.1} parent=1 // pred_fallthru
      _
    // Predicated region
    $region34: #{text_only_spammer_forward.1} parent=1 // pred_check
      _
    $region35: #{text_only_spammer_forward.1} parent=1 // pred_check_branch
      %72 = sbr.rel (0) target = $region37
    $region36: #{text_only_spammer_forward.1} parent=1 // pred_region
      %s74 = ssub.s32 1024, 1024
      %75 = vsyncadd [#allocation6], %s74
      %s76 = sshll.u32 [#allocation7], 4
      %s77 = int_to_ptr.vmem [resolvable:$true] %s76
      %82 = dma.hbm_to_vmem [thread:$0]  %s8, 1024, %s77, [#allocation6], 128, 128, 8
    $region37: #{text_only_spammer_forward.1} parent=1 // pred_fallthru
      _
    // Predicated region
    $region38: #{text_only_spammer_forward.1} parent=1 // pred_check
      _
    $region39: #{text_only_spammer_forward.1} parent=1 // pred_check_branch
      %84 = sbr.rel (0) target = $region41
    $region40: #{text_only_spammer_forward.1} parent=1 // pred_region
      _
    $region41: #{text_only_spammer_forward.1} parent=1 // pred_fallthru
      _
    // Predicated region
    $region42: #{text_only_spammer_forward.1} parent=1 // pred_check
      _
    $region43: #{text_only_spammer_forward.1} parent=1 // pred_check_branch
      %86 = sbr.rel (0) target = $region45
    $region44: #{text_only_spammer_forward.1} parent=1 // pred_region
      %s88 = ssub.s32 2048, 2048
      %89 = vsyncadd [#allocation9], %s88
      %s90 = sshll.u32 [#allocation8], 4
      %s91 = int_to_ptr.vmem [resolvable:$true] %s90
      %96 = dma.hbm_to_vmem [thread:$0]  %s10, 2048, %s91, [#allocation9], 128, 128, 8
    $region45: #{text_only_spammer_forward.1} parent=1 // pred_fallthru
      _
    // Predicated region
    $region46: #{text_only_spammer_forward.1} parent=1 // pred_check
      _
    $region47: #{text_only_spammer_forward.1} parent=1 // pred_check_branch
      %98 = sbr.rel (0) target = $region49
    $region48: #{text_only_spammer_forward.1} parent=1 // pred_region
      _
    $region49: #{text_only_spammer_forward.1} parent=1 // pred_fallthru
      _
    // Predicated region
    $region50: #{text_only_spammer_forward.1} parent=1 // pred_check
      _
    $region51: #{text_only_spammer_forward.1} parent=1 // pred_check_branch
      %100 = sbr.rel (0) target = $region53
    $region52: #{text_only_spammer_forward.1} parent=1 // pred_region
      %s102 = ssub.s32 1024, 1024
      %103 = vsyncadd [#allocation9], %s102
      %s104 = sshll.u32 [#allocation10], 4
      %s105 = int_to_ptr.vmem [resolvable:$true] %s104
      %110 = dma.hbm_to_vmem [thread:$0]  %s12, 1024, %s105, [#allocation9], 128, 128, 8
    $region53: #{text_only_spammer_forward.1} parent=1 // pred_fallthru
      _
    // Predicated region
    $region54: #{text_only_spammer_forward.1} parent=1 // pred_check
      _
    $region55: #{text_only_spammer_forward.1} parent=1 // pred_check_branch
      %112 = sbr.rel (0) target = $region57
    $region56: #{text_only_spammer_forward.1} parent=1 // pred_region
      _
    $region57: #{text_only_spammer_forward.1} parent=1 // pred_fallthru
      _
    // Predicated region
    $region58: #{text_only_spammer_forward.1} parent=1 // pred_check
      _
    $region59: #{text_only_spammer_forward.1} parent=1 // pred_check_branch
      %114 = sbr.rel (0) target = $region61
    $region60: #{text_only_spammer_forward.1} parent=1 // pred_region
      _
    $region61: #{text_only_spammer_forward.1} parent=1 // pred_fallthru
      _
    // Predicated region
    $region62: #{text_only_spammer_forward.1} parent=1 // pred_check
      _
    $region63: #{text_only_spammer_forward.1} parent=1 // pred_check_branch
      %116 = sbr.rel (0) target = $region65
    $region64: #{text_only_spammer_forward.1} parent=1 // pred_region
      _
    $region65: #{text_only_spammer_forward.1} parent=1 // pred_fallthru
      _
    // Predicated region
    $region66: #{text_only_spammer_forward.1} parent=1 // pred_check
      _
    $region67: #{text_only_spammer_forward.1} parent=1 // pred_check_branch
      %118 = sbr.rel (0) target = $region69
    $region68: #{text_only_spammer_forward.1} parent=1 // pred_region
      %s120 = ssub.s32 1024, 1024
      %121 = vsyncadd [#allocation12], %s120
      %s122 = sshll.u32 [#allocation11], 4
      %s123 = int_to_ptr.vmem [resolvable:$true] %s122
      %128 = dma.hbm_to_vmem [thread:$0]  %s16, 1024, %s123, [#allocation12], 128, 128, 8
    $region69: #{text_only_spammer_forward.1} parent=1 // pred_fallthru
      _
    // Predicated region
    $region70: #{text_only_spammer_forward.1} parent=1 // pred_check
      _
    $region71: #{text_only_spammer_forward.1} parent=1 // pred_check_branch
      %130 = sbr.rel (0) target = $region73
    $region72: #{text_only_spammer_forward.1} parent=1 // pred_region
      _
    $region73: #{text_only_spammer_forward.1} parent=1 // pred_fallthru
      _
    // Predicated region
    $region74: #{text_only_spammer_forward.1} parent=1 // pred_check
      _
    $region75: #{text_only_spammer_forward.1} parent=1 // pred_check_branch
      %132 = sbr.rel (0) target = $region77
    $region76: #{text_only_spammer_forward.1} parent=1 // pred_region
      %s134 = ssub.s32 2048, 2048
      %135 = vsyncadd [#allocation12], %s134
      %s136 = sshll.u32 [#allocation13], 4
      %s137 = int_to_ptr.vmem [resolvable:$true] %s136
      %142 = dma.hbm_to_vmem [thread:$0]  %s18, 2048, %s137, [#allocation12], 128, 128, 8
    $region77: #{text_only_spammer_forward.1} parent=1 // pred_fallthru
      _
    // Predicated region
    $region78: #{text_only_spammer_forward.1} parent=1 // pred_check
      _
    $region79: #{text_only_spammer_forward.1} parent=1 // pred_check_branch
      %144 = sbr.rel (0) target = $region81
    $region80: #{text_only_spammer_forward.1} parent=1 // pred_region
      _
    $region81: #{text_only_spammer_forward.1} parent=1 // pred_fallthru
      _
    // Predicated region
    $region82: #{text_only_spammer_forward.1} parent=1 // pred_check
      _
    $region83: #{text_only_spammer_forward.1} parent=1 // pred_check_branch
      %146 = sbr.rel (0) target = $region85
    $region84: #{text_only_spammer_forward.1} parent=1 // pred_region
      _
    $region85: #{text_only_spammer_forward.1} parent=1 // pred_fallthru
      _
    // Predicated region
    $region86: #{text_only_spammer_forward.1} parent=1 // pred_check
      _
    $region87: #{text_only_spammer_forward.1} parent=1 // pred_check_branch
      %148 = sbr.rel (0) target = $region89
    $region88: #{text_only_spammer_forward.1} parent=1 // pred_region
      _
    $region89: #{text_only_spammer_forward.1} parent=1 // pred_fallthru
      _
    // Predicated region
    $region90: #{text_only_spammer_forward.1} parent=1 // pred_check
      _
    $region91: #{text_only_spammer_forward.1} parent=1 // pred_check_branch
      %150 = sbr.rel (0) target = $region93
    $region92: #{text_only_spammer_forward.1} parent=1 // pred_region
      %s152 = ssub.s32 512, 512
      %153 = vsyncadd [#allocation15], %s152
      %s154 = sshll.u32 [#allocation14], 4
      %s155 = int_to_ptr.vmem [resolvable:$true] %s154
      %160 = dma.hbm_to_vmem [thread:$0]  %s22, 512, %s155, [#allocation15], 128, 128, 8
    $region93: #{text_only_spammer_forward.1} parent=1 // pred_fallthru
      _
    // Predicated region
    $region94: #{text_only_spammer_forward.1} parent=1 // pred_check
      _
    $region95: #{text_only_spammer_forward.1} parent=1 // pred_check_branch
      %162 = sbr.rel (0) target = $region97
    $region96: #{text_only_spammer_forward.1} parent=1 // pred_region
      _
    $region97: #{text_only_spammer_forward.1} parent=1 // pred_fallthru
      _
    // Predicated region
    $region98: #{text_only_spammer_forward.1} parent=1 // pred_check
      _
    $region99: #{text_only_spammer_forward.1} parent=1 // pred_check_branch
      %164 = sbr.rel (0) target = $region101
    $region100: #{text_only_spammer_forward.1} parent=1 // pred_region
      %165 = dma.done [#allocation3], 256
    $region101: #{text_only_spammer_forward.1} parent=1 // pred_fallthru
      _
    // Predicated region
    $region102: #{text_only_spammer_forward.1} parent=1 // pred_check
      _
    $region103: #{text_only_spammer_forward.1} parent=1 // pred_check_branch
      %167 = sbr.rel (0) target = $region105
    $region104: #{text_only_spammer_forward.1} parent=1 // pred_region
      %168 = dma.done [#allocation6], 2048
    $region105: #{text_only_spammer_forward.1} parent=1 // pred_fallthru
      _
    // Predicated region
    $region106: #{text_only_spammer_forward.1} parent=1 // pred_check
      _
    $region107: #{text_only_spammer_forward.1} parent=1 // pred_check_branch
      %170 = sbr.rel (0) target = $region109
    $region108: #{text_only_spammer_forward.1} parent=1 // pred_region
      %171 = dma.done [#allocation6], 1024
    $region109: #{text_only_spammer_forward.1} parent=1 // pred_fallthru
      _
    // Predicated region
    $region110: #{text_only_spammer_forward.1} parent=1 // pred_check
      _
    $region111: #{text_only_spammer_forward.1} parent=1 // pred_check_branch
      %173 = sbr.rel (0) target = $region113
    $region112: #{text_only_spammer_forward.1} parent=1 // pred_region
      %174 = dma.done [#allocation9], 2048
    $region113: #{text_only_spammer_forward.1} parent=1 // pred_fallthru
      _
    // Predicated region
    $region114: #{text_only_spammer_forward.1} parent=1 // pred_check
      _
    $region115: #{text_only_spammer_forward.1} parent=1 // pred_check_branch
      %176 = sbr.rel (0) target = $region117
    $region116: #{text_only_spammer_forward.1} parent=1 // pred_region
      %177 = dma.done [#allocation9], 1024
    $region117: #{text_only_spammer_forward.1} parent=1 // pred_fallthru
      _
    // Predicated region
    $region118: #{text_only_spammer_forward.1} parent=1 // pred_check
      _
    $region119: #{text_only_spammer_forward.1} parent=1 // pred_check_branch
      %179 = sbr.rel (0) target = $region121
    $region120: #{text_only_spammer_forward.1} parent=1 // pred_region
      %180 = dma.done [#allocation12], 1024
    $region121: #{text_only_spammer_forward.1} parent=1 // pred_fallthru
      _
    // Predicated region
    $region122: #{text_only_spammer_forward.1} parent=1 // pred_check
      _
    $region123: #{text_only_spammer_forward.1} parent=1 // pred_check_branch
      %182 = sbr.rel (0) target = $region125
    $region124: #{text_only_spammer_forward.1} parent=1 // pred_region
      %183 = dma.done [#allocation12], 2048
    $region125: #{text_only_spammer_forward.1} parent=1 // pred_fallthru
      _
    // Predicated region
    $region126: #{text_only_spammer_forward.1} parent=1 // pred_check
      _
    $region127: #{text_only_spammer_forward.1} parent=1 // pred_check_branch
      %185 = sbr.rel (0) target = $region129
    $region128: #{text_only_spammer_forward.1} parent=1 // pred_region
      %186 = dma.done [#allocation15], 512
    $region129: #{text_only_spammer_forward.1} parent=1 // pred_fallthru
      _
    %v187 = vld [vmem:[%s0] sm:$0xff]
    %v188 = vld [vmem:[%s0 + $0x8] sm:$0xff]
    %v189 = vlaneseq
    %v190 = vand.u32 %v189, 127
    %191 = vset.pattern.permute.xlu0 0
    %192 = vperm.xlu0 %191, %v187
    %v193 = vpop.permute.xlu0 %192
    %194 = vset.pattern.permute.xlu0 0
    %195 = vperm.xlu0 %194, %v188
    %v196 = vpop.permute.xlu0 %195
    %vm197 = vcmp.eq.s32.totalorder %v190, %v193
    %vm198 = vcmp.eq.s32.totalorder %v190, %v196
    %v199 = vsel %vm197, 1, 0
    %v200 = vsel %vm198, 1, 0
    %v201 = vcvt.s32.f32 %v199
    %v202 = vcvt.s32.f32 %v200
    %v203 = vld [vmem:[%s2] sm:$0xff]
    %v204 = vld [vmem:[%s2 + $0x8] sm:$0xff]
    %v205 = vld [vmem:[%s2 + $0x10] sm:$0xff]
    %v206 = vld [vmem:[%s2 + $0x18] sm:$0xff]
    %v207 = vld [vmem:[%s2 + $0x20] sm:$0xff]
    %v208 = vld [vmem:[%s2 + $0x28] sm:$0xff]
    %v209 = vld [vmem:[%s2 + $0x30] sm:$0xff]
    %v210 = vld [vmem:[%s2 + $0x38] sm:$0xff]
    %v211 = vld [vmem:[%s2 + $0x40] sm:$0xff]
    %v212 = vld [vmem:[%s2 + $0x48] sm:$0xff]
    %v213 = vld [vmem:[%s2 + $0x50] sm:$0xff]
    %v214 = vld [vmem:[%s2 + $0x58] sm:$0xff]
    %v215 = vld [vmem:[%s2 + $0x60] sm:$0xf]
    %v216 = vlaneseq
    %v217 = vshrl.u32 %v216, 7
    %v218 = vadd.s32 %v217, 8
    %vm219 = vcmp.lt.s32.totalorder %v190, 8
    %vm220 = vcmp.eq.s32.totalorder %v217, %v190
    %vm221 = vcmp.eq.s32.totalorder %v218, %v190
    %vm222 = vmand %vm219, %vm220
    %vm223 = vmand %vm219, %vm221
    %v224 = vadd.s32 %v190, 8
    %vm225 = vcmp.eq.s32.totalorder %v217, %v224
    %vm226 = vcmp.eq.s32.totalorder %v218, %v224
    %vm227 = vmand %vm219, %vm225
    %vm228 = vmand %vm219, %vm226
    %vm229 = vmor %vm222, %vm227
    %vm230 = vmor %vm223, %vm228
    %v231 = vsel %vm229, 1, 0
    %v232 = vsel %vm230, 1, 0
    %v233 = vcvt.s32.f32 %v231
    %v234 = vcvt.s32.f32 %v232
    %v235 = vld [vmem:[#allocation2] sm:$0xff]
    %v236 = vld [vmem:[#allocation2 + $0x8] sm:$0xff]
    %vm237 = vcmask 130048
    %v239 = vsel %vm237, %v233, 0
    %v242 = vsel %vm237, %v234, 0
    %244 = vmatprep.subr.mxu0 0.0
    %245 = vmatpush1.msra.mxu0 0.0
    %246 = vmatprep.subr.mxu0 0.0
    %247 = vmatpush1.msra.mxu0 0.0
    %248 = vmatprep.subr.mxu0 0.0
    %249 = vmatpush1.msra.mxu0 0.0
    %250 = vmatprep.subr.mxu0 0.0
    %251 = vmatpush1.msra.mxu0 0.0
    %252 = vmatprep.subr.mxu0 0.0
    %253 = vmatpush1.msra.mxu0 0.0
    %254 = vmatprep.subr.mxu0 0.0
    %255 = vmatpush1.msra.mxu0 0.0
    %256 = vmatprep.subr.mxu0 0.0
    %257 = vmatpush1.msra.mxu0 0.0
    %258 = vmatprep.subr.mxu0 0.0
    %259 = vmatpush1.msra.mxu0 0.0
    %260 = vmatprep.subr.mxu0 0.0
    %261 = vmatpush1.msra.mxu0 0.0
    %262 = vmatprep.subr.mxu0 0.0
    %263 = vmatpush1.msra.mxu0 0.0
    %264 = vmatprep.subr.mxu0 0.0
    %265 = vmatpush1.msra.mxu0 0.0
    %266 = vmatprep.subr.mxu0 0.0
    %267 = vmatpush1.msra.mxu0 0.0
    %268 = vmatprep.subr.mxu0 0.0
    %269 = vmatpush1.msra.mxu0 0.0
    %270 = vmatprep.subr.mxu0 0.0
    %271 = vmatpush1.msra.mxu0 0.0
    %272 = vmatprep.subr.mxu0 0.0
    %273 = vmatpush1.msra.mxu0 %v236
    %274 = vmatprep.subr.mxu0 0.0
    %275 = vmatpush1.msra.mxu0 %v235
    %276 = vmatprep.subr.mxu0 0.0
    %277 = vmatpush2.msra.mxu0 0.0
    %278 = vmatprep.subr.mxu0 0.0
    %279 = vmatpush2.msra.mxu0 0.0
    %280 = vmatprep.subr.mxu0 0.0
    %281 = vmatpush2.msra.mxu0 0.0
    %282 = vmatprep.subr.mxu0 0.0
    %283 = vmatpush2.msra.mxu0 0.0
    %284 = vmatprep.subr.mxu0 0.0
    %285 = vmatpush2.msra.mxu0 0.0
    %286 = vmatprep.subr.mxu0 0.0
    %287 = vmatpush2.msra.mxu0 0.0
    %288 = vmatprep.subr.mxu0 0.0
    %289 = vmatpush2.msra.mxu0 0.0
    %290 = vmatprep.subr.mxu0 0.0
    %291 = vmatpush2.msra.mxu0 0.0
    %292 = vmatprep.subr.mxu0 0.0
    %293 = vmatpush2.msra.mxu0 0.0
    %294 = vmatprep.subr.mxu0 0.0
    %295 = vmatpush2.msra.mxu0 0.0
    %296 = vmatprep.subr.mxu0 0.0
    %297 = vmatpush2.msra.mxu0 0.0
    %298 = vmatprep.subr.mxu0 0.0
    %299 = vmatpush2.msra.mxu0 0.0
    %300 = vmatprep.subr.mxu0 0.0
    %301 = vmatpush2.msra.mxu0 0.0
    %302 = vmatprep.subr.mxu0 0.0
    %303 = vmatpush2.msra.mxu0 0.0
    %304 = vmatprep.subr.mxu0 0.0
    %305 = vmatpush2.msra.mxu0 0.0
    %306 = vmatprep.subr.mxu0 0.0
    %307 = vmatpush2.msra.mxu0 0.0
    %308 = vmatprep.mubr.f32.mxu0 0.0
    %309 = vmatmul.mubr.f32.gmra.mxu0 %v239
    %v310 = vpop.f32.mrf.mxu0
    %v311 = vadd.f32 0.0, %v310
    %v312 = vpop.f32.mrf.mxu0
    %313 = vmatprep.mubr.f32.mxu0 0.0
    %314 = vmatmul.mubr.f32.gmra.mxu0 %v242
    %v315 = vpop.f32.mrf.mxu0
    %v316 = vadd.f32 0.0, %v315
    %v317 = vpop.f32.mrf.mxu0
    %318 = vdwg.mxu0
    %vm319 = vcmask 818176
    %v321 = vsel %vm319, %v201, 0
    %v324 = vsel %vm319, %v202, 0
    %vm326 = vcmask 1043456
    %v328 = vsel %vm326, %v215, 0
    %330 = vmatprep.subr.mxu0 0.0
    %331 = vmatpush1.msra.mxu0 0.0
    %332 = vmatprep.subr.mxu0 0.0
    %333 = vmatpush1.msra.mxu0 0.0
    %334 = vmatprep.subr.mxu0 0.0
    %335 = vmatpush1.msra.mxu0 0.0
    %336 = vmatprep.subr.mxu0 0.0
    %337 = vmatpush1.msra.mxu0 %v328
    %338 = vmatprep.subr.mxu0 0.0
    %339 = vmatpush1.msra.mxu0 %v214
    %340 = vmatprep.subr.mxu0 0.0
    %341 = vmatpush1.msra.mxu0 %v213
    %342 = vmatprep.subr.mxu0 0.0
    %343 = vmatpush1.msra.mxu0 %v212
    %344 = vmatprep.subr.mxu0 0.0
    %345 = vmatpush1.msra.mxu0 %v211
    %346 = vmatprep.subr.mxu0 0.0
    %347 = vmatpush1.msra.mxu0 %v210
    %348 = vmatprep.subr.mxu0 0.0
    %349 = vmatpush1.msra.mxu0 %v209
    %350 = vmatprep.subr.mxu0 0.0
    %351 = vmatpush1.msra.mxu0 %v208
    %352 = vmatprep.subr.mxu0 0.0
    %353 = vmatpush1.msra.mxu0 %v207
    %354 = vmatprep.subr.mxu0 0.0
    %355 = vmatpush1.msra.mxu0 %v206
    %356 = vmatprep.subr.mxu0 0.0
    %357 = vmatpush1.msra.mxu0 %v205
    %358 = vmatprep.subr.mxu0 0.0
    %359 = vmatpush1.msra.mxu0 %v204
    %360 = vmatprep.subr.mxu0 0.0
    %361 = vmatpush1.msra.mxu0 %v203
    %362 = vmatprep.subr.mxu0 0.0
    %363 = vmatpush2.msra.mxu0 0.0
    %364 = vmatprep.subr.mxu0 0.0
    %365 = vmatpush2.msra.mxu0 0.0
    %366 = vmatprep.subr.mxu0 0.0
    %367 = vmatpush2.msra.mxu0 0.0
    %368 = vmatprep.subr.mxu0 0.0
    %369 = vmatpush2.msra.mxu0 0.0
    %370 = vmatprep.subr.mxu0 0.0
    %371 = vmatpush2.msra.mxu0 0.0
    %372 = vmatprep.subr.mxu0 0.0
    %373 = vmatpush2.msra.mxu0 0.0
    %374 = vmatprep.subr.mxu0 0.0
    %375 = vmatpush2.msra.mxu0 0.0
    %376 = vmatprep.subr.mxu0 0.0
    %377 = vmatpush2.msra.mxu0 0.0
    %378 = vmatprep.subr.mxu0 0.0
    %379 = vmatpush2.msra.mxu0 0.0
    %380 = vmatprep.subr.mxu0 0.0
    %381 = vmatpush2.msra.mxu0 0.0
    %382 = vmatprep.subr.mxu0 0.0
    %383 = vmatpush2.msra.mxu0 0.0
    %384 = vmatprep.subr.mxu0 0.0
    %385 = vmatpush2.msra.mxu0 0.0
    %386 = vmatprep.subr.mxu0 0.0
    %387 = vmatpush2.msra.mxu0 0.0
    %388 = vmatprep.subr.mxu0 0.0
    %389 = vmatpush2.msra.mxu0 0.0
    %390 = vmatprep.subr.mxu0 0.0
    %391 = vmatpush2.msra.mxu0 0.0
    %392 = vmatprep.subr.mxu0 0.0
    %393 = vmatpush2.msra.mxu0 0.0
    %394 = vmatprep.mubr.f32.mxu0 0.0
    %395 = vmatmul.mubr.f32.gmra.mxu0 %v321
    %v396 = vpop.f32.mrf.mxu0
    %v397 = vadd.f32 %v311, %v396
    %v398 = vpop.f32.mrf.mxu0
    %399 = vmatprep.mubr.f32.mxu0 0.0
    %400 = vmatmul.mubr.f32.gmra.mxu0 %v324
    %v401 = vpop.f32.mrf.mxu0
    %v402 = vadd.f32 %v316, %v401
    %v403 = vpop.f32.mrf.mxu0
    %404 = vdwg.mxu0
    %v405 = vld [vmem:[%s4] sm:$0x1]
    %v406 = vld [vmem:[%s5] sm:$0x1]
    %vm407 = vcmask 261120
    %v408 = vsel %vm407, %v397, 0.0
    %409 = vadd.xlane.f32.xlu0 %v408
    %v410 = vpop.xlane.xlu0 %409
    %v411 = vsel %vm407, %v402, 0.0
    %412 = vadd.xlane.f32.xlu0 %v411
    %v413 = vpop.xlane.xlu0 %412
    %v414 = vrcp.pop 32.0
    %v415 = vmul.f32 %v410, %v414
    %v416 = vmul.f32 %v413, %v414
    %v417 = vmul.f32 %v397, %v397
    %v418 = vmul.f32 %v402, %v402
    %v419 = vsel %vm407, %v417, 0.0
    %420 = vadd.xlane.f32.xlu0 %v419
    %v421 = vpop.xlane.xlu0 %420
    %v422 = vsel %vm407, %v418, 0.0
    %423 = vadd.xlane.f32.xlu0 %v422
    %v424 = vpop.xlane.xlu0 %423
    %v425 = vmul.f32 %v421, %v414
    %v426 = vmul.f32 %v424, %v414
    %v427 = vmul.f32 %v415, %v415
    %v428 = vmul.f32 %v416, %v416
    %v429 = vsub.f32 %v425, %v427
    %v430 = vsub.f32 %v426, %v428
    %v431 = vsub.f32 %v397, %v415
    %v432 = vsub.f32 %v402, %v416
    %v433 = vadd.f32 %v429, 1e-12
    %v434 = vadd.f32 %v430, 1e-12
    %v435 = vrsqrt.pop %v433
    %v436 = vrsqrt.pop %v434
    %v437 = vmul.f32 %v431, %v435
    %v438 = vmul.f32 %v432, %v436
    %v440 = vlaneseq
    %v441 = vshrl.u32 %v440, 7
    %v442 = vsub.s32 0, %v441
    %v443 = vrot.slane %v405, %v442
    %v445 = vmul.f32 %v437, %v443
    %v446 = vmul.f32 %v438, %v443
    %v448 = vlaneseq
    %v449 = vshrl.u32 %v448, 7
    %v450 = vsub.s32 0, %v449
    %v451 = vrot.slane %v406, %v450
    %v453 = vadd.f32 %v445, %v451
    %v454 = vadd.f32 %v446, %v451
    %vm455 = vcmp.lt.s32.totalorder %v217, 8
    %vm456 = vcmp.lt.s32.totalorder %v218, 8
    %vm457 = vmand %vm455, %vm219
    %vm458 = vmand %vm456, %vm219
    %vm459 = vcmp.ge.s32.totalorder %v217, 8
    %vm460 = vcmp.ge.s32.totalorder %v218, 8
    %vm461 = vcmp.lt.s32.totalorder %v217, 16
    %vm462 = vcmp.lt.s32.totalorder %v218, 16
    %vm463 = vmand %vm459, %vm461
    %vm464 = vmand %vm460, %vm462
    %vm465 = vcmp.ge.s32.totalorder %v190, 8
    %vm466 = vmand %vm463, %vm465
    %vm467 = vmand %vm464, %vm465
    %vm468 = vcmp.lt.s32.totalorder %v190, 16
    %vm469 = vmand %vm466, %vm468
    %vm470 = vmand %vm467, %vm468
    %vm471 = vmor %vm457, %vm469
    %vm472 = vmor %vm458, %vm470
    %v473 = vld [vmem:[%s1] sm:$0x1]
    %vm474 = vcmp.gt.s32.totalorder %v473, 0
    %v475 = vsel %vm474, 1, 0
    %v476 = vlaneseq
    %v477 = vshrl.u32 %v476, 7
    %v478 = vsub.s32 0, %v477
    %v479 = vrot.slane %v475, %v478
    %vm480 = vcmp.eq.s32.totalorder %v479, 1
    %vm481 = vmand %vm471, %vm480
    %vm482 = vmand %vm472, %vm480
    %v483 = vsel %vm481, 0.0, -1e+09
    %v484 = vsel %vm482, 0.0, -1e+09
    %v485 = vld [vmem:[%s13] sm:$0x1]
    %v486 = vld [vmem:[#allocation5] sm:$0xff]
    %v487 = vld [vmem:[#allocation5 + $0x8] sm:$0xff]
    %v488 = vld [vmem:[#allocation5 + $0x10] sm:$0xff]
    %v489 = vld [vmem:[#allocation5 + $0x18] sm:$0xff]
    %v490 = vld [vmem:[%s7] sm:$0x1]
    %v492 = vlaneseq
    %v493 = vshrl.u32 %v492, 7
    %v494 = vsub.s32 0, %v493
    %v495 = vrot.slane %v490, %v494
    %v498 = vsel %vm407, %v453, 0
    %v501 = vsel %vm407, %v454, 0
    %503 = vmatprep.subr.mxu0 0.0
    %504 = vmatpush1.msra.mxu0 0.0
    %505 = vmatprep.subr.mxu0 0.0
    %506 = vmatpush1.msra.mxu0 0.0
    %507 = vmatprep.subr.mxu0 0.0
    %508 = vmatpush1.msra.mxu0 0.0
    %509 = vmatprep.subr.mxu0 0.0
    %510 = vmatpush1.msra.mxu0 0.0
    %511 = vmatprep.subr.mxu0 0.0
    %512 = vmatpush1.msra.mxu0 0.0
    %513 = vmatprep.subr.mxu0 0.0
    %514 = vmatpush1.msra.mxu0 0.0
    %515 = vmatprep.subr.mxu0 0.0
    %516 = vmatpush1.msra.mxu0 0.0
    %517 = vmatprep.subr.mxu0 0.0
    %518 = vmatpush1.msra.mxu0 0.0
    %519 = vmatprep.subr.mxu0 0.0
    %520 = vmatpush1.msra.mxu0 0.0
    %521 = vmatprep.subr.mxu0 0.0
    %522 = vmatpush1.msra.mxu0 0.0
    %523 = vmatprep.subr.mxu0 0.0
    %524 = vmatpush1.msra.mxu0 0.0
    %525 = vmatprep.subr.mxu0 0.0
    %526 = vmatpush1.msra.mxu0 0.0
    %527 = vmatprep.subr.mxu0 0.0
    %528 = vmatpush1.msra.mxu0 %v489
    %529 = vmatprep.subr.mxu0 0.0
    %530 = vmatpush1.msra.mxu0 %v488
    %531 = vmatprep.subr.mxu0 0.0
    %532 = vmatpush1.msra.mxu0 %v487
    %533 = vmatprep.subr.mxu0 0.0
    %534 = vmatpush1.msra.mxu0 %v486
    %535 = vmatprep.subr.mxu0 0.0
    %536 = vmatpush2.msra.mxu0 0.0
    %537 = vmatprep.subr.mxu0 0.0
    %538 = vmatpush2.msra.mxu0 0.0
    %539 = vmatprep.subr.mxu0 0.0
    %540 = vmatpush2.msra.mxu0 0.0
    %541 = vmatprep.subr.mxu0 0.0
    %542 = vmatpush2.msra.mxu0 0.0
    %543 = vmatprep.subr.mxu0 0.0
    %544 = vmatpush2.msra.mxu0 0.0
    %545 = vmatprep.subr.mxu0 0.0
    %546 = vmatpush2.msra.mxu0 0.0
    %547 = vmatprep.subr.mxu0 0.0
    %548 = vmatpush2.msra.mxu0 0.0
    %549 = vmatprep.subr.mxu0 0.0
    %550 = vmatpush2.msra.mxu0 0.0
    %551 = vmatprep.subr.mxu0 0.0
    %552 = vmatpush2.msra.mxu0 0.0
    %553 = vmatprep.subr.mxu0 0.0
    %554 = vmatpush2.msra.mxu0 0.0
    %555 = vmatprep.subr.mxu0 0.0
    %556 = vmatpush2.msra.mxu0 0.0
    %557 = vmatprep.subr.mxu0 0.0
    %558 = vmatpush2.msra.mxu0 0.0
    %559 = vmatprep.subr.mxu0 0.0
    %560 = vmatpush2.msra.mxu0 0.0
    %561 = vmatprep.subr.mxu0 0.0
    %562 = vmatpush2.msra.mxu0 0.0
    %563 = vmatprep.subr.mxu0 0.0
    %564 = vmatpush2.msra.mxu0 0.0
    %565 = vmatprep.subr.mxu0 0.0
    %566 = vmatpush2.msra.mxu0 0.0
    %567 = vmatprep.mubr.f32.mxu0 0.0
    %568 = vmatmul.mubr.f32.gmra.mxu0 %v498
    %v569 = vpop.f32.mrf.mxu0
    %v570 = vadd.f32 %v495, %v569
    %v571 = vpop.f32.mrf.mxu0
    %572 = vmatprep.mubr.f32.mxu0 0.0
    %573 = vmatmul.mubr.f32.gmra.mxu0 %v501
    %v574 = vpop.f32.mrf.mxu0
    %v575 = vadd.f32 %v495, %v574
    %v576 = vpop.f32.mrf.mxu0
    %577 = vdwg.mxu0
    %v578 = vld [vmem:[#allocation7] sm:$0xff]
    %v579 = vld [vmem:[#allocation7 + $0x8] sm:$0xff]
    %v580 = vld [vmem:[%s9] sm:$0xff]
    %v581 = vld [vmem:[%s9 + $0x8] sm:$0xff]
    %583 = vset.pattern.permute.xlu0 0
    %584 = vperm.xlu0 %583, %v580
    %v585 = vpop.permute.xlu0 %584
    %588 = vset.pattern.permute.xlu0 0
    %589 = vperm.xlu0 %588, %v581
    %v590 = vpop.permute.xlu0 %589
    %v593 = vsel %vm407, %v578, 0
    %v596 = vsel %vm407, %v579, 0
    %598 = vmatprep.subr.mxu0 0.0
    %599 = vmatpush1.xpose.msra.mxu0 0.0
    %600 = vmatprep.subr.mxu0 0.0
    %601 = vmatpush1.xpose.msra.mxu0 0.0
    %602 = vmatprep.subr.mxu0 0.0
    %603 = vmatpush1.xpose.msra.mxu0 0.0
    %604 = vmatprep.subr.mxu0 0.0
    %605 = vmatpush1.xpose.msra.mxu0 0.0
    %606 = vmatprep.subr.mxu0 0.0
    %607 = vmatpush1.xpose.msra.mxu0 0.0
    %608 = vmatprep.subr.mxu0 0.0
    %609 = vmatpush1.xpose.msra.mxu0 0.0
    %610 = vmatprep.subr.mxu0 0.0
    %611 = vmatpush1.xpose.msra.mxu0 0.0
    %612 = vmatprep.subr.mxu0 0.0
    %613 = vmatpush1.xpose.msra.mxu0 0.0
    %614 = vmatprep.subr.mxu0 0.0
    %615 = vmatpush1.xpose.msra.mxu0 0.0
    %616 = vmatprep.subr.mxu0 0.0
    %617 = vmatpush1.xpose.msra.mxu0 0.0
    %618 = vmatprep.subr.mxu0 0.0
    %619 = vmatpush1.xpose.msra.mxu0 0.0
    %620 = vmatprep.subr.mxu0 0.0
    %621 = vmatpush1.xpose.msra.mxu0 0.0
    %622 = vmatprep.subr.mxu0 0.0
    %623 = vmatpush1.xpose.msra.mxu0 0.0
    %624 = vmatprep.subr.mxu0 0.0
    %625 = vmatpush1.xpose.msra.mxu0 0.0
    %626 = vmatprep.subr.mxu0 0.0
    %627 = vmatpush1.xpose.msra.mxu0 %v501
    %628 = vmatprep.subr.mxu0 0.0
    %629 = vmatpush1.xpose.msra.mxu0 %v498
    %630 = vmatprep.subr.mxu0 0.0
    %631 = vmatpush2.xpose.msra.mxu0 0.0
    %632 = vmatprep.subr.mxu0 0.0
    %633 = vmatpush2.xpose.msra.mxu0 0.0
    %634 = vmatprep.subr.mxu0 0.0
    %635 = vmatpush2.xpose.msra.mxu0 0.0
    %636 = vmatprep.subr.mxu0 0.0
    %637 = vmatpush2.xpose.msra.mxu0 0.0
    %638 = vmatprep.subr.mxu0 0.0
    %639 = vmatpush2.xpose.msra.mxu0 0.0
    %640 = vmatprep.subr.mxu0 0.0
    %641 = vmatpush2.xpose.msra.mxu0 0.0
    %642 = vmatprep.subr.mxu0 0.0
    %643 = vmatpush2.xpose.msra.mxu0 0.0
    %644 = vmatprep.subr.mxu0 0.0
    %645 = vmatpush2.xpose.msra.mxu0 0.0
    %646 = vmatprep.subr.mxu0 0.0
    %647 = vmatpush2.xpose.msra.mxu0 0.0
    %648 = vmatprep.subr.mxu0 0.0
    %649 = vmatpush2.xpose.msra.mxu0 0.0
    %650 = vmatprep.subr.mxu0 0.0
    %651 = vmatpush2.xpose.msra.mxu0 0.0
    %652 = vmatprep.subr.mxu0 0.0
    %653 = vmatpush2.xpose.msra.mxu0 0.0
    %654 = vmatprep.subr.mxu0 0.0
    %655 = vmatpush2.xpose.msra.mxu0 0.0
    %656 = vmatprep.subr.mxu0 0.0
    %657 = vmatpush2.xpose.msra.mxu0 0.0
    %658 = vmatprep.subr.mxu0 0.0
    %659 = vmatpush2.xpose.msra.mxu0 0.0
    %660 = vmatprep.subr.mxu0 0.0
    %661 = vmatpush2.xpose.msra.mxu0 0.0
    %662 = vmatprep.mubr.f32.mxu0 0.0
    %663 = vmatmul.mubr.f32.gmra.mxu0 %v593
    %v664 = vpop.f32.mrf.mxu0
    %v665 = vadd.f32 %v585, %v664
    %v666 = vpop.f32.mrf.mxu0
    %667 = vmatprep.mubr.f32.mxu0 0.0
    %668 = vmatmul.mubr.f32.gmra.mxu0 %v596
    %v669 = vpop.f32.mrf.mxu0
    %v670 = vadd.f32 %v590, %v669
    %v671 = vpop.f32.mrf.mxu0
    %672 = vdwg.mxu0
    %v673 = vld [vmem:[#allocation8] sm:$0xff]
    %v674 = vld [vmem:[#allocation8 + $0x8] sm:$0xff]
    %v675 = vld [vmem:[#allocation8 + $0x10] sm:$0xff]
    %v676 = vld [vmem:[#allocation8 + $0x18] sm:$0xff]
    %v677 = vld [vmem:[%s11] sm:$0x1]
    %v679 = vlaneseq
    %v680 = vshrl.u32 %v679, 7
    %v681 = vsub.s32 0, %v680
    %v682 = vrot.slane %v677, %v681
    %684 = vmatprep.subr.mxu0 0.0
    %685 = vmatpush1.msra.mxu0 0.0
    %686 = vmatprep.subr.mxu0 0.0
    %687 = vmatpush1.msra.mxu0 0.0
    %688 = vmatprep.subr.mxu0 0.0
    %689 = vmatpush1.msra.mxu0 0.0
    %690 = vmatprep.subr.mxu0 0.0
    %691 = vmatpush1.msra.mxu0 0.0
    %692 = vmatprep.subr.mxu0 0.0
    %693 = vmatpush1.msra.mxu0 0.0
    %694 = vmatprep.subr.mxu0 0.0
    %695 = vmatpush1.msra.mxu0 0.0
    %696 = vmatprep.subr.mxu0 0.0
    %697 = vmatpush1.msra.mxu0 0.0
    %698 = vmatprep.subr.mxu0 0.0
    %699 = vmatpush1.msra.mxu0 0.0
    %700 = vmatprep.subr.mxu0 0.0
    %701 = vmatpush1.msra.mxu0 0.0
    %702 = vmatprep.subr.mxu0 0.0
    %703 = vmatpush1.msra.mxu0 0.0
    %704 = vmatprep.subr.mxu0 0.0
    %705 = vmatpush1.msra.mxu0 0.0
    %706 = vmatprep.subr.mxu0 0.0
    %707 = vmatpush1.msra.mxu0 0.0
    %708 = vmatprep.subr.mxu0 0.0
    %709 = vmatpush1.msra.mxu0 %v676
    %710 = vmatprep.subr.mxu0 0.0
    %711 = vmatpush1.msra.mxu0 %v675
    %712 = vmatprep.subr.mxu0 0.0
    %713 = vmatpush1.msra.mxu0 %v674
    %714 = vmatprep.subr.mxu0 0.0
    %715 = vmatpush1.msra.mxu0 %v673
    %716 = vmatprep.subr.mxu0 0.0
    %717 = vmatpush2.msra.mxu0 0.0
    %718 = vmatprep.subr.mxu0 0.0
    %719 = vmatpush2.msra.mxu0 0.0
    %720 = vmatprep.subr.mxu0 0.0
    %721 = vmatpush2.msra.mxu0 0.0
    %722 = vmatprep.subr.mxu0 0.0
    %723 = vmatpush2.msra.mxu0 0.0
    %724 = vmatprep.subr.mxu0 0.0
    %725 = vmatpush2.msra.mxu0 0.0
    %726 = vmatprep.subr.mxu0 0.0
    %727 = vmatpush2.msra.mxu0 0.0
    %728 = vmatprep.subr.mxu0 0.0
    %729 = vmatpush2.msra.mxu0 0.0
    %730 = vmatprep.subr.mxu0 0.0
    %731 = vmatpush2.msra.mxu0 0.0
    %732 = vmatprep.subr.mxu0 0.0
    %733 = vmatpush2.msra.mxu0 0.0
    %734 = vmatprep.subr.mxu0 0.0
    %735 = vmatpush2.msra.mxu0 0.0
    %736 = vmatprep.subr.mxu0 0.0
    %737 = vmatpush2.msra.mxu0 0.0
    %738 = vmatprep.subr.mxu0 0.0
    %739 = vmatpush2.msra.mxu0 0.0
    %740 = vmatprep.subr.mxu0 0.0
    %741 = vmatpush2.msra.mxu0 0.0
    %742 = vmatprep.subr.mxu0 0.0
    %743 = vmatpush2.msra.mxu0 0.0
    %744 = vmatprep.subr.mxu0 0.0
    %745 = vmatpush2.msra.mxu0 0.0
    %746 = vmatprep.subr.mxu0 0.0
    %747 = vmatpush2.msra.mxu0 0.0
    %748 = vmatprep.mubr.f32.mxu0 0.0
    %749 = vmatmul.mubr.f32.gmra.mxu0 %v498
    %v750 = vpop.f32.mrf.mxu0
    %v751 = vadd.f32 %v682, %v750
    %v752 = vpop.f32.mrf.mxu0
    %753 = vmatprep.mubr.f32.mxu0 0.0
    %754 = vmatmul.mubr.f32.gmra.mxu0 %v501
    %v755 = vpop.f32.mrf.mxu0
    %v756 = vadd.f32 %v682, %v755
    %v757 = vpop.f32.mrf.mxu0
    %758 = vdwg.mxu0
    %v760 = vsel %vm237, %v570, 0
    %v763 = vsel %vm237, %v575, 0
    %765 = vmatprep.subr.mxu0 0.0
    %766 = vmatpush1.msra.mxu0 0.0
    %767 = vmatprep.subr.mxu0 0.0
    %768 = vmatpush1.msra.mxu0 0.0
    %769 = vmatprep.subr.mxu0 0.0
    %770 = vmatpush1.msra.mxu0 0.0
    %771 = vmatprep.subr.mxu0 0.0
    %772 = vmatpush1.msra.mxu0 0.0
    %773 = vmatprep.subr.mxu0 0.0
    %774 = vmatpush1.msra.mxu0 0.0
    %775 = vmatprep.subr.mxu0 0.0
    %776 = vmatpush1.msra.mxu0 0.0
    %777 = vmatprep.subr.mxu0 0.0
    %778 = vmatpush1.msra.mxu0 0.0
    %779 = vmatprep.subr.mxu0 0.0
    %780 = vmatpush1.msra.mxu0 0.0
    %781 = vmatprep.subr.mxu0 0.0
    %782 = vmatpush1.msra.mxu0 0.0
    %783 = vmatprep.subr.mxu0 0.0
    %784 = vmatpush1.msra.mxu0 0.0
    %785 = vmatprep.subr.mxu0 0.0
    %786 = vmatpush1.msra.mxu0 0.0
    %787 = vmatprep.subr.mxu0 0.0
    %788 = vmatpush1.msra.mxu0 0.0
    %789 = vmatprep.subr.mxu0 0.0
    %790 = vmatpush1.msra.mxu0 0.0
    %791 = vmatprep.subr.mxu0 0.0
    %792 = vmatpush1.msra.mxu0 0.0
    %793 = vmatprep.subr.mxu0 0.0
    %794 = vmatpush1.msra.mxu0 %v670
    %795 = vmatprep.subr.mxu0 0.0
    %796 = vmatpush1.msra.mxu0 %v665
    %797 = vmatprep.subr.mxu0 0.0
    %798 = vmatpush2.msra.mxu0 0.0
    %799 = vmatprep.subr.mxu0 0.0
    %800 = vmatpush2.msra.mxu0 0.0
    %801 = vmatprep.subr.mxu0 0.0
    %802 = vmatpush2.msra.mxu0 0.0
    %803 = vmatprep.subr.mxu0 0.0
    %804 = vmatpush2.msra.mxu0 0.0
    %805 = vmatprep.subr.mxu0 0.0
    %806 = vmatpush2.msra.mxu0 0.0
    %807 = vmatprep.subr.mxu0 0.0
    %808 = vmatpush2.msra.mxu0 0.0
    %809 = vmatprep.subr.mxu0 0.0
    %810 = vmatpush2.msra.mxu0 0.0
    %811 = vmatprep.subr.mxu0 0.0
    %812 = vmatpush2.msra.mxu0 0.0
    %813 = vmatprep.subr.mxu0 0.0
    %814 = vmatpush2.msra.mxu0 0.0
    %815 = vmatprep.subr.mxu0 0.0
    %816 = vmatpush2.msra.mxu0 0.0
    %817 = vmatprep.subr.mxu0 0.0
    %818 = vmatpush2.msra.mxu0 0.0
    %819 = vmatprep.subr.mxu0 0.0
    %820 = vmatpush2.msra.mxu0 0.0
    %821 = vmatprep.subr.mxu0 0.0
    %822 = vmatpush2.msra.mxu0 0.0
    %823 = vmatprep.subr.mxu0 0.0
    %824 = vmatpush2.msra.mxu0 0.0
    %825 = vmatprep.subr.mxu0 0.0
    %826 = vmatpush2.msra.mxu0 0.0
    %827 = vmatprep.subr.mxu0 0.0
    %828 = vmatpush2.msra.mxu0 0.0
    %829 = vmatprep.mubr.f32.mxu0 0.0
    %830 = vmatmul.mubr.f32.gmra.mxu0 %v760
    %v831 = vpop.f32.mrf.mxu0
    %v832 = vadd.f32 0.0, %v831
    %v833 = vpop.f32.mrf.mxu0
    %834 = vmatprep.mubr.f32.mxu0 0.0
    %835 = vmatmul.mubr.f32.gmra.mxu0 %v763
    %v836 = vpop.f32.mrf.mxu0
    %v837 = vadd.f32 0.0, %v836
    %v838 = vpop.f32.mrf.mxu0
    %839 = vdwg.mxu0
    %v840 = vmul.f32 %v832, 0.25
    %v841 = vmul.f32 %v837, 0.25
    %v842 = vadd.f32 %v840, %v483
    %v843 = vadd.f32 %v841, %v484
    %v844 = vsel %vm237, %v842, -inf
    %845 = vmax.xlane.f32.xlu0 %v844
    %v846 = vpop.xlane.xlu0 %845
    %v847 = vsel %vm237, %v843, -inf
    %848 = vmax.xlane.f32.xlu0 %v847
    %v849 = vpop.xlane.xlu0 %848
    %v850 = vsub.f32 %v842, %v846
    %v851 = vsub.f32 %v843, %v849
    %v852 = vmul.f32 %v850, 1.442695
    %v853 = vpow.pop %v852
    %v854 = vmul.f32 %v851, 1.442695
    %v855 = vpow.pop %v854
    %v856 = vsel %vm237, %v853, 0.0
    %857 = vadd.xlane.f32.xlu0 %v856
    %v858 = vpop.xlane.xlu0 %857
    %v859 = vsel %vm237, %v855, 0.0
    %860 = vadd.xlane.f32.xlu0 %v859
    %v861 = vpop.xlane.xlu0 %860
    %v862 = vrcp.pop %v858
    %v863 = vrcp.pop %v861
    %v864 = vmul.f32 %v853, %v862
    %v865 = vmul.f32 %v855, %v863
    %v867 = vsel %vm237, %v864, 0
    %v870 = vsel %vm237, %v865, 0
    %872 = vmatprep.subr.mxu0 0.0
    %873 = vmatpush1.msra.mxu0 0.0
    %874 = vmatprep.subr.mxu0 0.0
    %875 = vmatpush1.msra.mxu0 0.0
    %876 = vmatprep.subr.mxu0 0.0
    %877 = vmatpush1.msra.mxu0 0.0
    %878 = vmatprep.subr.mxu0 0.0
    %879 = vmatpush1.msra.mxu0 0.0
    %880 = vmatprep.subr.mxu0 0.0
    %881 = vmatpush1.msra.mxu0 0.0
    %882 = vmatprep.subr.mxu0 0.0
    %883 = vmatpush1.msra.mxu0 0.0
    %884 = vmatprep.subr.mxu0 0.0
    %885 = vmatpush1.msra.mxu0 0.0
    %886 = vmatprep.subr.mxu0 0.0
    %887 = vmatpush1.msra.mxu0 0.0
    %888 = vmatprep.subr.mxu0 0.0
    %889 = vmatpush1.msra.mxu0 0.0
    %890 = vmatprep.subr.mxu0 0.0
    %891 = vmatpush1.msra.mxu0 0.0
    %892 = vmatprep.subr.mxu0 0.0
    %893 = vmatpush1.msra.mxu0 0.0
    %894 = vmatprep.subr.mxu0 0.0
    %895 = vmatpush1.msra.mxu0 0.0
    %896 = vmatprep.subr.mxu0 0.0
    %897 = vmatpush1.msra.mxu0 0.0
    %898 = vmatprep.subr.mxu0 0.0
    %899 = vmatpush1.msra.mxu0 0.0
    %900 = vmatprep.subr.mxu0 0.0
    %901 = vmatpush1.msra.mxu0 %v756
    %902 = vmatprep.subr.mxu0 0.0
    %903 = vmatpush1.msra.mxu0 %v751
    %904 = vmatprep.subr.mxu0 0.0
    %905 = vmatpush2.msra.mxu0 0.0
    %906 = vmatprep.subr.mxu0 0.0
    %907 = vmatpush2.msra.mxu0 0.0
    %908 = vmatprep.subr.mxu0 0.0
    %909 = vmatpush2.msra.mxu0 0.0
    %910 = vmatprep.subr.mxu0 0.0
    %911 = vmatpush2.msra.mxu0 0.0
    %912 = vmatprep.subr.mxu0 0.0
    %913 = vmatpush2.msra.mxu0 0.0
    %914 = vmatprep.subr.mxu0 0.0
    %915 = vmatpush2.msra.mxu0 0.0
    %916 = vmatprep.subr.mxu0 0.0
    %917 = vmatpush2.msra.mxu0 0.0
    %918 = vmatprep.subr.mxu0 0.0
    %919 = vmatpush2.msra.mxu0 0.0
    %920 = vmatprep.subr.mxu0 0.0
    %921 = vmatpush2.msra.mxu0 0.0
    %922 = vmatprep.subr.mxu0 0.0
    %923 = vmatpush2.msra.mxu0 0.0
    %924 = vmatprep.subr.mxu0 0.0
    %925 = vmatpush2.msra.mxu0 0.0
    %926 = vmatprep.subr.mxu0 0.0
    %927 = vmatpush2.msra.mxu0 0.0
    %928 = vmatprep.subr.mxu0 0.0
    %929 = vmatpush2.msra.mxu0 0.0
    %930 = vmatprep.subr.mxu0 0.0
    %931 = vmatpush2.msra.mxu0 0.0
    %932 = vmatprep.subr.mxu0 0.0
    %933 = vmatpush2.msra.mxu0 0.0
    %934 = vmatprep.subr.mxu0 0.0
    %935 = vmatpush2.msra.mxu0 0.0
    %936 = vmatprep.mubr.f32.mxu0 0.0
    %937 = vmatmul.mubr.f32.gmra.mxu0 %v867
    %v938 = vpop.f32.mrf.mxu0
    %v939 = vadd.f32 0.0, %v938
    %v940 = vpop.f32.mrf.mxu0
    %941 = vmatprep.mubr.f32.mxu0 0.0
    %942 = vmatmul.mubr.f32.gmra.mxu0 %v870
    %v943 = vpop.f32.mrf.mxu0
    %v944 = vadd.f32 0.0, %v943
    %v945 = vpop.f32.mrf.mxu0
    %946 = vdwg.mxu0
    %v947 = vld [vmem:[#allocation10] sm:$0xff]
    %v948 = vld [vmem:[#allocation10 + $0x8] sm:$0xff]
    %v950 = vsel %vm237, %v939, 0
    %v953 = vsel %vm237, %v944, 0
    %955 = vmatprep.subr.mxu0 0.0
    %956 = vmatpush1.msra.mxu0 0.0
    %957 = vmatprep.subr.mxu0 0.0
    %958 = vmatpush1.msra.mxu0 0.0
    %959 = vmatprep.subr.mxu0 0.0
    %960 = vmatpush1.msra.mxu0 0.0
    %961 = vmatprep.subr.mxu0 0.0
    %962 = vmatpush1.msra.mxu0 0.0
    %963 = vmatprep.subr.mxu0 0.0
    %964 = vmatpush1.msra.mxu0 0.0
    %965 = vmatprep.subr.mxu0 0.0
    %966 = vmatpush1.msra.mxu0 0.0
    %967 = vmatprep.subr.mxu0 0.0
    %968 = vmatpush1.msra.mxu0 0.0
    %969 = vmatprep.subr.mxu0 0.0
    %970 = vmatpush1.msra.mxu0 0.0
    %971 = vmatprep.subr.mxu0 0.0
    %972 = vmatpush1.msra.mxu0 0.0
    %973 = vmatprep.subr.mxu0 0.0
    %974 = vmatpush1.msra.mxu0 0.0
    %975 = vmatprep.subr.mxu0 0.0
    %976 = vmatpush1.msra.mxu0 0.0
    %977 = vmatprep.subr.mxu0 0.0
    %978 = vmatpush1.msra.mxu0 0.0
    %979 = vmatprep.subr.mxu0 0.0
    %980 = vmatpush1.msra.mxu0 0.0
    %981 = vmatprep.subr.mxu0 0.0
    %982 = vmatpush1.msra.mxu0 0.0
    %983 = vmatprep.subr.mxu0 0.0
    %984 = vmatpush1.msra.mxu0 %v948
    %985 = vmatprep.subr.mxu0 0.0
    %986 = vmatpush1.msra.mxu0 %v947
    %987 = vmatprep.subr.mxu0 0.0
    %988 = vmatpush2.msra.mxu0 0.0
    %989 = vmatprep.subr.mxu0 0.0
    %990 = vmatpush2.msra.mxu0 0.0
    %991 = vmatprep.subr.mxu0 0.0
    %992 = vmatpush2.msra.mxu0 0.0
    %993 = vmatprep.subr.mxu0 0.0
    %994 = vmatpush2.msra.mxu0 0.0
    %995 = vmatprep.subr.mxu0 0.0
    %996 = vmatpush2.msra.mxu0 0.0
    %997 = vmatprep.subr.mxu0 0.0
    %998 = vmatpush2.msra.mxu0 0.0
    %999 = vmatprep.subr.mxu0 0.0
    %1000 = vmatpush2.msra.mxu0 0.0
    %1001 = vmatprep.subr.mxu0 0.0
    %1002 = vmatpush2.msra.mxu0 0.0
    %1003 = vmatprep.subr.mxu0 0.0
    %1004 = vmatpush2.msra.mxu0 0.0
    %1005 = vmatprep.subr.mxu0 0.0
    %1006 = vmatpush2.msra.mxu0 0.0
    %1007 = vmatprep.subr.mxu0 0.0
    %1008 = vmatpush2.msra.mxu0 0.0
    %1009 = vmatprep.subr.mxu0 0.0
    %1010 = vmatpush2.msra.mxu0 0.0
    %1011 = vmatprep.subr.mxu0 0.0
    %1012 = vmatpush2.msra.mxu0 0.0
    %1013 = vmatprep.subr.mxu0 0.0
    %1014 = vmatpush2.msra.mxu0 0.0
    %1015 = vmatprep.subr.mxu0 0.0
    %1016 = vmatpush2.msra.mxu0 0.0
    %1017 = vmatprep.subr.mxu0 0.0
    %1018 = vmatpush2.msra.mxu0 0.0
    %1019 = vmatprep.mubr.f32.mxu0 0.0
    %1020 = vmatmul.mubr.f32.gmra.mxu0 %v950
    %v1021 = vpop.f32.mrf.mxu0
    %v1022 = vadd.f32 0.0, %v1021
    %v1023 = vpop.f32.mrf.mxu0
    %1024 = vmatprep.mubr.f32.mxu0 0.0
    %1025 = vmatmul.mubr.f32.gmra.mxu0 %v953
    %v1026 = vpop.f32.mrf.mxu0
    %v1027 = vadd.f32 0.0, %v1026
    %v1028 = vpop.f32.mrf.mxu0
    %1029 = vdwg.mxu0
    %v1031 = vlaneseq
    %v1032 = vshrl.u32 %v1031, 7
    %v1033 = vsub.s32 0, %v1032
    %v1034 = vrot.slane %v485, %v1033
    %v1036 = vadd.f32 %v1034, %v1022
    %v1037 = vadd.f32 %v1034, %v1027
    %s1038 = scalar_lea.vmem [#allocation5], 32
    %v1039 = vld [vmem:[%s1038] sm:$0xff]
    %v1040 = vld [vmem:[%s1038 + $0x8] sm:$0xff]
    %v1041 = vld [vmem:[%s1038 + $0x10] sm:$0xff]
    %v1042 = vld [vmem:[%s1038 + $0x18] sm:$0xff]
    %s1043 = scalar_lea.vmem %s7, 1
    %v1044 = vld [vmem:[%s1043] sm:$0x1]
    %v1046 = vlaneseq
    %v1047 = vshrl.u32 %v1046, 7
    %v1048 = vsub.s32 0, %v1047
    %v1049 = vrot.slane %v1044, %v1048
    %1051 = vmatprep.subr.mxu0 0.0
    %1052 = vmatpush1.msra.mxu0 0.0
    %1053 = vmatprep.subr.mxu0 0.0
    %1054 = vmatpush1.msra.mxu0 0.0
    %1055 = vmatprep.subr.mxu0 0.0
    %1056 = vmatpush1.msra.mxu0 0.0
    %1057 = vmatprep.subr.mxu0 0.0
    %1058 = vmatpush1.msra.mxu0 0.0
    %1059 = vmatprep.subr.mxu0 0.0
    %1060 = vmatpush1.msra.mxu0 0.0
    %1061 = vmatprep.subr.mxu0 0.0
    %1062 = vmatpush1.msra.mxu0 0.0
    %1063 = vmatprep.subr.mxu0 0.0
    %1064 = vmatpush1.msra.mxu0 0.0
    %1065 = vmatprep.subr.mxu0 0.0
    %1066 = vmatpush1.msra.mxu0 0.0
    %1067 = vmatprep.subr.mxu0 0.0
    %1068 = vmatpush1.msra.mxu0 0.0
    %1069 = vmatprep.subr.mxu0 0.0
    %1070 = vmatpush1.msra.mxu0 0.0
    %1071 = vmatprep.subr.mxu0 0.0
    %1072 = vmatpush1.msra.mxu0 0.0
    %1073 = vmatprep.subr.mxu0 0.0
    %1074 = vmatpush1.msra.mxu0 0.0
    %1075 = vmatprep.subr.mxu0 0.0
    %1076 = vmatpush1.msra.mxu0 %v1042
    %1077 = vmatprep.subr.mxu0 0.0
    %1078 = vmatpush1.msra.mxu0 %v1041
    %1079 = vmatprep.subr.mxu0 0.0
    %1080 = vmatpush1.msra.mxu0 %v1040
    %1081 = vmatprep.subr.mxu0 0.0
    %1082 = vmatpush1.msra.mxu0 %v1039
    %1083 = vmatprep.subr.mxu0 0.0
    %1084 = vmatpush2.msra.mxu0 0.0
    %1085 = vmatprep.subr.mxu0 0.0
    %1086 = vmatpush2.msra.mxu0 0.0
    %1087 = vmatprep.subr.mxu0 0.0
    %1088 = vmatpush2.msra.mxu0 0.0
    %1089 = vmatprep.subr.mxu0 0.0
    %1090 = vmatpush2.msra.mxu0 0.0
    %1091 = vmatprep.subr.mxu0 0.0
    %1092 = vmatpush2.msra.mxu0 0.0
    %1093 = vmatprep.subr.mxu0 0.0
    %1094 = vmatpush2.msra.mxu0 0.0
    %1095 = vmatprep.subr.mxu0 0.0
    %1096 = vmatpush2.msra.mxu0 0.0
    %1097 = vmatprep.subr.mxu0 0.0
    %1098 = vmatpush2.msra.mxu0 0.0
    %1099 = vmatprep.subr.mxu0 0.0
    %1100 = vmatpush2.msra.mxu0 0.0
    %1101 = vmatprep.subr.mxu0 0.0
    %1102 = vmatpush2.msra.mxu0 0.0
    %1103 = vmatprep.subr.mxu0 0.0
    %1104 = vmatpush2.msra.mxu0 0.0
    %1105 = vmatprep.subr.mxu0 0.0
    %1106 = vmatpush2.msra.mxu0 0.0
    %1107 = vmatprep.subr.mxu0 0.0
    %1108 = vmatpush2.msra.mxu0 0.0
    %1109 = vmatprep.subr.mxu0 0.0
    %1110 = vmatpush2.msra.mxu0 0.0
    %1111 = vmatprep.subr.mxu0 0.0
    %1112 = vmatpush2.msra.mxu0 0.0
    %1113 = vmatprep.subr.mxu0 0.0
    %1114 = vmatpush2.msra.mxu0 0.0
    %1115 = vmatprep.mubr.f32.mxu0 0.0
    %1116 = vmatmul.mubr.f32.gmra.mxu0 %v498
    %v1117 = vpop.f32.mrf.mxu0
    %v1118 = vadd.f32 %v1049, %v1117
    %v1119 = vpop.f32.mrf.mxu0
    %1120 = vmatprep.mubr.f32.mxu0 0.0
    %1121 = vmatmul.mubr.f32.gmra.mxu0 %v501
    %v1122 = vpop.f32.mrf.mxu0
    %v1123 = vadd.f32 %v1049, %v1122
    %v1124 = vpop.f32.mrf.mxu0
    %1125 = vdwg.mxu0
    %s1126 = scalar_lea.vmem [#allocation7], 16
    %v1127 = vld [vmem:[%s1126] sm:$0xff]
    %v1128 = vld [vmem:[%s1126 + $0x8] sm:$0xff]
    %s1129 = scalar_lea.vmem %s9, 16
    %v1130 = vld [vmem:[%s1129] sm:$0xff]
    %v1131 = vld [vmem:[%s1129 + $0x8] sm:$0xff]
    %1133 = vset.pattern.permute.xlu0 0
    %1134 = vperm.xlu0 %1133, %v1130
    %v1135 = vpop.permute.xlu0 %1134
    %1138 = vset.pattern.permute.xlu0 0
    %1139 = vperm.xlu0 %1138, %v1131
    %v1140 = vpop.permute.xlu0 %1139
    %v1143 = vsel %vm407, %v1127, 0
    %v1146 = vsel %vm407, %v1128, 0
    %1148 = vmatprep.subr.mxu0 0.0
    %1149 = vmatpush1.xpose.msra.mxu0 0.0
    %1150 = vmatprep.subr.mxu0 0.0
    %1151 = vmatpush1.xpose.msra.mxu0 0.0
    %1152 = vmatprep.subr.mxu0 0.0
    %1153 = vmatpush1.xpose.msra.mxu0 0.0
    %1154 = vmatprep.subr.mxu0 0.0
    %1155 = vmatpush1.xpose.msra.mxu0 0.0
    %1156 = vmatprep.subr.mxu0 0.0
    %1157 = vmatpush1.xpose.msra.mxu0 0.0
    %1158 = vmatprep.subr.mxu0 0.0
    %1159 = vmatpush1.xpose.msra.mxu0 0.0
    %1160 = vmatprep.subr.mxu0 0.0
    %1161 = vmatpush1.xpose.msra.mxu0 0.0
    %1162 = vmatprep.subr.mxu0 0.0
    %1163 = vmatpush1.xpose.msra.mxu0 0.0
    %1164 = vmatprep.subr.mxu0 0.0
    %1165 = vmatpush1.xpose.msra.mxu0 0.0
    %1166 = vmatprep.subr.mxu0 0.0
    %1167 = vmatpush1.xpose.msra.mxu0 0.0
    %1168 = vmatprep.subr.mxu0 0.0
    %1169 = vmatpush1.xpose.msra.mxu0 0.0
    %1170 = vmatprep.subr.mxu0 0.0
    %1171 = vmatpush1.xpose.msra.mxu0 0.0
    %1172 = vmatprep.subr.mxu0 0.0
    %1173 = vmatpush1.xpose.msra.mxu0 0.0
    %1174 = vmatprep.subr.mxu0 0.0
    %1175 = vmatpush1.xpose.msra.mxu0 0.0
    %1176 = vmatprep.subr.mxu0 0.0
    %1177 = vmatpush1.xpose.msra.mxu0 %v501
    %1178 = vmatprep.subr.mxu0 0.0
    %1179 = vmatpush1.xpose.msra.mxu0 %v498
    %1180 = vmatprep.subr.mxu0 0.0
    %1181 = vmatpush2.xpose.msra.mxu0 0.0
    %1182 = vmatprep.subr.mxu0 0.0
    %1183 = vmatpush2.xpose.msra.mxu0 0.0
    %1184 = vmatprep.subr.mxu0 0.0
    %1185 = vmatpush2.xpose.msra.mxu0 0.0
    %1186 = vmatprep.subr.mxu0 0.0
    %1187 = vmatpush2.xpose.msra.mxu0 0.0
    %1188 = vmatprep.subr.mxu0 0.0
    %1189 = vmatpush2.xpose.msra.mxu0 0.0
    %1190 = vmatprep.subr.mxu0 0.0
    %1191 = vmatpush2.xpose.msra.mxu0 0.0
    %1192 = vmatprep.subr.mxu0 0.0
    %1193 = vmatpush2.xpose.msra.mxu0 0.0
    %1194 = vmatprep.subr.mxu0 0.0
    %1195 = vmatpush2.xpose.msra.mxu0 0.0
    %1196 = vmatprep.subr.mxu0 0.0
    %1197 = vmatpush2.xpose.msra.mxu0 0.0
    %1198 = vmatprep.subr.mxu0 0.0
    %1199 = vmatpush2.xpose.msra.mxu0 0.0
    %1200 = vmatprep.subr.mxu0 0.0
    %1201 = vmatpush2.xpose.msra.mxu0 0.0
    %1202 = vmatprep.subr.mxu0 0.0
    %1203 = vmatpush2.xpose.msra.mxu0 0.0
    %1204 = vmatprep.subr.mxu0 0.0
    %1205 = vmatpush2.xpose.msra.mxu0 0.0
    %1206 = vmatprep.subr.mxu0 0.0
    %1207 = vmatpush2.xpose.msra.mxu0 0.0
    %1208 = vmatprep.subr.mxu0 0.0
    %1209 = vmatpush2.xpose.msra.mxu0 0.0
    %1210 = vmatprep.subr.mxu0 0.0
    %1211 = vmatpush2.xpose.msra.mxu0 0.0
    %1212 = vmatprep.mubr.f32.mxu0 0.0
    %1213 = vmatmul.mubr.f32.gmra.mxu0 %v1143
    %v1214 = vpop.f32.mrf.mxu0
    %v1215 = vadd.f32 %v1135, %v1214
    %v1216 = vpop.f32.mrf.mxu0
    %1217 = vmatprep.mubr.f32.mxu0 0.0
    %1218 = vmatmul.mubr.f32.gmra.mxu0 %v1146
    %v1219 = vpop.f32.mrf.mxu0
    %v1220 = vadd.f32 %v1140, %v1219
    %v1221 = vpop.f32.mrf.mxu0
    %1222 = vdwg.mxu0
    %s1223 = scalar_lea.vmem [#allocation8], 32
    %v1224 = vld [vmem:[%s1223] sm:$0xff]
    %v1225 = vld [vmem:[%s1223 + $0x8] sm:$0xff]
    %v1226 = vld [vmem:[%s1223 + $0x10] sm:$0xff]
    %v1227 = vld [vmem:[%s1223 + $0x18] sm:$0xff]
    %s1228 = scalar_lea.vmem %s11, 1
    %v1229 = vld [vmem:[%s1228] sm:$0x1]
    %v1231 = vlaneseq
    %v1232 = vshrl.u32 %v1231, 7
    %v1233 = vsub.s32 0, %v1232
    %v1234 = vrot.slane %v1229, %v1233
    %1236 = vmatprep.subr.mxu0 0.0
    %1237 = vmatpush1.msra.mxu0 0.0
    %1238 = vmatprep.subr.mxu0 0.0
    %1239 = vmatpush1.msra.mxu0 0.0
    %1240 = vmatprep.subr.mxu0 0.0
    %1241 = vmatpush1.msra.mxu0 0.0
    %1242 = vmatprep.subr.mxu0 0.0
    %1243 = vmatpush1.msra.mxu0 0.0
    %1244 = vmatprep.subr.mxu0 0.0
    %1245 = vmatpush1.msra.mxu0 0.0
    %1246 = vmatprep.subr.mxu0 0.0
    %1247 = vmatpush1.msra.mxu0 0.0
    %1248 = vmatprep.subr.mxu0 0.0
    %1249 = vmatpush1.msra.mxu0 0.0
    %1250 = vmatprep.subr.mxu0 0.0
    %1251 = vmatpush1.msra.mxu0 0.0
    %1252 = vmatprep.subr.mxu0 0.0
    %1253 = vmatpush1.msra.mxu0 0.0
    %1254 = vmatprep.subr.mxu0 0.0
    %1255 = vmatpush1.msra.mxu0 0.0
    %1256 = vmatprep.subr.mxu0 0.0
    %1257 = vmatpush1.msra.mxu0 0.0
    %1258 = vmatprep.subr.mxu0 0.0
    %1259 = vmatpush1.msra.mxu0 0.0
    %1260 = vmatprep.subr.mxu0 0.0
    %1261 = vmatpush1.msra.mxu0 %v1227
    %1262 = vmatprep.subr.mxu0 0.0
    %1263 = vmatpush1.msra.mxu0 %v1226
    %1264 = vmatprep.subr.mxu0 0.0
    %1265 = vmatpush1.msra.mxu0 %v1225
    %1266 = vmatprep.subr.mxu0 0.0
    %1267 = vmatpush1.msra.mxu0 %v1224
    %1268 = vmatprep.subr.mxu0 0.0
    %1269 = vmatpush2.msra.mxu0 0.0
    %1270 = vmatprep.subr.mxu0 0.0
    %1271 = vmatpush2.msra.mxu0 0.0
    %1272 = vmatprep.subr.mxu0 0.0
    %1273 = vmatpush2.msra.mxu0 0.0
    %1274 = vmatprep.subr.mxu0 0.0
    %1275 = vmatpush2.msra.mxu0 0.0
    %1276 = vmatprep.subr.mxu0 0.0
    %1277 = vmatpush2.msra.mxu0 0.0
    %1278 = vmatprep.subr.mxu0 0.0
    %1279 = vmatpush2.msra.mxu0 0.0
    %1280 = vmatprep.subr.mxu0 0.0
    %1281 = vmatpush2.msra.mxu0 0.0
    %1282 = vmatprep.subr.mxu0 0.0
    %1283 = vmatpush2.msra.mxu0 0.0
    %1284 = vmatprep.subr.mxu0 0.0
    %1285 = vmatpush2.msra.mxu0 0.0
    %1286 = vmatprep.subr.mxu0 0.0
    %1287 = vmatpush2.msra.mxu0 0.0
    %1288 = vmatprep.subr.mxu0 0.0
    %1289 = vmatpush2.msra.mxu0 0.0
    %1290 = vmatprep.subr.mxu0 0.0
    %1291 = vmatpush2.msra.mxu0 0.0
    %1292 = vmatprep.subr.mxu0 0.0
    %1293 = vmatpush2.msra.mxu0 0.0
    %1294 = vmatprep.subr.mxu0 0.0
    %1295 = vmatpush2.msra.mxu0 0.0
    %1296 = vmatprep.subr.mxu0 0.0
    %1297 = vmatpush2.msra.mxu0 0.0
    %1298 = vmatprep.subr.mxu0 0.0
    %1299 = vmatpush2.msra.mxu0 0.0
    %1300 = vmatprep.mubr.f32.mxu0 0.0
    %1301 = vmatmul.mubr.f32.gmra.mxu0 %v498
    %v1302 = vpop.f32.mrf.mxu0
    %v1303 = vadd.f32 %v1234, %v1302
    %v1304 = vpop.f32.mrf.mxu0
    %1305 = vmatprep.mubr.f32.mxu0 0.0
    %1306 = vmatmul.mubr.f32.gmra.mxu0 %v501
    %v1307 = vpop.f32.mrf.mxu0
    %v1308 = vadd.f32 %v1234, %v1307
    %v1309 = vpop.f32.mrf.mxu0
    %1310 = vdwg.mxu0
    %v1312 = vsel %vm237, %v1118, 0
    %v1315 = vsel %vm237, %v1123, 0
    %1317 = vmatprep.subr.mxu0 0.0
    %1318 = vmatpush1.msra.mxu0 0.0
    %1319 = vmatprep.subr.mxu0 0.0
    %1320 = vmatpush1.msra.mxu0 0.0
    %1321 = vmatprep.subr.mxu0 0.0
    %1322 = vmatpush1.msra.mxu0 0.0
    %1323 = vmatprep.subr.mxu0 0.0
    %1324 = vmatpush1.msra.mxu0 0.0
    %1325 = vmatprep.subr.mxu0 0.0
    %1326 = vmatpush1.msra.mxu0 0.0
    %1327 = vmatprep.subr.mxu0 0.0
    %1328 = vmatpush1.msra.mxu0 0.0
    %1329 = vmatprep.subr.mxu0 0.0
    %1330 = vmatpush1.msra.mxu0 0.0
    %1331 = vmatprep.subr.mxu0 0.0
    %1332 = vmatpush1.msra.mxu0 0.0
    %1333 = vmatprep.subr.mxu0 0.0
    %1334 = vmatpush1.msra.mxu0 0.0
    %1335 = vmatprep.subr.mxu0 0.0
    %1336 = vmatpush1.msra.mxu0 0.0
    %1337 = vmatprep.subr.mxu0 0.0
    %1338 = vmatpush1.msra.mxu0 0.0
    %1339 = vmatprep.subr.mxu0 0.0
    %1340 = vmatpush1.msra.mxu0 0.0
    %1341 = vmatprep.subr.mxu0 0.0
    %1342 = vmatpush1.msra.mxu0 0.0
    %1343 = vmatprep.subr.mxu0 0.0
    %1344 = vmatpush1.msra.mxu0 0.0
    %1345 = vmatprep.subr.mxu0 0.0
    %1346 = vmatpush1.msra.mxu0 %v1220
    %1347 = vmatprep.subr.mxu0 0.0
    %1348 = vmatpush1.msra.mxu0 %v1215
    %1349 = vmatprep.subr.mxu0 0.0
    %1350 = vmatpush2.msra.mxu0 0.0
    %1351 = vmatprep.subr.mxu0 0.0
    %1352 = vmatpush2.msra.mxu0 0.0
    %1353 = vmatprep.subr.mxu0 0.0
    %1354 = vmatpush2.msra.mxu0 0.0
    %1355 = vmatprep.subr.mxu0 0.0
    %1356 = vmatpush2.msra.mxu0 0.0
    %1357 = vmatprep.subr.mxu0 0.0
    %1358 = vmatpush2.msra.mxu0 0.0
    %1359 = vmatprep.subr.mxu0 0.0
    %1360 = vmatpush2.msra.mxu0 0.0
    %1361 = vmatprep.subr.mxu0 0.0
    %1362 = vmatpush2.msra.mxu0 0.0
    %1363 = vmatprep.subr.mxu0 0.0
    %1364 = vmatpush2.msra.mxu0 0.0
    %1365 = vmatprep.subr.mxu0 0.0
    %1366 = vmatpush2.msra.mxu0 0.0
    %1367 = vmatprep.subr.mxu0 0.0
    %1368 = vmatpush2.msra.mxu0 0.0
    %1369 = vmatprep.subr.mxu0 0.0
    %1370 = vmatpush2.msra.mxu0 0.0
    %1371 = vmatprep.subr.mxu0 0.0
    %1372 = vmatpush2.msra.mxu0 0.0
    %1373 = vmatprep.subr.mxu0 0.0
    %1374 = vmatpush2.msra.mxu0 0.0
    %1375 = vmatprep.subr.mxu0 0.0
    %1376 = vmatpush2.msra.mxu0 0.0
    %1377 = vmatprep.subr.mxu0 0.0
    %1378 = vmatpush2.msra.mxu0 0.0
    %1379 = vmatprep.subr.mxu0 0.0
    %1380 = vmatpush2.msra.mxu0 0.0
    %1381 = vmatprep.mubr.f32.mxu0 0.0
    %1382 = vmatmul.mubr.f32.gmra.mxu0 %v1312
    %v1383 = vpop.f32.mrf.mxu0
    %v1384 = vadd.f32 0.0, %v1383
    %v1385 = vpop.f32.mrf.mxu0
    %1386 = vmatprep.mubr.f32.mxu0 0.0
    %1387 = vmatmul.mubr.f32.gmra.mxu0 %v1315
    %v1388 = vpop.f32.mrf.mxu0
    %v1389 = vadd.f32 0.0, %v1388
    %v1390 = vpop.f32.mrf.mxu0
    %1391 = vdwg.mxu0
    %v1392 = vmul.f32 %v1384, 0.25
    %v1393 = vmul.f32 %v1389, 0.25
    %v1394 = vadd.f32 %v1392, %v483
    %v1395 = vadd.f32 %v1393, %v484
    %v1396 = vsel %vm237, %v1394, -inf
    %1397 = vmax.xlane.f32.xlu0 %v1396
    %v1398 = vpop.xlane.xlu0 %1397
    %v1399 = vsel %vm237, %v1395, -inf
    %1400 = vmax.xlane.f32.xlu0 %v1399
    %v1401 = vpop.xlane.xlu0 %1400
    %v1402 = vsub.f32 %v1394, %v1398
    %v1403 = vsub.f32 %v1395, %v1401
    %v1404 = vmul.f32 %v1402, 1.442695
    %v1405 = vpow.pop %v1404
    %v1406 = vmul.f32 %v1403, 1.442695
    %v1407 = vpow.pop %v1406
    %v1408 = vsel %vm237, %v1405, 0.0
    %1409 = vadd.xlane.f32.xlu0 %v1408
    %v1410 = vpop.xlane.xlu0 %1409
    %v1411 = vsel %vm237, %v1407, 0.0
    %1412 = vadd.xlane.f32.xlu0 %v1411
    %v1413 = vpop.xlane.xlu0 %1412
    %v1414 = vrcp.pop %v1410
    %v1415 = vrcp.pop %v1413
    %v1416 = vmul.f32 %v1405, %v1414
    %v1417 = vmul.f32 %v1407, %v1415
    %v1419 = vsel %vm237, %v1416, 0
    %v1422 = vsel %vm237, %v1417, 0
    %1424 = vmatprep.subr.mxu0 0.0
    %1425 = vmatpush1.msra.mxu0 0.0
    %1426 = vmatprep.subr.mxu0 0.0
    %1427 = vmatpush1.msra.mxu0 0.0
    %1428 = vmatprep.subr.mxu0 0.0
    %1429 = vmatpush1.msra.mxu0 0.0
    %1430 = vmatprep.subr.mxu0 0.0
    %1431 = vmatpush1.msra.mxu0 0.0
    %1432 = vmatprep.subr.mxu0 0.0
    %1433 = vmatpush1.msra.mxu0 0.0
    %1434 = vmatprep.subr.mxu0 0.0
    %1435 = vmatpush1.msra.mxu0 0.0
    %1436 = vmatprep.subr.mxu0 0.0
    %1437 = vmatpush1.msra.mxu0 0.0
    %1438 = vmatprep.subr.mxu0 0.0
    %1439 = vmatpush1.msra.mxu0 0.0
    %1440 = vmatprep.subr.mxu0 0.0
    %1441 = vmatpush1.msra.mxu0 0.0
    %1442 = vmatprep.subr.mxu0 0.0
    %1443 = vmatpush1.msra.mxu0 0.0
    %1444 = vmatprep.subr.mxu0 0.0
    %1445 = vmatpush1.msra.mxu0 0.0
    %1446 = vmatprep.subr.mxu0 0.0
    %1447 = vmatpush1.msra.mxu0 0.0
    %1448 = vmatprep.subr.mxu0 0.0
    %1449 = vmatpush1.msra.mxu0 0.0
    %1450 = vmatprep.subr.mxu0 0.0
    %1451 = vmatpush1.msra.mxu0 0.0
    %1452 = vmatprep.subr.mxu0 0.0
    %1453 = vmatpush1.msra.mxu0 %v1308
    %1454 = vmatprep.subr.mxu0 0.0
    %1455 = vmatpush1.msra.mxu0 %v1303
    %1456 = vmatprep.subr.mxu0 0.0
    %1457 = vmatpush2.msra.mxu0 0.0
    %1458 = vmatprep.subr.mxu0 0.0
    %1459 = vmatpush2.msra.mxu0 0.0
    %1460 = vmatprep.subr.mxu0 0.0
    %1461 = vmatpush2.msra.mxu0 0.0
    %1462 = vmatprep.subr.mxu0 0.0
    %1463 = vmatpush2.msra.mxu0 0.0
    %1464 = vmatprep.subr.mxu0 0.0
    %1465 = vmatpush2.msra.mxu0 0.0
    %1466 = vmatprep.subr.mxu0 0.0
    %1467 = vmatpush2.msra.mxu0 0.0
    %1468 = vmatprep.subr.mxu0 0.0
    %1469 = vmatpush2.msra.mxu0 0.0
    %1470 = vmatprep.subr.mxu0 0.0
    %1471 = vmatpush2.msra.mxu0 0.0
    %1472 = vmatprep.subr.mxu0 0.0
    %1473 = vmatpush2.msra.mxu0 0.0
    %1474 = vmatprep.subr.mxu0 0.0
    %1475 = vmatpush2.msra.mxu0 0.0
    %1476 = vmatprep.subr.mxu0 0.0
    %1477 = vmatpush2.msra.mxu0 0.0
    %1478 = vmatprep.subr.mxu0 0.0
    %1479 = vmatpush2.msra.mxu0 0.0
    %1480 = vmatprep.subr.mxu0 0.0
    %1481 = vmatpush2.msra.mxu0 0.0
    %1482 = vmatprep.subr.mxu0 0.0
    %1483 = vmatpush2.msra.mxu0 0.0
    %1484 = vmatprep.subr.mxu0 0.0
    %1485 = vmatpush2.msra.mxu0 0.0
    %1486 = vmatprep.subr.mxu0 0.0
    %1487 = vmatpush2.msra.mxu0 0.0
    %1488 = vmatprep.mubr.f32.mxu0 0.0
    %1489 = vmatmul.mubr.f32.gmra.mxu0 %v1419
    %v1490 = vpop.f32.mrf.mxu0
    %v1491 = vadd.f32 0.0, %v1490
    %v1492 = vpop.f32.mrf.mxu0
    %1493 = vmatprep.mubr.f32.mxu0 0.0
    %1494 = vmatmul.mubr.f32.gmra.mxu0 %v1422
    %v1495 = vpop.f32.mrf.mxu0
    %v1496 = vadd.f32 0.0, %v1495
    %v1497 = vpop.f32.mrf.mxu0
    %1498 = vdwg.mxu0
    %s1499 = scalar_lea.vmem [#allocation10], 16
    %v1500 = vld [vmem:[%s1499] sm:$0xff]
    %v1501 = vld [vmem:[%s1499 + $0x8] sm:$0xff]
    %v1503 = vsel %vm237, %v1491, 0
    %v1506 = vsel %vm237, %v1496, 0
    %1508 = vmatprep.subr.mxu0 0.0
    %1509 = vmatpush1.msra.mxu0 0.0
    %1510 = vmatprep.subr.mxu0 0.0
    %1511 = vmatpush1.msra.mxu0 0.0
    %1512 = vmatprep.subr.mxu0 0.0
    %1513 = vmatpush1.msra.mxu0 0.0
    %1514 = vmatprep.subr.mxu0 0.0
    %1515 = vmatpush1.msra.mxu0 0.0
    %1516 = vmatprep.subr.mxu0 0.0
    %1517 = vmatpush1.msra.mxu0 0.0
    %1518 = vmatprep.subr.mxu0 0.0
    %1519 = vmatpush1.msra.mxu0 0.0
    %1520 = vmatprep.subr.mxu0 0.0
    %1521 = vmatpush1.msra.mxu0 0.0
    %1522 = vmatprep.subr.mxu0 0.0
    %1523 = vmatpush1.msra.mxu0 0.0
    %1524 = vmatprep.subr.mxu0 0.0
    %1525 = vmatpush1.msra.mxu0 0.0
    %1526 = vmatprep.subr.mxu0 0.0
    %1527 = vmatpush1.msra.mxu0 0.0
    %1528 = vmatprep.subr.mxu0 0.0
    %1529 = vmatpush1.msra.mxu0 0.0
    %1530 = vmatprep.subr.mxu0 0.0
    %1531 = vmatpush1.msra.mxu0 0.0
    %1532 = vmatprep.subr.mxu0 0.0
    %1533 = vmatpush1.msra.mxu0 0.0
    %1534 = vmatprep.subr.mxu0 0.0
    %1535 = vmatpush1.msra.mxu0 0.0
    %1536 = vmatprep.subr.mxu0 0.0
    %1537 = vmatpush1.msra.mxu0 %v1501
    %1538 = vmatprep.subr.mxu0 0.0
    %1539 = vmatpush1.msra.mxu0 %v1500
    %1540 = vmatprep.subr.mxu0 0.0
    %1541 = vmatpush2.msra.mxu0 0.0
    %1542 = vmatprep.subr.mxu0 0.0
    %1543 = vmatpush2.msra.mxu0 0.0
    %1544 = vmatprep.subr.mxu0 0.0
    %1545 = vmatpush2.msra.mxu0 0.0
    %1546 = vmatprep.subr.mxu0 0.0
    %1547 = vmatpush2.msra.mxu0 0.0
    %1548 = vmatprep.subr.mxu0 0.0
    %1549 = vmatpush2.msra.mxu0 0.0
    %1550 = vmatprep.subr.mxu0 0.0
    %1551 = vmatpush2.msra.mxu0 0.0
    %1552 = vmatprep.subr.mxu0 0.0
    %1553 = vmatpush2.msra.mxu0 0.0
    %1554 = vmatprep.subr.mxu0 0.0
    %1555 = vmatpush2.msra.mxu0 0.0
    %1556 = vmatprep.subr.mxu0 0.0
    %1557 = vmatpush2.msra.mxu0 0.0
    %1558 = vmatprep.subr.mxu0 0.0
    %1559 = vmatpush2.msra.mxu0 0.0
    %1560 = vmatprep.subr.mxu0 0.0
    %1561 = vmatpush2.msra.mxu0 0.0
    %1562 = vmatprep.subr.mxu0 0.0
    %1563 = vmatpush2.msra.mxu0 0.0
    %1564 = vmatprep.subr.mxu0 0.0
    %1565 = vmatpush2.msra.mxu0 0.0
    %1566 = vmatprep.subr.mxu0 0.0
    %1567 = vmatpush2.msra.mxu0 0.0
    %1568 = vmatprep.subr.mxu0 0.0
    %1569 = vmatpush2.msra.mxu0 0.0
    %1570 = vmatprep.subr.mxu0 0.0
    %1571 = vmatpush2.msra.mxu0 0.0
    %1572 = vmatprep.mubr.f32.mxu0 0.0
    %1573 = vmatmul.mubr.f32.gmra.mxu0 %v1503
    %v1574 = vpop.f32.mrf.mxu0
    %v1575 = vadd.f32 0.0, %v1574
    %v1576 = vpop.f32.mrf.mxu0
    %1577 = vmatprep.mubr.f32.mxu0 0.0
    %1578 = vmatmul.mubr.f32.gmra.mxu0 %v1506
    %v1579 = vpop.f32.mrf.mxu0
    %v1580 = vadd.f32 0.0, %v1579
    %v1581 = vpop.f32.mrf.mxu0
    %1582 = vdwg.mxu0
    %v1583 = vadd.f32 %v1036, %v1575
    %v1584 = vadd.f32 %v1037, %v1580
    %v1585 = vadd.f32 %v1583, %v453
    %v1586 = vadd.f32 %v1584, %v454
    %v1587 = vld [vmem:[%s14] sm:$0x1]
    %v1588 = vld [vmem:[%s15] sm:$0x1]
    %v1589 = vsel %vm407, %v1585, 0.0
    %1590 = vadd.xlane.f32.xlu0 %v1589
    %v1591 = vpop.xlane.xlu0 %1590
    %v1592 = vsel %vm407, %v1586, 0.0
    %1593 = vadd.xlane.f32.xlu0 %v1592
    %v1594 = vpop.xlane.xlu0 %1593
    %v1595 = vmul.f32 %v1591, %v414
    %v1596 = vmul.f32 %v1594, %v414
    %v1597 = vmul.f32 %v1585, %v1585
    %v1598 = vmul.f32 %v1586, %v1586
    %v1599 = vsel %vm407, %v1597, 0.0
    %1600 = vadd.xlane.f32.xlu0 %v1599
    %v1601 = vpop.xlane.xlu0 %1600
    %v1602 = vsel %vm407, %v1598, 0.0
    %1603 = vadd.xlane.f32.xlu0 %v1602
    %v1604 = vpop.xlane.xlu0 %1603
    %v1605 = vmul.f32 %v1601, %v414
    %v1606 = vmul.f32 %v1604, %v414
    %v1607 = vmul.f32 %v1595, %v1595
    %v1608 = vmul.f32 %v1596, %v1596
    %v1609 = vsub.f32 %v1605, %v1607
    %v1610 = vsub.f32 %v1606, %v1608
    %v1611 = vsub.f32 %v1585, %v1595
    %v1612 = vsub.f32 %v1586, %v1596
    %v1613 = vadd.f32 %v1609, 1e-12
    %v1614 = vadd.f32 %v1610, 1e-12
    %v1615 = vrsqrt.pop %v1613
    %v1616 = vrsqrt.pop %v1614
    %v1617 = vmul.f32 %v1611, %v1615
    %v1618 = vmul.f32 %v1612, %v1616
    %v1620 = vlaneseq
    %v1621 = vshrl.u32 %v1620, 7
    %v1622 = vsub.s32 0, %v1621
    %v1623 = vrot.slane %v1587, %v1622
    %v1625 = vmul.f32 %v1617, %v1623
    %v1626 = vmul.f32 %v1618, %v1623
    %v1628 = vlaneseq
    %v1629 = vshrl.u32 %v1628, 7
    %v1630 = vsub.s32 0, %v1629
    %v1631 = vrot.slane %v1588, %v1630
    %v1633 = vadd.f32 %v1625, %v1631
    %v1634 = vadd.f32 %v1626, %v1631
    %v1635 = vld [vmem:[#allocation11] sm:$0xff]
    %v1636 = vld [vmem:[#allocation11 + $0x8] sm:$0xff]
    %v1637 = vld [vmem:[#allocation11 + $0x10] sm:$0xff]
    %v1638 = vld [vmem:[#allocation11 + $0x18] sm:$0xff]
    %v1639 = vld [vmem:[%s17] sm:$0x1]
    %v1641 = vlaneseq
    %v1642 = vshrl.u32 %v1641, 7
    %v1643 = vsub.s32 0, %v1642
    %v1644 = vrot.slane %v1639, %v1643
    %v1647 = vsel %vm407, %v1633, 0
    %v1650 = vsel %vm407, %v1634, 0
    %1652 = vmatprep.subr.mxu0 0.0
    %1653 = vmatpush1.msra.mxu0 0.0
    %1654 = vmatprep.subr.mxu0 0.0
    %1655 = vmatpush1.msra.mxu0 0.0
    %1656 = vmatprep.subr.mxu0 0.0
    %1657 = vmatpush1.msra.mxu0 0.0
    %1658 = vmatprep.subr.mxu0 0.0
    %1659 = vmatpush1.msra.mxu0 0.0
    %1660 = vmatprep.subr.mxu0 0.0
    %1661 = vmatpush1.msra.mxu0 0.0
    %1662 = vmatprep.subr.mxu0 0.0
    %1663 = vmatpush1.msra.mxu0 0.0
    %1664 = vmatprep.subr.mxu0 0.0
    %1665 = vmatpush1.msra.mxu0 0.0
    %1666 = vmatprep.subr.mxu0 0.0
    %1667 = vmatpush1.msra.mxu0 0.0
    %1668 = vmatprep.subr.mxu0 0.0
    %1669 = vmatpush1.msra.mxu0 0.0
    %1670 = vmatprep.subr.mxu0 0.0
    %1671 = vmatpush1.msra.mxu0 0.0
    %1672 = vmatprep.subr.mxu0 0.0
    %1673 = vmatpush1.msra.mxu0 0.0
    %1674 = vmatprep.subr.mxu0 0.0
    %1675 = vmatpush1.msra.mxu0 0.0
    %1676 = vmatprep.subr.mxu0 0.0
    %1677 = vmatpush1.msra.mxu0 %v1638
    %1678 = vmatprep.subr.mxu0 0.0
    %1679 = vmatpush1.msra.mxu0 %v1637
    %1680 = vmatprep.subr.mxu0 0.0
    %1681 = vmatpush1.msra.mxu0 %v1636
    %1682 = vmatprep.subr.mxu0 0.0
    %1683 = vmatpush1.msra.mxu0 %v1635
    %1684 = vmatprep.subr.mxu0 0.0
    %1685 = vmatpush2.msra.mxu0 0.0
    %1686 = vmatprep.subr.mxu0 0.0
    %1687 = vmatpush2.msra.mxu0 0.0
    %1688 = vmatprep.subr.mxu0 0.0
    %1689 = vmatpush2.msra.mxu0 0.0
    %1690 = vmatprep.subr.mxu0 0.0
    %1691 = vmatpush2.msra.mxu0 0.0
    %1692 = vmatprep.subr.mxu0 0.0
    %1693 = vmatpush2.msra.mxu0 0.0
    %1694 = vmatprep.subr.mxu0 0.0
    %1695 = vmatpush2.msra.mxu0 0.0
    %1696 = vmatprep.subr.mxu0 0.0
    %1697 = vmatpush2.msra.mxu0 0.0
    %1698 = vmatprep.subr.mxu0 0.0
    %1699 = vmatpush2.msra.mxu0 0.0
    %1700 = vmatprep.subr.mxu0 0.0
    %1701 = vmatpush2.msra.mxu0 0.0
    %1702 = vmatprep.subr.mxu0 0.0
    %1703 = vmatpush2.msra.mxu0 0.0
    %1704 = vmatprep.subr.mxu0 0.0
    %1705 = vmatpush2.msra.mxu0 0.0
    %1706 = vmatprep.subr.mxu0 0.0
    %1707 = vmatpush2.msra.mxu0 0.0
    %1708 = vmatprep.subr.mxu0 0.0
    %1709 = vmatpush2.msra.mxu0 0.0
    %1710 = vmatprep.subr.mxu0 0.0
    %1711 = vmatpush2.msra.mxu0 0.0
    %1712 = vmatprep.subr.mxu0 0.0
    %1713 = vmatpush2.msra.mxu0 0.0
    %1714 = vmatprep.subr.mxu0 0.0
    %1715 = vmatpush2.msra.mxu0 0.0
    %1716 = vmatprep.mubr.f32.mxu0 0.0
    %1717 = vmatmul.mubr.f32.gmra.mxu0 %v1647
    %v1718 = vpop.f32.mrf.mxu0
    %v1719 = vadd.f32 %v1644, %v1718
    %v1720 = vpop.f32.mrf.mxu0
    %1721 = vmatprep.mubr.f32.mxu0 0.0
    %1722 = vmatmul.mubr.f32.gmra.mxu0 %v1650
    %v1723 = vpop.f32.mrf.mxu0
    %v1724 = vadd.f32 %v1644, %v1723
    %v1725 = vpop.f32.mrf.mxu0
    %1726 = vdwg.mxu0
    %v1727 = vmul.f32 %v1719, %v1719
    %v1728 = vmul.f32 %v1724, %v1724
    %v1729 = vmul.f32 %v1719, %v1727
    %v1730 = vmul.f32 %v1724, %v1728
    %v1731 = vmul.f32 %v1729, 0.044715
    %v1732 = vmul.f32 %v1730, 0.044715
    %v1733 = vadd.f32 %v1719, %v1731
    %v1734 = vadd.f32 %v1724, %v1732
    %v1735 = vmul.f32 %v1733, 0.7978846
    %v1736 = vmul.f32 %v1734, 0.7978846
    %v1737 = vtanh.pop %v1735
    %v1738 = vtanh.pop %v1736
    %v1739 = vadd.f32 %v1737, 1.0
    %v1740 = vadd.f32 %v1738, 1.0
    %v1741 = vmul.f32 %v1739, 0.5
    %v1742 = vmul.f32 %v1740, 0.5
    %v1743 = vmul.f32 %v1719, %v1741
    %v1744 = vmul.f32 %v1724, %v1742
    %v1745 = vld [vmem:[#allocation13] sm:$0xff]
    %v1746 = vld [vmem:[#allocation13 + $0x8] sm:$0xff]
    %v1747 = vld [vmem:[#allocation13 + $0x10] sm:$0xff]
    %v1748 = vld [vmem:[#allocation13 + $0x18] sm:$0xff]
    %v1749 = vld [vmem:[#allocation13 + $0x20] sm:$0xff]
    %v1750 = vld [vmem:[#allocation13 + $0x28] sm:$0xff]
    %v1751 = vld [vmem:[#allocation13 + $0x30] sm:$0xff]
    %v1752 = vld [vmem:[#allocation13 + $0x38] sm:$0xff]
    %v1753 = vld [vmem:[%s19] sm:$0x1]
    %v1755 = vlaneseq
    %v1756 = vshrl.u32 %v1755, 7
    %v1757 = vsub.s32 0, %v1756
    %v1758 = vrot.slane %v1753, %v1757
    %vm1760 = vcmask 523264
    %v1762 = vsel %vm1760, %v1743, 0
    %v1765 = vsel %vm1760, %v1744, 0
    %1767 = vmatprep.subr.mxu0 0.0
    %1768 = vmatpush1.msra.mxu0 0.0
    %1769 = vmatprep.subr.mxu0 0.0
    %1770 = vmatpush1.msra.mxu0 0.0
    %1771 = vmatprep.subr.mxu0 0.0
    %1772 = vmatpush1.msra.mxu0 0.0
    %1773 = vmatprep.subr.mxu0 0.0
    %1774 = vmatpush1.msra.mxu0 0.0
    %1775 = vmatprep.subr.mxu0 0.0
    %1776 = vmatpush1.msra.mxu0 0.0
    %1777 = vmatprep.subr.mxu0 0.0
    %1778 = vmatpush1.msra.mxu0 0.0
    %1779 = vmatprep.subr.mxu0 0.0
    %1780 = vmatpush1.msra.mxu0 0.0
    %1781 = vmatprep.subr.mxu0 0.0
    %1782 = vmatpush1.msra.mxu0 0.0
    %1783 = vmatprep.subr.mxu0 0.0
    %1784 = vmatpush1.msra.mxu0 %v1752
    %1785 = vmatprep.subr.mxu0 0.0
    %1786 = vmatpush1.msra.mxu0 %v1751
    %1787 = vmatprep.subr.mxu0 0.0
    %1788 = vmatpush1.msra.mxu0 %v1750
    %1789 = vmatprep.subr.mxu0 0.0
    %1790 = vmatpush1.msra.mxu0 %v1749
    %1791 = vmatprep.subr.mxu0 0.0
    %1792 = vmatpush1.msra.mxu0 %v1748
    %1793 = vmatprep.subr.mxu0 0.0
    %1794 = vmatpush1.msra.mxu0 %v1747
    %1795 = vmatprep.subr.mxu0 0.0
    %1796 = vmatpush1.msra.mxu0 %v1746
    %1797 = vmatprep.subr.mxu0 0.0
    %1798 = vmatpush1.msra.mxu0 %v1745
    %1799 = vmatprep.subr.mxu0 0.0
    %1800 = vmatpush2.msra.mxu0 0.0
    %1801 = vmatprep.subr.mxu0 0.0
    %1802 = vmatpush2.msra.mxu0 0.0
    %1803 = vmatprep.subr.mxu0 0.0
    %1804 = vmatpush2.msra.mxu0 0.0
    %1805 = vmatprep.subr.mxu0 0.0
    %1806 = vmatpush2.msra.mxu0 0.0
    %1807 = vmatprep.subr.mxu0 0.0
    %1808 = vmatpush2.msra.mxu0 0.0
    %1809 = vmatprep.subr.mxu0 0.0
    %1810 = vmatpush2.msra.mxu0 0.0
    %1811 = vmatprep.subr.mxu0 0.0
    %1812 = vmatpush2.msra.mxu0 0.0
    %1813 = vmatprep.subr.mxu0 0.0
    %1814 = vmatpush2.msra.mxu0 0.0
    %1815 = vmatprep.subr.mxu0 0.0
    %1816 = vmatpush2.msra.mxu0 0.0
    %1817 = vmatprep.subr.mxu0 0.0
    %1818 = vmatpush2.msra.mxu0 0.0
    %1819 = vmatprep.subr.mxu0 0.0
    %1820 = vmatpush2.msra.mxu0 0.0
    %1821 = vmatprep.subr.mxu0 0.0
    %1822 = vmatpush2.msra.mxu0 0.0
    %1823 = vmatprep.subr.mxu0 0.0
    %1824 = vmatpush2.msra.mxu0 0.0
    %1825 = vmatprep.subr.mxu0 0.0
    %1826 = vmatpush2.msra.mxu0 0.0
    %1827 = vmatprep.subr.mxu0 0.0
    %1828 = vmatpush2.msra.mxu0 0.0
    %1829 = vmatprep.subr.mxu0 0.0
    %1830 = vmatpush2.msra.mxu0 0.0
    %1831 = vmatprep.mubr.f32.mxu0 0.0
    %1832 = vmatmul.mubr.f32.gmra.mxu0 %v1762
    %v1833 = vpop.f32.mrf.mxu0
    %v1834 = vadd.f32 %v1758, %v1833
    %v1835 = vpop.f32.mrf.mxu0
    %1836 = vmatprep.mubr.f32.mxu0 0.0
    %1837 = vmatmul.mubr.f32.gmra.mxu0 %v1765
    %v1838 = vpop.f32.mrf.mxu0
    %v1839 = vadd.f32 %v1758, %v1838
    %v1840 = vpop.f32.mrf.mxu0
    %1841 = vdwg.mxu0
    %v1842 = vadd.f32 %v1834, %v1633
    %v1843 = vadd.f32 %v1839, %v1634
    %v1844 = vld [vmem:[%s20] sm:$0x1]
    %v1845 = vld [vmem:[%s21] sm:$0x1]
    %v1846 = vsel %vm407, %v1842, 0.0
    %1847 = vadd.xlane.f32.xlu0 %v1846
    %v1848 = vpop.xlane.xlu0 %1847
    %v1849 = vsel %vm407, %v1843, 0.0
    %1850 = vadd.xlane.f32.xlu0 %v1849
    %v1851 = vpop.xlane.xlu0 %1850
    %v1852 = vmul.f32 %v1848, %v414
    %v1853 = vmul.f32 %v1851, %v414
    %v1854 = vmul.f32 %v1842, %v1842
    %v1855 = vmul.f32 %v1843, %v1843
    %v1856 = vsel %vm407, %v1854, 0.0
    %1857 = vadd.xlane.f32.xlu0 %v1856
    %v1858 = vpop.xlane.xlu0 %1857
    %v1859 = vsel %vm407, %v1855, 0.0
    %1860 = vadd.xlane.f32.xlu0 %v1859
    %v1861 = vpop.xlane.xlu0 %1860
    %v1862 = vmul.f32 %v1858, %v414
    %v1863 = vmul.f32 %v1861, %v414
    %v1864 = vmul.f32 %v1852, %v1852
    %v1865 = vmul.f32 %v1853, %v1853
    %v1866 = vsub.f32 %v1862, %v1864
    %v1867 = vsub.f32 %v1863, %v1865
    %v1868 = vsub.f32 %v1842, %v1852
    %v1869 = vsub.f32 %v1843, %v1853
    %v1870 = vadd.f32 %v1866, 1e-12
    %v1871 = vadd.f32 %v1867, 1e-12
    %v1872 = vrsqrt.pop %v1870
    %v1873 = vrsqrt.pop %v1871
    %v1874 = vmul.f32 %v1868, %v1872
    %v1875 = vmul.f32 %v1869, %v1873
    %v1877 = vlaneseq
    %v1878 = vshrl.u32 %v1877, 7
    %v1879 = vsub.s32 0, %v1878
    %v1880 = vrot.slane %v1844, %v1879
    %v1882 = vmul.f32 %v1874, %v1880
    %v1883 = vmul.f32 %v1875, %v1880
    %v1885 = vlaneseq
    %v1886 = vshrl.u32 %v1885, 7
    %v1887 = vsub.s32 0, %v1886
    %v1888 = vrot.slane %v1845, %v1887
    %v1890 = vadd.f32 %v1882, %v1888
    %v1891 = vadd.f32 %v1883, %v1888
    %s1892 = scalar_lea.vmem %s13, 1
    %v1893 = vld [vmem:[%s1892] sm:$0x1]
    %s1894 = scalar_lea.vmem [#allocation5], 64
    %v1895 = vld [vmem:[%s1894] sm:$0xff]
    %v1896 = vld [vmem:[%s1894 + $0x8] sm:$0xff]
    %v1897 = vld [vmem:[%s1894 + $0x10] sm:$0xff]
    %v1898 = vld [vmem:[%s1894 + $0x18] sm:$0xff]
    %s1899 = scalar_lea.vmem %s7, 2
    %v1900 = vld [vmem:[%s1899] sm:$0x1]
    %v1902 = vlaneseq
    %v1903 = vshrl.u32 %v1902, 7
    %v1904 = vsub.s32 0, %v1903
    %v1905 = vrot.slane %v1900, %v1904
    %v1908 = vsel %vm407, %v1890, 0
    %v1911 = vsel %vm407, %v1891, 0
    %1913 = vmatprep.subr.mxu0 0.0
    %1914 = vmatpush1.msra.mxu0 0.0
    %1915 = vmatprep.subr.mxu0 0.0
    %1916 = vmatpush1.msra.mxu0 0.0
    %1917 = vmatprep.subr.mxu0 0.0
    %1918 = vmatpush1.msra.mxu0 0.0
    %1919 = vmatprep.subr.mxu0 0.0
    %1920 = vmatpush1.msra.mxu0 0.0
    %1921 = vmatprep.subr.mxu0 0.0
    %1922 = vmatpush1.msra.mxu0 0.0
    %1923 = vmatprep.subr.mxu0 0.0
    %1924 = vmatpush1.msra.mxu0 0.0
    %1925 = vmatprep.subr.mxu0 0.0
    %1926 = vmatpush1.msra.mxu0 0.0
    %1927 = vmatprep.subr.mxu0 0.0
    %1928 = vmatpush1.msra.mxu0 0.0
    %1929 = vmatprep.subr.mxu0 0.0
    %1930 = vmatpush1.msra.mxu0 0.0
    %1931 = vmatprep.subr.mxu0 0.0
    %1932 = vmatpush1.msra.mxu0 0.0
    %1933 = vmatprep.subr.mxu0 0.0
    %1934 = vmatpush1.msra.mxu0 0.0
    %1935 = vmatprep.subr.mxu0 0.0
    %1936 = vmatpush1.msra.mxu0 0.0
    %1937 = vmatprep.subr.mxu0 0.0
    %1938 = vmatpush1.msra.mxu0 %v1898
    %1939 = vmatprep.subr.mxu0 0.0
    %1940 = vmatpush1.msra.mxu0 %v1897
    %1941 = vmatprep.subr.mxu0 0.0
    %1942 = vmatpush1.msra.mxu0 %v1896
    %1943 = vmatprep.subr.mxu0 0.0
    %1944 = vmatpush1.msra.mxu0 %v1895
    %1945 = vmatprep.subr.mxu0 0.0
    %1946 = vmatpush2.msra.mxu0 0.0
    %1947 = vmatprep.subr.mxu0 0.0
    %1948 = vmatpush2.msra.mxu0 0.0
    %1949 = vmatprep.subr.mxu0 0.0
    %1950 = vmatpush2.msra.mxu0 0.0
    %1951 = vmatprep.subr.mxu0 0.0
    %1952 = vmatpush2.msra.mxu0 0.0
    %1953 = vmatprep.subr.mxu0 0.0
    %1954 = vmatpush2.msra.mxu0 0.0
    %1955 = vmatprep.subr.mxu0 0.0
    %1956 = vmatpush2.msra.mxu0 0.0
    %1957 = vmatprep.subr.mxu0 0.0
    %1958 = vmatpush2.msra.mxu0 0.0
    %1959 = vmatprep.subr.mxu0 0.0
    %1960 = vmatpush2.msra.mxu0 0.0
    %1961 = vmatprep.subr.mxu0 0.0
    %1962 = vmatpush2.msra.mxu0 0.0
    %1963 = vmatprep.subr.mxu0 0.0
    %1964 = vmatpush2.msra.mxu0 0.0
    %1965 = vmatprep.subr.mxu0 0.0
    %1966 = vmatpush2.msra.mxu0 0.0
    %1967 = vmatprep.subr.mxu0 0.0
    %1968 = vmatpush2.msra.mxu0 0.0
    %1969 = vmatprep.subr.mxu0 0.0
    %1970 = vmatpush2.msra.mxu0 0.0
    %1971 = vmatprep.subr.mxu0 0.0
    %1972 = vmatpush2.msra.mxu0 0.0
    %1973 = vmatprep.subr.mxu0 0.0
    %1974 = vmatpush2.msra.mxu0 0.0
    %1975 = vmatprep.subr.mxu0 0.0
    %1976 = vmatpush2.msra.mxu0 0.0
    %1977 = vmatprep.mubr.f32.mxu0 0.0
    %1978 = vmatmul.mubr.f32.gmra.mxu0 %v1908
    %v1979 = vpop.f32.mrf.mxu0
    %v1980 = vadd.f32 %v1905, %v1979
    %v1981 = vpop.f32.mrf.mxu0
    %1982 = vmatprep.mubr.f32.mxu0 0.0
    %1983 = vmatmul.mubr.f32.gmra.mxu0 %v1911
    %v1984 = vpop.f32.mrf.mxu0
    %v1985 = vadd.f32 %v1905, %v1984
    %v1986 = vpop.f32.mrf.mxu0
    %1987 = vdwg.mxu0
    %s1988 = scalar_lea.vmem [#allocation7], 32
    %v1989 = vld [vmem:[%s1988] sm:$0xff]
    %v1990 = vld [vmem:[%s1988 + $0x8] sm:$0xff]
    %s1991 = scalar_lea.vmem %s9, 32
    %v1992 = vld [vmem:[%s1991] sm:$0xff]
    %v1993 = vld [vmem:[%s1991 + $0x8] sm:$0xff]
    %1995 = vset.pattern.permute.xlu0 0
    %1996 = vperm.xlu0 %1995, %v1992
    %v1997 = vpop.permute.xlu0 %1996
    %2000 = vset.pattern.permute.xlu0 0
    %2001 = vperm.xlu0 %2000, %v1993
    %v2002 = vpop.permute.xlu0 %2001
    %v2005 = vsel %vm407, %v1989, 0
    %v2008 = vsel %vm407, %v1990, 0
    %2010 = vmatprep.subr.mxu0 0.0
    %2011 = vmatpush1.xpose.msra.mxu0 0.0
    %2012 = vmatprep.subr.mxu0 0.0
    %2013 = vmatpush1.xpose.msra.mxu0 0.0
    %2014 = vmatprep.subr.mxu0 0.0
    %2015 = vmatpush1.xpose.msra.mxu0 0.0
    %2016 = vmatprep.subr.mxu0 0.0
    %2017 = vmatpush1.xpose.msra.mxu0 0.0
    %2018 = vmatprep.subr.mxu0 0.0
    %2019 = vmatpush1.xpose.msra.mxu0 0.0
    %2020 = vmatprep.subr.mxu0 0.0
    %2021 = vmatpush1.xpose.msra.mxu0 0.0
    %2022 = vmatprep.subr.mxu0 0.0
    %2023 = vmatpush1.xpose.msra.mxu0 0.0
    %2024 = vmatprep.subr.mxu0 0.0
    %2025 = vmatpush1.xpose.msra.mxu0 0.0
    %2026 = vmatprep.subr.mxu0 0.0
    %2027 = vmatpush1.xpose.msra.mxu0 0.0
    %2028 = vmatprep.subr.mxu0 0.0
    %2029 = vmatpush1.xpose.msra.mxu0 0.0
    %2030 = vmatprep.subr.mxu0 0.0
    %2031 = vmatpush1.xpose.msra.mxu0 0.0
    %2032 = vmatprep.subr.mxu0 0.0
    %2033 = vmatpush1.xpose.msra.mxu0 0.0
    %2034 = vmatprep.subr.mxu0 0.0
    %2035 = vmatpush1.xpose.msra.mxu0 0.0
    %2036 = vmatprep.subr.mxu0 0.0
    %2037 = vmatpush1.xpose.msra.mxu0 0.0
    %2038 = vmatprep.subr.mxu0 0.0
    %2039 = vmatpush1.xpose.msra.mxu0 %v1911
    %2040 = vmatprep.subr.mxu0 0.0
    %2041 = vmatpush1.xpose.msra.mxu0 %v1908
    %2042 = vmatprep.subr.mxu0 0.0
    %2043 = vmatpush2.xpose.msra.mxu0 0.0
    %2044 = vmatprep.subr.mxu0 0.0
    %2045 = vmatpush2.xpose.msra.mxu0 0.0
    %2046 = vmatprep.subr.mxu0 0.0
    %2047 = vmatpush2.xpose.msra.mxu0 0.0
    %2048 = vmatprep.subr.mxu0 0.0
    %2049 = vmatpush2.xpose.msra.mxu0 0.0
    %2050 = vmatprep.subr.mxu0 0.0
    %2051 = vmatpush2.xpose.msra.mxu0 0.0
    %2052 = vmatprep.subr.mxu0 0.0
    %2053 = vmatpush2.xpose.msra.mxu0 0.0
    %2054 = vmatprep.subr.mxu0 0.0
    %2055 = vmatpush2.xpose.msra.mxu0 0.0
    %2056 = vmatprep.subr.mxu0 0.0
    %2057 = vmatpush2.xpose.msra.mxu0 0.0
    %2058 = vmatprep.subr.mxu0 0.0
    %2059 = vmatpush2.xpose.msra.mxu0 0.0
    %2060 = vmatprep.subr.mxu0 0.0
    %2061 = vmatpush2.xpose.msra.mxu0 0.0
    %2062 = vmatprep.subr.mxu0 0.0
    %2063 = vmatpush2.xpose.msra.mxu0 0.0
    %2064 = vmatprep.subr.mxu0 0.0
    %2065 = vmatpush2.xpose.msra.mxu0 0.0
    %2066 = vmatprep.subr.mxu0 0.0
    %2067 = vmatpush2.xpose.msra.mxu0 0.0
    %2068 = vmatprep.subr.mxu0 0.0
    %2069 = vmatpush2.xpose.msra.mxu0 0.0
    %2070 = vmatprep.subr.mxu0 0.0
    %2071 = vmatpush2.xpose.msra.mxu0 0.0
    %2072 = vmatprep.subr.mxu0 0.0
    %2073 = vmatpush2.xpose.msra.mxu0 0.0
    %2074 = vmatprep.mubr.f32.mxu0 0.0
    %2075 = vmatmul.mubr.f32.gmra.mxu0 %v2005
    %v2076 = vpop.f32.mrf.mxu0
    %v2077 = vadd.f32 %v1997, %v2076
    %v2078 = vpop.f32.mrf.mxu0
    %2079 = vmatprep.mubr.f32.mxu0 0.0
    %2080 = vmatmul.mubr.f32.gmra.mxu0 %v2008
    %v2081 = vpop.f32.mrf.mxu0
    %v2082 = vadd.f32 %v2002, %v2081
    %v2083 = vpop.f32.mrf.mxu0
    %2084 = vdwg.mxu0
    %s2085 = scalar_lea.vmem [#allocation8], 64
    %v2086 = vld [vmem:[%s2085] sm:$0xff]
    %v2087 = vld [vmem:[%s2085 + $0x8] sm:$0xff]
    %v2088 = vld [vmem:[%s2085 + $0x10] sm:$0xff]
    %v2089 = vld [vmem:[%s2085 + $0x18] sm:$0xff]
    %s2090 = scalar_lea.vmem %s11, 2
    %v2091 = vld [vmem:[%s2090] sm:$0x1]
    %v2093 = vlaneseq
    %v2094 = vshrl.u32 %v2093, 7
    %v2095 = vsub.s32 0, %v2094
    %v2096 = vrot.slane %v2091, %v2095
    %2098 = vmatprep.subr.mxu0 0.0
    %2099 = vmatpush1.msra.mxu0 0.0
    %2100 = vmatprep.subr.mxu0 0.0
    %2101 = vmatpush1.msra.mxu0 0.0
    %2102 = vmatprep.subr.mxu0 0.0
    %2103 = vmatpush1.msra.mxu0 0.0
    %2104 = vmatprep.subr.mxu0 0.0
    %2105 = vmatpush1.msra.mxu0 0.0
    %2106 = vmatprep.subr.mxu0 0.0
    %2107 = vmatpush1.msra.mxu0 0.0
    %2108 = vmatprep.subr.mxu0 0.0
    %2109 = vmatpush1.msra.mxu0 0.0
    %2110 = vmatprep.subr.mxu0 0.0
    %2111 = vmatpush1.msra.mxu0 0.0
    %2112 = vmatprep.subr.mxu0 0.0
    %2113 = vmatpush1.msra.mxu0 0.0
    %2114 = vmatprep.subr.mxu0 0.0
    %2115 = vmatpush1.msra.mxu0 0.0
    %2116 = vmatprep.subr.mxu0 0.0
    %2117 = vmatpush1.msra.mxu0 0.0
    %2118 = vmatprep.subr.mxu0 0.0
    %2119 = vmatpush1.msra.mxu0 0.0
    %2120 = vmatprep.subr.mxu0 0.0
    %2121 = vmatpush1.msra.mxu0 0.0
    %2122 = vmatprep.subr.mxu0 0.0
    %2123 = vmatpush1.msra.mxu0 %v2089
    %2124 = vmatprep.subr.mxu0 0.0
    %2125 = vmatpush1.msra.mxu0 %v2088
    %2126 = vmatprep.subr.mxu0 0.0
    %2127 = vmatpush1.msra.mxu0 %v2087
    %2128 = vmatprep.subr.mxu0 0.0
    %2129 = vmatpush1.msra.mxu0 %v2086
    %2130 = vmatprep.subr.mxu0 0.0
    %2131 = vmatpush2.msra.mxu0 0.0
    %2132 = vmatprep.subr.mxu0 0.0
    %2133 = vmatpush2.msra.mxu0 0.0
    %2134 = vmatprep.subr.mxu0 0.0
    %2135 = vmatpush2.msra.mxu0 0.0
    %2136 = vmatprep.subr.mxu0 0.0
    %2137 = vmatpush2.msra.mxu0 0.0
    %2138 = vmatprep.subr.mxu0 0.0
    %2139 = vmatpush2.msra.mxu0 0.0
    %2140 = vmatprep.subr.mxu0 0.0
    %2141 = vmatpush2.msra.mxu0 0.0
    %2142 = vmatprep.subr.mxu0 0.0
    %2143 = vmatpush2.msra.mxu0 0.0
    %2144 = vmatprep.subr.mxu0 0.0
    %2145 = vmatpush2.msra.mxu0 0.0
    %2146 = vmatprep.subr.mxu0 0.0
    %2147 = vmatpush2.msra.mxu0 0.0
    %2148 = vmatprep.subr.mxu0 0.0
    %2149 = vmatpush2.msra.mxu0 0.0
    %2150 = vmatprep.subr.mxu0 0.0
    %2151 = vmatpush2.msra.mxu0 0.0
    %2152 = vmatprep.subr.mxu0 0.0
    %2153 = vmatpush2.msra.mxu0 0.0
    %2154 = vmatprep.subr.mxu0 0.0
    %2155 = vmatpush2.msra.mxu0 0.0
    %2156 = vmatprep.subr.mxu0 0.0
    %2157 = vmatpush2.msra.mxu0 0.0
    %2158 = vmatprep.subr.mxu0 0.0
    %2159 = vmatpush2.msra.mxu0 0.0
    %2160 = vmatprep.subr.mxu0 0.0
    %2161 = vmatpush2.msra.mxu0 0.0
    %2162 = vmatprep.mubr.f32.mxu0 0.0
    %2163 = vmatmul.mubr.f32.gmra.mxu0 %v1908
    %v2164 = vpop.f32.mrf.mxu0
    %v2165 = vadd.f32 %v2096, %v2164
    %v2166 = vpop.f32.mrf.mxu0
    %2167 = vmatprep.mubr.f32.mxu0 0.0
    %2168 = vmatmul.mubr.f32.gmra.mxu0 %v1911
    %v2169 = vpop.f32.mrf.mxu0
    %v2170 = vadd.f32 %v2096, %v2169
    %v2171 = vpop.f32.mrf.mxu0
    %2172 = vdwg.mxu0
    %v2174 = vsel %vm237, %v1980, 0
    %v2177 = vsel %vm237, %v1985, 0
    %2179 = vmatprep.subr.mxu0 0.0
    %2180 = vmatpush1.msra.mxu0 0.0
    %2181 = vmatprep.subr.mxu0 0.0
    %2182 = vmatpush1.msra.mxu0 0.0
    %2183 = vmatprep.subr.mxu0 0.0
    %2184 = vmatpush1.msra.mxu0 0.0
    %2185 = vmatprep.subr.mxu0 0.0
    %2186 = vmatpush1.msra.mxu0 0.0
    %2187 = vmatprep.subr.mxu0 0.0
    %2188 = vmatpush1.msra.mxu0 0.0
    %2189 = vmatprep.subr.mxu0 0.0
    %2190 = vmatpush1.msra.mxu0 0.0
    %2191 = vmatprep.subr.mxu0 0.0
    %2192 = vmatpush1.msra.mxu0 0.0
    %2193 = vmatprep.subr.mxu0 0.0
    %2194 = vmatpush1.msra.mxu0 0.0
    %2195 = vmatprep.subr.mxu0 0.0
    %2196 = vmatpush1.msra.mxu0 0.0
    %2197 = vmatprep.subr.mxu0 0.0
    %2198 = vmatpush1.msra.mxu0 0.0
    %2199 = vmatprep.subr.mxu0 0.0
    %2200 = vmatpush1.msra.mxu0 0.0
    %2201 = vmatprep.subr.mxu0 0.0
    %2202 = vmatpush1.msra.mxu0 0.0
    %2203 = vmatprep.subr.mxu0 0.0
    %2204 = vmatpush1.msra.mxu0 0.0
    %2205 = vmatprep.subr.mxu0 0.0
    %2206 = vmatpush1.msra.mxu0 0.0
    %2207 = vmatprep.subr.mxu0 0.0
    %2208 = vmatpush1.msra.mxu0 %v2082
    %2209 = vmatprep.subr.mxu0 0.0
    %2210 = vmatpush1.msra.mxu0 %v2077
    %2211 = vmatprep.subr.mxu0 0.0
    %2212 = vmatpush2.msra.mxu0 0.0
    %2213 = vmatprep.subr.mxu0 0.0
    %2214 = vmatpush2.msra.mxu0 0.0
    %2215 = vmatprep.subr.mxu0 0.0
    %2216 = vmatpush2.msra.mxu0 0.0
    %2217 = vmatprep.subr.mxu0 0.0
    %2218 = vmatpush2.msra.mxu0 0.0
    %2219 = vmatprep.subr.mxu0 0.0
    %2220 = vmatpush2.msra.mxu0 0.0
    %2221 = vmatprep.subr.mxu0 0.0
    %2222 = vmatpush2.msra.mxu0 0.0
    %2223 = vmatprep.subr.mxu0 0.0
    %2224 = vmatpush2.msra.mxu0 0.0
    %2225 = vmatprep.subr.mxu0 0.0
    %2226 = vmatpush2.msra.mxu0 0.0
    %2227 = vmatprep.subr.mxu0 0.0
    %2228 = vmatpush2.msra.mxu0 0.0
    %2229 = vmatprep.subr.mxu0 0.0
    %2230 = vmatpush2.msra.mxu0 0.0
    %2231 = vmatprep.subr.mxu0 0.0
    %2232 = vmatpush2.msra.mxu0 0.0
    %2233 = vmatprep.subr.mxu0 0.0
    %2234 = vmatpush2.msra.mxu0 0.0
    %2235 = vmatprep.subr.mxu0 0.0
    %2236 = vmatpush2.msra.mxu0 0.0
    %2237 = vmatprep.subr.mxu0 0.0
    %2238 = vmatpush2.msra.mxu0 0.0
    %2239 = vmatprep.subr.mxu0 0.0
    %2240 = vmatpush2.msra.mxu0 0.0
    %2241 = vmatprep.subr.mxu0 0.0
    %2242 = vmatpush2.msra.mxu0 0.0
    %2243 = vmatprep.mubr.f32.mxu0 0.0
    %2244 = vmatmul.mubr.f32.gmra.mxu0 %v2174
    %v2245 = vpop.f32.mrf.mxu0
    %v2246 = vadd.f32 0.0, %v2245
    %v2247 = vpop.f32.mrf.mxu0
    %2248 = vmatprep.mubr.f32.mxu0 0.0
    %2249 = vmatmul.mubr.f32.gmra.mxu0 %v2177
    %v2250 = vpop.f32.mrf.mxu0
    %v2251 = vadd.f32 0.0, %v2250
    %v2252 = vpop.f32.mrf.mxu0
    %2253 = vdwg.mxu0
    %v2254 = vmul.f32 %v2246, 0.25
    %v2255 = vmul.f32 %v2251, 0.25
    %v2256 = vadd.f32 %v2254, %v483
    %v2257 = vadd.f32 %v2255, %v484
    %v2258 = vsel %vm237, %v2256, -inf
    %2259 = vmax.xlane.f32.xlu0 %v2258
    %v2260 = vpop.xlane.xlu0 %2259
    %v2261 = vsel %vm237, %v2257, -inf
    %2262 = vmax.xlane.f32.xlu0 %v2261
    %v2263 = vpop.xlane.xlu0 %2262
    %v2264 = vsub.f32 %v2256, %v2260
    %v2265 = vsub.f32 %v2257, %v2263
    %v2266 = vmul.f32 %v2264, 1.442695
    %v2267 = vpow.pop %v2266
    %v2268 = vmul.f32 %v2265, 1.442695
    %v2269 = vpow.pop %v2268
    %v2270 = vsel %vm237, %v2267, 0.0
    %2271 = vadd.xlane.f32.xlu0 %v2270
    %v2272 = vpop.xlane.xlu0 %2271
    %v2273 = vsel %vm237, %v2269, 0.0
    %2274 = vadd.xlane.f32.xlu0 %v2273
    %v2275 = vpop.xlane.xlu0 %2274
    %v2276 = vrcp.pop %v2272
    %v2277 = vrcp.pop %v2275
    %v2278 = vmul.f32 %v2267, %v2276
    %v2279 = vmul.f32 %v2269, %v2277
    %v2281 = vsel %vm237, %v2278, 0
    %v2284 = vsel %vm237, %v2279, 0
    %2286 = vmatprep.subr.mxu0 0.0
    %2287 = vmatpush1.msra.mxu0 0.0
    %2288 = vmatprep.subr.mxu0 0.0
    %2289 = vmatpush1.msra.mxu0 0.0
    %2290 = vmatprep.subr.mxu0 0.0
    %2291 = vmatpush1.msra.mxu0 0.0
    %2292 = vmatprep.subr.mxu0 0.0
    %2293 = vmatpush1.msra.mxu0 0.0
    %2294 = vmatprep.subr.mxu0 0.0
    %2295 = vmatpush1.msra.mxu0 0.0
    %2296 = vmatprep.subr.mxu0 0.0
    %2297 = vmatpush1.msra.mxu0 0.0
    %2298 = vmatprep.subr.mxu0 0.0
    %2299 = vmatpush1.msra.mxu0 0.0
    %2300 = vmatprep.subr.mxu0 0.0
    %2301 = vmatpush1.msra.mxu0 0.0
    %2302 = vmatprep.subr.mxu0 0.0
    %2303 = vmatpush1.msra.mxu0 0.0
    %2304 = vmatprep.subr.mxu0 0.0
    %2305 = vmatpush1.msra.mxu0 0.0
    %2306 = vmatprep.subr.mxu0 0.0
    %2307 = vmatpush1.msra.mxu0 0.0
    %2308 = vmatprep.subr.mxu0 0.0
    %2309 = vmatpush1.msra.mxu0 0.0
    %2310 = vmatprep.subr.mxu0 0.0
    %2311 = vmatpush1.msra.mxu0 0.0
    %2312 = vmatprep.subr.mxu0 0.0
    %2313 = vmatpush1.msra.mxu0 0.0
    %2314 = vmatprep.subr.mxu0 0.0
    %2315 = vmatpush1.msra.mxu0 %v2170
    %2316 = vmatprep.subr.mxu0 0.0
    %2317 = vmatpush1.msra.mxu0 %v2165
    %2318 = vmatprep.subr.mxu0 0.0
    %2319 = vmatpush2.msra.mxu0 0.0
    %2320 = vmatprep.subr.mxu0 0.0
    %2321 = vmatpush2.msra.mxu0 0.0
    %2322 = vmatprep.subr.mxu0 0.0
    %2323 = vmatpush2.msra.mxu0 0.0
    %2324 = vmatprep.subr.mxu0 0.0
    %2325 = vmatpush2.msra.mxu0 0.0
    %2326 = vmatprep.subr.mxu0 0.0
    %2327 = vmatpush2.msra.mxu0 0.0
    %2328 = vmatprep.subr.mxu0 0.0
    %2329 = vmatpush2.msra.mxu0 0.0
    %2330 = vmatprep.subr.mxu0 0.0
    %2331 = vmatpush2.msra.mxu0 0.0
    %2332 = vmatprep.subr.mxu0 0.0
    %2333 = vmatpush2.msra.mxu0 0.0
    %2334 = vmatprep.subr.mxu0 0.0
    %2335 = vmatpush2.msra.mxu0 0.0
    %2336 = vmatprep.subr.mxu0 0.0
    %2337 = vmatpush2.msra.mxu0 0.0
    %2338 = vmatprep.subr.mxu0 0.0
    %2339 = vmatpush2.msra.mxu0 0.0
    %2340 = vmatprep.subr.mxu0 0.0
    %2341 = vmatpush2.msra.mxu0 0.0
    %2342 = vmatprep.subr.mxu0 0.0
    %2343 = vmatpush2.msra.mxu0 0.0
    %2344 = vmatprep.subr.mxu0 0.0
    %2345 = vmatpush2.msra.mxu0 0.0
    %2346 = vmatprep.subr.mxu0 0.0
    %2347 = vmatpush2.msra.mxu0 0.0
    %2348 = vmatprep.subr.mxu0 0.0
    %2349 = vmatpush2.msra.mxu0 0.0
    %2350 = vmatprep.mubr.f32.mxu0 0.0
    %2351 = vmatmul.mubr.f32.gmra.mxu0 %v2281
    %v2352 = vpop.f32.mrf.mxu0
    %v2353 = vadd.f32 0.0, %v2352
    %v2354 = vpop.f32.mrf.mxu0
    %2355 = vmatprep.mubr.f32.mxu0 0.0
    %2356 = vmatmul.mubr.f32.gmra.mxu0 %v2284
    %v2357 = vpop.f32.mrf.mxu0
    %v2358 = vadd.f32 0.0, %v2357
    %v2359 = vpop.f32.mrf.mxu0
    %2360 = vdwg.mxu0
    %s2361 = scalar_lea.vmem [#allocation10], 32
    %v2362 = vld [vmem:[%s2361] sm:$0xff]
    %v2363 = vld [vmem:[%s2361 + $0x8] sm:$0xff]
    %v2365 = vsel %vm237, %v2353, 0
    %v2368 = vsel %vm237, %v2358, 0
    %2370 = vmatprep.subr.mxu0 0.0
    %2371 = vmatpush1.msra.mxu0 0.0
    %2372 = vmatprep.subr.mxu0 0.0
    %2373 = vmatpush1.msra.mxu0 0.0
    %2374 = vmatprep.subr.mxu0 0.0
    %2375 = vmatpush1.msra.mxu0 0.0
    %2376 = vmatprep.subr.mxu0 0.0
    %2377 = vmatpush1.msra.mxu0 0.0
    %2378 = vmatprep.subr.mxu0 0.0
    %2379 = vmatpush1.msra.mxu0 0.0
    %2380 = vmatprep.subr.mxu0 0.0
    %2381 = vmatpush1.msra.mxu0 0.0
    %2382 = vmatprep.subr.mxu0 0.0
    %2383 = vmatpush1.msra.mxu0 0.0
    %2384 = vmatprep.subr.mxu0 0.0
    %2385 = vmatpush1.msra.mxu0 0.0
    %2386 = vmatprep.subr.mxu0 0.0
    %2387 = vmatpush1.msra.mxu0 0.0
    %2388 = vmatprep.subr.mxu0 0.0
    %2389 = vmatpush1.msra.mxu0 0.0
    %2390 = vmatprep.subr.mxu0 0.0
    %2391 = vmatpush1.msra.mxu0 0.0
    %2392 = vmatprep.subr.mxu0 0.0
    %2393 = vmatpush1.msra.mxu0 0.0
    %2394 = vmatprep.subr.mxu0 0.0
    %2395 = vmatpush1.msra.mxu0 0.0
    %2396 = vmatprep.subr.mxu0 0.0
    %2397 = vmatpush1.msra.mxu0 0.0
    %2398 = vmatprep.subr.mxu0 0.0
    %2399 = vmatpush1.msra.mxu0 %v2363
    %2400 = vmatprep.subr.mxu0 0.0
    %2401 = vmatpush1.msra.mxu0 %v2362
    %2402 = vmatprep.subr.mxu0 0.0
    %2403 = vmatpush2.msra.mxu0 0.0
    %2404 = vmatprep.subr.mxu0 0.0
    %2405 = vmatpush2.msra.mxu0 0.0
    %2406 = vmatprep.subr.mxu0 0.0
    %2407 = vmatpush2.msra.mxu0 0.0
    %2408 = vmatprep.subr.mxu0 0.0
    %2409 = vmatpush2.msra.mxu0 0.0
    %2410 = vmatprep.subr.mxu0 0.0
    %2411 = vmatpush2.msra.mxu0 0.0
    %2412 = vmatprep.subr.mxu0 0.0
    %2413 = vmatpush2.msra.mxu0 0.0
    %2414 = vmatprep.subr.mxu0 0.0
    %2415 = vmatpush2.msra.mxu0 0.0
    %2416 = vmatprep.subr.mxu0 0.0
    %2417 = vmatpush2.msra.mxu0 0.0
    %2418 = vmatprep.subr.mxu0 0.0
    %2419 = vmatpush2.msra.mxu0 0.0
    %2420 = vmatprep.subr.mxu0 0.0
    %2421 = vmatpush2.msra.mxu0 0.0
    %2422 = vmatprep.subr.mxu0 0.0
    %2423 = vmatpush2.msra.mxu0 0.0
    %2424 = vmatprep.subr.mxu0 0.0
    %2425 = vmatpush2.msra.mxu0 0.0
    %2426 = vmatprep.subr.mxu0 0.0
    %2427 = vmatpush2.msra.mxu0 0.0
    %2428 = vmatprep.subr.mxu0 0.0
    %2429 = vmatpush2.msra.mxu0 0.0
    %2430 = vmatprep.subr.mxu0 0.0
    %2431 = vmatpush2.msra.mxu0 0.0
    %2432 = vmatprep.subr.mxu0 0.0
    %2433 = vmatpush2.msra.mxu0 0.0
    %2434 = vmatprep.mubr.f32.mxu0 0.0
    %2435 = vmatmul.mubr.f32.gmra.mxu0 %v2365
    %v2436 = vpop.f32.mrf.mxu0
    %v2437 = vadd.f32 0.0, %v2436
    %v2438 = vpop.f32.mrf.mxu0
    %2439 = vmatprep.mubr.f32.mxu0 0.0
    %2440 = vmatmul.mubr.f32.gmra.mxu0 %v2368
    %v2441 = vpop.f32.mrf.mxu0
    %v2442 = vadd.f32 0.0, %v2441
    %v2443 = vpop.f32.mrf.mxu0
    %2444 = vdwg.mxu0
    %v2446 = vlaneseq
    %v2447 = vshrl.u32 %v2446, 7
    %v2448 = vsub.s32 0, %v2447
    %v2449 = vrot.slane %v1893, %v2448
    %v2451 = vadd.f32 %v2449, %v2437
    %v2452 = vadd.f32 %v2449, %v2442
    %s2453 = scalar_lea.vmem [#allocation5], 96
    %v2454 = vld [vmem:[%s2453] sm:$0xff]
    %v2455 = vld [vmem:[%s2453 + $0x8] sm:$0xff]
    %v2456 = vld [vmem:[%s2453 + $0x10] sm:$0xff]
    %v2457 = vld [vmem:[%s2453 + $0x18] sm:$0xff]
    %s2458 = scalar_lea.vmem %s7, 3
    %v2459 = vld [vmem:[%s2458] sm:$0x1]
    %v2461 = vlaneseq
    %v2462 = vshrl.u32 %v2461, 7
    %v2463 = vsub.s32 0, %v2462
    %v2464 = vrot.slane %v2459, %v2463
    %2466 = vmatprep.subr.mxu0 0.0
    %2467 = vmatpush1.msra.mxu0 0.0
    %2468 = vmatprep.subr.mxu0 0.0
    %2469 = vmatpush1.msra.mxu0 0.0
    %2470 = vmatprep.subr.mxu0 0.0
    %2471 = vmatpush1.msra.mxu0 0.0
    %2472 = vmatprep.subr.mxu0 0.0
    %2473 = vmatpush1.msra.mxu0 0.0
    %2474 = vmatprep.subr.mxu0 0.0
    %2475 = vmatpush1.msra.mxu0 0.0
    %2476 = vmatprep.subr.mxu0 0.0
    %2477 = vmatpush1.msra.mxu0 0.0
    %2478 = vmatprep.subr.mxu0 0.0
    %2479 = vmatpush1.msra.mxu0 0.0
    %2480 = vmatprep.subr.mxu0 0.0
    %2481 = vmatpush1.msra.mxu0 0.0
    %2482 = vmatprep.subr.mxu0 0.0
    %2483 = vmatpush1.msra.mxu0 0.0
    %2484 = vmatprep.subr.mxu0 0.0
    %2485 = vmatpush1.msra.mxu0 0.0
    %2486 = vmatprep.subr.mxu0 0.0
    %2487 = vmatpush1.msra.mxu0 0.0
    %2488 = vmatprep.subr.mxu0 0.0
    %2489 = vmatpush1.msra.mxu0 0.0
    %2490 = vmatprep.subr.mxu0 0.0
    %2491 = vmatpush1.msra.mxu0 %v2457
    %2492 = vmatprep.subr.mxu0 0.0
    %2493 = vmatpush1.msra.mxu0 %v2456
    %2494 = vmatprep.subr.mxu0 0.0
    %2495 = vmatpush1.msra.mxu0 %v2455
    %2496 = vmatprep.subr.mxu0 0.0
    %2497 = vmatpush1.msra.mxu0 %v2454
    %2498 = vmatprep.subr.mxu0 0.0
    %2499 = vmatpush2.msra.mxu0 0.0
    %2500 = vmatprep.subr.mxu0 0.0
    %2501 = vmatpush2.msra.mxu0 0.0
    %2502 = vmatprep.subr.mxu0 0.0
    %2503 = vmatpush2.msra.mxu0 0.0
    %2504 = vmatprep.subr.mxu0 0.0
    %2505 = vmatpush2.msra.mxu0 0.0
    %2506 = vmatprep.subr.mxu0 0.0
    %2507 = vmatpush2.msra.mxu0 0.0
    %2508 = vmatprep.subr.mxu0 0.0
    %2509 = vmatpush2.msra.mxu0 0.0
    %2510 = vmatprep.subr.mxu0 0.0
    %2511 = vmatpush2.msra.mxu0 0.0
    %2512 = vmatprep.subr.mxu0 0.0
    %2513 = vmatpush2.msra.mxu0 0.0
    %2514 = vmatprep.subr.mxu0 0.0
    %2515 = vmatpush2.msra.mxu0 0.0
    %2516 = vmatprep.subr.mxu0 0.0
    %2517 = vmatpush2.msra.mxu0 0.0
    %2518 = vmatprep.subr.mxu0 0.0
    %2519 = vmatpush2.msra.mxu0 0.0
    %2520 = vmatprep.subr.mxu0 0.0
    %2521 = vmatpush2.msra.mxu0 0.0
    %2522 = vmatprep.subr.mxu0 0.0
    %2523 = vmatpush2.msra.mxu0 0.0
    %2524 = vmatprep.subr.mxu0 0.0
    %2525 = vmatpush2.msra.mxu0 0.0
    %2526 = vmatprep.subr.mxu0 0.0
    %2527 = vmatpush2.msra.mxu0 0.0
    %2528 = vmatprep.subr.mxu0 0.0
    %2529 = vmatpush2.msra.mxu0 0.0
    %2530 = vmatprep.mubr.f32.mxu0 0.0
    %2531 = vmatmul.mubr.f32.gmra.mxu0 %v1908
    %v2532 = vpop.f32.mrf.mxu0
    %v2533 = vadd.f32 %v2464, %v2532
    %v2534 = vpop.f32.mrf.mxu0
    %2535 = vmatprep.mubr.f32.mxu0 0.0
    %2536 = vmatmul.mubr.f32.gmra.mxu0 %v1911
    %v2537 = vpop.f32.mrf.mxu0
    %v2538 = vadd.f32 %v2464, %v2537
    %v2539 = vpop.f32.mrf.mxu0
    %2540 = vdwg.mxu0
    %s2541 = scalar_lea.vmem [#allocation7], 48
    %v2542 = vld [vmem:[%s2541] sm:$0xff]
    %v2543 = vld [vmem:[%s2541 + $0x8] sm:$0xff]
    %s2544 = scalar_lea.vmem %s9, 48
    %v2545 = vld [vmem:[%s2544] sm:$0xff]
    %v2546 = vld [vmem:[%s2544 + $0x8] sm:$0xff]
    %2548 = vset.pattern.permute.xlu0 0
    %2549 = vperm.xlu0 %2548, %v2545
    %v2550 = vpop.permute.xlu0 %2549
    %2553 = vset.pattern.permute.xlu0 0
    %2554 = vperm.xlu0 %2553, %v2546
    %v2555 = vpop.permute.xlu0 %2554
    %v2558 = vsel %vm407, %v2542, 0
    %v2561 = vsel %vm407, %v2543, 0
    %2563 = vmatprep.subr.mxu0 0.0
    %2564 = vmatpush1.xpose.msra.mxu0 0.0
    %2565 = vmatprep.subr.mxu0 0.0
    %2566 = vmatpush1.xpose.msra.mxu0 0.0
    %2567 = vmatprep.subr.mxu0 0.0
    %2568 = vmatpush1.xpose.msra.mxu0 0.0
    %2569 = vmatprep.subr.mxu0 0.0
    %2570 = vmatpush1.xpose.msra.mxu0 0.0
    %2571 = vmatprep.subr.mxu0 0.0
    %2572 = vmatpush1.xpose.msra.mxu0 0.0
    %2573 = vmatprep.subr.mxu0 0.0
    %2574 = vmatpush1.xpose.msra.mxu0 0.0
    %2575 = vmatprep.subr.mxu0 0.0
    %2576 = vmatpush1.xpose.msra.mxu0 0.0
    %2577 = vmatprep.subr.mxu0 0.0
    %2578 = vmatpush1.xpose.msra.mxu0 0.0
    %2579 = vmatprep.subr.mxu0 0.0
    %2580 = vmatpush1.xpose.msra.mxu0 0.0
    %2581 = vmatprep.subr.mxu0 0.0
    %2582 = vmatpush1.xpose.msra.mxu0 0.0
    %2583 = vmatprep.subr.mxu0 0.0
    %2584 = vmatpush1.xpose.msra.mxu0 0.0
    %2585 = vmatprep.subr.mxu0 0.0
    %2586 = vmatpush1.xpose.msra.mxu0 0.0
    %2587 = vmatprep.subr.mxu0 0.0
    %2588 = vmatpush1.xpose.msra.mxu0 0.0
    %2589 = vmatprep.subr.mxu0 0.0
    %2590 = vmatpush1.xpose.msra.mxu0 0.0
    %2591 = vmatprep.subr.mxu0 0.0
    %2592 = vmatpush1.xpose.msra.mxu0 %v1911
    %2593 = vmatprep.subr.mxu0 0.0
    %2594 = vmatpush1.xpose.msra.mxu0 %v1908
    %2595 = vmatprep.subr.mxu0 0.0
    %2596 = vmatpush2.xpose.msra.mxu0 0.0
    %2597 = vmatprep.subr.mxu0 0.0
    %2598 = vmatpush2.xpose.msra.mxu0 0.0
    %2599 = vmatprep.subr.mxu0 0.0
    %2600 = vmatpush2.xpose.msra.mxu0 0.0
    %2601 = vmatprep.subr.mxu0 0.0
    %2602 = vmatpush2.xpose.msra.mxu0 0.0
    %2603 = vmatprep.subr.mxu0 0.0
    %2604 = vmatpush2.xpose.msra.mxu0 0.0
    %2605 = vmatprep.subr.mxu0 0.0
    %2606 = vmatpush2.xpose.msra.mxu0 0.0
    %2607 = vmatprep.subr.mxu0 0.0
    %2608 = vmatpush2.xpose.msra.mxu0 0.0
    %2609 = vmatprep.subr.mxu0 0.0
    %2610 = vmatpush2.xpose.msra.mxu0 0.0
    %2611 = vmatprep.subr.mxu0 0.0
    %2612 = vmatpush2.xpose.msra.mxu0 0.0
    %2613 = vmatprep.subr.mxu0 0.0
    %2614 = vmatpush2.xpose.msra.mxu0 0.0
    %2615 = vmatprep.subr.mxu0 0.0
    %2616 = vmatpush2.xpose.msra.mxu0 0.0
    %2617 = vmatprep.subr.mxu0 0.0
    %2618 = vmatpush2.xpose.msra.mxu0 0.0
    %2619 = vmatprep.subr.mxu0 0.0
    %2620 = vmatpush2.xpose.msra.mxu0 0.0
    %2621 = vmatprep.subr.mxu0 0.0
    %2622 = vmatpush2.xpose.msra.mxu0 0.0
    %2623 = vmatprep.subr.mxu0 0.0
    %2624 = vmatpush2.xpose.msra.mxu0 0.0
    %2625 = vmatprep.subr.mxu0 0.0
    %2626 = vmatpush2.xpose.msra.mxu0 0.0
    %2627 = vmatprep.mubr.f32.mxu0 0.0
    %2628 = vmatmul.mubr.f32.gmra.mxu0 %v2558
    %v2629 = vpop.f32.mrf.mxu0
    %v2630 = vadd.f32 %v2550, %v2629
    %v2631 = vpop.f32.mrf.mxu0
    %2632 = vmatprep.mubr.f32.mxu0 0.0
    %2633 = vmatmul.mubr.f32.gmra.mxu0 %v2561
    %v2634 = vpop.f32.mrf.mxu0
    %v2635 = vadd.f32 %v2555, %v2634
    %v2636 = vpop.f32.mrf.mxu0
    %2637 = vdwg.mxu0
    %s2638 = scalar_lea.vmem [#allocation8], 96
    %v2639 = vld [vmem:[%s2638] sm:$0xff]
    %v2640 = vld [vmem:[%s2638 + $0x8] sm:$0xff]
    %v2641 = vld [vmem:[%s2638 + $0x10] sm:$0xff]
    %v2642 = vld [vmem:[%s2638 + $0x18] sm:$0xff]
    %s2643 = scalar_lea.vmem %s11, 3
    %v2644 = vld [vmem:[%s2643] sm:$0x1]
    %v2646 = vlaneseq
    %v2647 = vshrl.u32 %v2646, 7
    %v2648 = vsub.s32 0, %v2647
    %v2649 = vrot.slane %v2644, %v2648
    %2651 = vmatprep.subr.mxu0 0.0
    %2652 = vmatpush1.msra.mxu0 0.0
    %2653 = vmatprep.subr.mxu0 0.0
    %2654 = vmatpush1.msra.mxu0 0.0
    %2655 = vmatprep.subr.mxu0 0.0
    %2656 = vmatpush1.msra.mxu0 0.0
    %2657 = vmatprep.subr.mxu0 0.0
    %2658 = vmatpush1.msra.mxu0 0.0
    %2659 = vmatprep.subr.mxu0 0.0
    %2660 = vmatpush1.msra.mxu0 0.0
    %2661 = vmatprep.subr.mxu0 0.0
    %2662 = vmatpush1.msra.mxu0 0.0
    %2663 = vmatprep.subr.mxu0 0.0
    %2664 = vmatpush1.msra.mxu0 0.0
    %2665 = vmatprep.subr.mxu0 0.0
    %2666 = vmatpush1.msra.mxu0 0.0
    %2667 = vmatprep.subr.mxu0 0.0
    %2668 = vmatpush1.msra.mxu0 0.0
    %2669 = vmatprep.subr.mxu0 0.0
    %2670 = vmatpush1.msra.mxu0 0.0
    %2671 = vmatprep.subr.mxu0 0.0
    %2672 = vmatpush1.msra.mxu0 0.0
    %2673 = vmatprep.subr.mxu0 0.0
    %2674 = vmatpush1.msra.mxu0 0.0
    %2675 = vmatprep.subr.mxu0 0.0
    %2676 = vmatpush1.msra.mxu0 %v2642
    %2677 = vmatprep.subr.mxu0 0.0
    %2678 = vmatpush1.msra.mxu0 %v2641
    %2679 = vmatprep.subr.mxu0 0.0
    %2680 = vmatpush1.msra.mxu0 %v2640
    %2681 = vmatprep.subr.mxu0 0.0
    %2682 = vmatpush1.msra.mxu0 %v2639
    %2683 = vmatprep.subr.mxu0 0.0
    %2684 = vmatpush2.msra.mxu0 0.0
    %2685 = vmatprep.subr.mxu0 0.0
    %2686 = vmatpush2.msra.mxu0 0.0
    %2687 = vmatprep.subr.mxu0 0.0
    %2688 = vmatpush2.msra.mxu0 0.0
    %2689 = vmatprep.subr.mxu0 0.0
    %2690 = vmatpush2.msra.mxu0 0.0
    %2691 = vmatprep.subr.mxu0 0.0
    %2692 = vmatpush2.msra.mxu0 0.0
    %2693 = vmatprep.subr.mxu0 0.0
    %2694 = vmatpush2.msra.mxu0 0.0
    %2695 = vmatprep.subr.mxu0 0.0
    %2696 = vmatpush2.msra.mxu0 0.0
    %2697 = vmatprep.subr.mxu0 0.0
    %2698 = vmatpush2.msra.mxu0 0.0
    %2699 = vmatprep.subr.mxu0 0.0
    %2700 = vmatpush2.msra.mxu0 0.0
    %2701 = vmatprep.subr.mxu0 0.0
    %2702 = vmatpush2.msra.mxu0 0.0
    %2703 = vmatprep.subr.mxu0 0.0
    %2704 = vmatpush2.msra.mxu0 0.0
    %2705 = vmatprep.subr.mxu0 0.0
    %2706 = vmatpush2.msra.mxu0 0.0
    %2707 = vmatprep.subr.mxu0 0.0
    %2708 = vmatpush2.msra.mxu0 0.0
    %2709 = vmatprep.subr.mxu0 0.0
    %2710 = vmatpush2.msra.mxu0 0.0
    %2711 = vmatprep.subr.mxu0 0.0
    %2712 = vmatpush2.msra.mxu0 0.0
    %2713 = vmatprep.subr.mxu0 0.0
    %2714 = vmatpush2.msra.mxu0 0.0
    %2715 = vmatprep.mubr.f32.mxu0 0.0
    %2716 = vmatmul.mubr.f32.gmra.mxu0 %v1908
    %v2717 = vpop.f32.mrf.mxu0
    %v2718 = vadd.f32 %v2649, %v2717
    %v2719 = vpop.f32.mrf.mxu0
    %2720 = vmatprep.mubr.f32.mxu0 0.0
    %2721 = vmatmul.mubr.f32.gmra.mxu0 %v1911
    %v2722 = vpop.f32.mrf.mxu0
    %v2723 = vadd.f32 %v2649, %v2722
    %v2724 = vpop.f32.mrf.mxu0
    %2725 = vdwg.mxu0
    %v2727 = vsel %vm237, %v2533, 0
    %v2730 = vsel %vm237, %v2538, 0
    %2732 = vmatprep.subr.mxu0 0.0
    %2733 = vmatpush1.msra.mxu0 0.0
    %2734 = vmatprep.subr.mxu0 0.0
    %2735 = vmatpush1.msra.mxu0 0.0
    %2736 = vmatprep.subr.mxu0 0.0
    %2737 = vmatpush1.msra.mxu0 0.0
    %2738 = vmatprep.subr.mxu0 0.0
    %2739 = vmatpush1.msra.mxu0 0.0
    %2740 = vmatprep.subr.mxu0 0.0
    %2741 = vmatpush1.msra.mxu0 0.0
    %2742 = vmatprep.subr.mxu0 0.0
    %2743 = vmatpush1.msra.mxu0 0.0
    %2744 = vmatprep.subr.mxu0 0.0
    %2745 = vmatpush1.msra.mxu0 0.0
    %2746 = vmatprep.subr.mxu0 0.0
    %2747 = vmatpush1.msra.mxu0 0.0
    %2748 = vmatprep.subr.mxu0 0.0
    %2749 = vmatpush1.msra.mxu0 0.0
    %2750 = vmatprep.subr.mxu0 0.0
    %2751 = vmatpush1.msra.mxu0 0.0
    %2752 = vmatprep.subr.mxu0 0.0
    %2753 = vmatpush1.msra.mxu0 0.0
    %2754 = vmatprep.subr.mxu0 0.0
    %2755 = vmatpush1.msra.mxu0 0.0
    %2756 = vmatprep.subr.mxu0 0.0
    %2757 = vmatpush1.msra.mxu0 0.0
    %2758 = vmatprep.subr.mxu0 0.0
    %2759 = vmatpush1.msra.mxu0 0.0
    %2760 = vmatprep.subr.mxu0 0.0
    %2761 = vmatpush1.msra.mxu0 %v2635
    %2762 = vmatprep.subr.mxu0 0.0
    %2763 = vmatpush1.msra.mxu0 %v2630
    %2764 = vmatprep.subr.mxu0 0.0
    %2765 = vmatpush2.msra.mxu0 0.0
    %2766 = vmatprep.subr.mxu0 0.0
    %2767 = vmatpush2.msra.mxu0 0.0
    %2768 = vmatprep.subr.mxu0 0.0
    %2769 = vmatpush2.msra.mxu0 0.0
    %2770 = vmatprep.subr.mxu0 0.0
    %2771 = vmatpush2.msra.mxu0 0.0
    %2772 = vmatprep.subr.mxu0 0.0
    %2773 = vmatpush2.msra.mxu0 0.0
    %2774 = vmatprep.subr.mxu0 0.0
    %2775 = vmatpush2.msra.mxu0 0.0
    %2776 = vmatprep.subr.mxu0 0.0
    %2777 = vmatpush2.msra.mxu0 0.0
    %2778 = vmatprep.subr.mxu0 0.0
    %2779 = vmatpush2.msra.mxu0 0.0
    %2780 = vmatprep.subr.mxu0 0.0
    %2781 = vmatpush2.msra.mxu0 0.0
    %2782 = vmatprep.subr.mxu0 0.0
    %2783 = vmatpush2.msra.mxu0 0.0
    %2784 = vmatprep.subr.mxu0 0.0
    %2785 = vmatpush2.msra.mxu0 0.0
    %2786 = vmatprep.subr.mxu0 0.0
    %2787 = vmatpush2.msra.mxu0 0.0
    %2788 = vmatprep.subr.mxu0 0.0
    %2789 = vmatpush2.msra.mxu0 0.0
    %2790 = vmatprep.subr.mxu0 0.0
    %2791 = vmatpush2.msra.mxu0 0.0
    %2792 = vmatprep.subr.mxu0 0.0
    %2793 = vmatpush2.msra.mxu0 0.0
    %2794 = vmatprep.subr.mxu0 0.0
    %2795 = vmatpush2.msra.mxu0 0.0
    %2796 = vmatprep.mubr.f32.mxu0 0.0
    %2797 = vmatmul.mubr.f32.gmra.mxu0 %v2727
    %v2798 = vpop.f32.mrf.mxu0
    %v2799 = vadd.f32 0.0, %v2798
    %v2800 = vpop.f32.mrf.mxu0
    %2801 = vmatprep.mubr.f32.mxu0 0.0
    %2802 = vmatmul.mubr.f32.gmra.mxu0 %v2730
    %v2803 = vpop.f32.mrf.mxu0
    %v2804 = vadd.f32 0.0, %v2803
    %v2805 = vpop.f32.mrf.mxu0
    %2806 = vdwg.mxu0
    %v2807 = vmul.f32 %v2799, 0.25
    %v2808 = vmul.f32 %v2804, 0.25
    %v2809 = vadd.f32 %v2807, %v483
    %v2810 = vadd.f32 %v2808, %v484
    %v2811 = vsel %vm237, %v2809, -inf
    %2812 = vmax.xlane.f32.xlu0 %v2811
    %v2813 = vpop.xlane.xlu0 %2812
    %v2814 = vsel %vm237, %v2810, -inf
    %2815 = vmax.xlane.f32.xlu0 %v2814
    %v2816 = vpop.xlane.xlu0 %2815
    %v2817 = vsub.f32 %v2809, %v2813
    %v2818 = vsub.f32 %v2810, %v2816
    %v2819 = vmul.f32 %v2817, 1.442695
    %v2820 = vpow.pop %v2819
    %v2821 = vmul.f32 %v2818, 1.442695
    %v2822 = vpow.pop %v2821
    %v2823 = vsel %vm237, %v2820, 0.0
    %2824 = vadd.xlane.f32.xlu0 %v2823
    %v2825 = vpop.xlane.xlu0 %2824
    %v2826 = vsel %vm237, %v2822, 0.0
    %2827 = vadd.xlane.f32.xlu0 %v2826
    %v2828 = vpop.xlane.xlu0 %2827
    %v2829 = vrcp.pop %v2825
    %v2830 = vrcp.pop %v2828
    %v2831 = vmul.f32 %v2820, %v2829
    %v2832 = vmul.f32 %v2822, %v2830
    %v2834 = vsel %vm237, %v2831, 0
    %v2837 = vsel %vm237, %v2832, 0
    %2839 = vmatprep.subr.mxu0 0.0
    %2840 = vmatpush1.msra.mxu0 0.0
    %2841 = vmatprep.subr.mxu0 0.0
    %2842 = vmatpush1.msra.mxu0 0.0
    %2843 = vmatprep.subr.mxu0 0.0
    %2844 = vmatpush1.msra.mxu0 0.0
    %2845 = vmatprep.subr.mxu0 0.0
    %2846 = vmatpush1.msra.mxu0 0.0
    %2847 = vmatprep.subr.mxu0 0.0
    %2848 = vmatpush1.msra.mxu0 0.0
    %2849 = vmatprep.subr.mxu0 0.0
    %2850 = vmatpush1.msra.mxu0 0.0
    %2851 = vmatprep.subr.mxu0 0.0
    %2852 = vmatpush1.msra.mxu0 0.0
    %2853 = vmatprep.subr.mxu0 0.0
    %2854 = vmatpush1.msra.mxu0 0.0
    %2855 = vmatprep.subr.mxu0 0.0
    %2856 = vmatpush1.msra.mxu0 0.0
    %2857 = vmatprep.subr.mxu0 0.0
    %2858 = vmatpush1.msra.mxu0 0.0
    %2859 = vmatprep.subr.mxu0 0.0
    %2860 = vmatpush1.msra.mxu0 0.0
    %2861 = vmatprep.subr.mxu0 0.0
    %2862 = vmatpush1.msra.mxu0 0.0
    %2863 = vmatprep.subr.mxu0 0.0
    %2864 = vmatpush1.msra.mxu0 0.0
    %2865 = vmatprep.subr.mxu0 0.0
    %2866 = vmatpush1.msra.mxu0 0.0
    %2867 = vmatprep.subr.mxu0 0.0
    %2868 = vmatpush1.msra.mxu0 %v2723
    %2869 = vmatprep.subr.mxu0 0.0
    %2870 = vmatpush1.msra.mxu0 %v2718
    %2871 = vmatprep.subr.mxu0 0.0
    %2872 = vmatpush2.msra.mxu0 0.0
    %2873 = vmatprep.subr.mxu0 0.0
    %2874 = vmatpush2.msra.mxu0 0.0
    %2875 = vmatprep.subr.mxu0 0.0
    %2876 = vmatpush2.msra.mxu0 0.0
    %2877 = vmatprep.subr.mxu0 0.0
    %2878 = vmatpush2.msra.mxu0 0.0
    %2879 = vmatprep.subr.mxu0 0.0
    %2880 = vmatpush2.msra.mxu0 0.0
    %2881 = vmatprep.subr.mxu0 0.0
    %2882 = vmatpush2.msra.mxu0 0.0
    %2883 = vmatprep.subr.mxu0 0.0
    %2884 = vmatpush2.msra.mxu0 0.0
    %2885 = vmatprep.subr.mxu0 0.0
    %2886 = vmatpush2.msra.mxu0 0.0
    %2887 = vmatprep.subr.mxu0 0.0
    %2888 = vmatpush2.msra.mxu0 0.0
    %2889 = vmatprep.subr.mxu0 0.0
    %2890 = vmatpush2.msra.mxu0 0.0
    %2891 = vmatprep.subr.mxu0 0.0
    %2892 = vmatpush2.msra.mxu0 0.0
    %2893 = vmatprep.subr.mxu0 0.0
    %2894 = vmatpush2.msra.mxu0 0.0
    %2895 = vmatprep.subr.mxu0 0.0
    %2896 = vmatpush2.msra.mxu0 0.0
    %2897 = vmatprep.subr.mxu0 0.0
    %2898 = vmatpush2.msra.mxu0 0.0
    %2899 = vmatprep.subr.mxu0 0.0
    %2900 = vmatpush2.msra.mxu0 0.0
    %2901 = vmatprep.subr.mxu0 0.0
    %2902 = vmatpush2.msra.mxu0 0.0
    %2903 = vmatprep.mubr.f32.mxu0 0.0
    %2904 = vmatmul.mubr.f32.gmra.mxu0 %v2834
    %v2905 = vpop.f32.mrf.mxu0
    %v2906 = vadd.f32 0.0, %v2905
    %v2907 = vpop.f32.mrf.mxu0
    %2908 = vmatprep.mubr.f32.mxu0 0.0
    %2909 = vmatmul.mubr.f32.gmra.mxu0 %v2837
    %v2910 = vpop.f32.mrf.mxu0
    %v2911 = vadd.f32 0.0, %v2910
    %v2912 = vpop.f32.mrf.mxu0
    %2913 = vdwg.mxu0
    %s2914 = scalar_lea.vmem [#allocation10], 48
    %v2915 = vld [vmem:[%s2914] sm:$0xff]
    %v2916 = vld [vmem:[%s2914 + $0x8] sm:$0xff]
    %v2918 = vsel %vm237, %v2906, 0
    %v2921 = vsel %vm237, %v2911, 0
    %2923 = vmatprep.subr.mxu0 0.0
    %2924 = vmatpush1.msra.mxu0 0.0
    %2925 = vmatprep.subr.mxu0 0.0
    %2926 = vmatpush1.msra.mxu0 0.0
    %2927 = vmatprep.subr.mxu0 0.0
    %2928 = vmatpush1.msra.mxu0 0.0
    %2929 = vmatprep.subr.mxu0 0.0
    %2930 = vmatpush1.msra.mxu0 0.0
    %2931 = vmatprep.subr.mxu0 0.0
    %2932 = vmatpush1.msra.mxu0 0.0
    %2933 = vmatprep.subr.mxu0 0.0
    %2934 = vmatpush1.msra.mxu0 0.0
    %2935 = vmatprep.subr.mxu0 0.0
    %2936 = vmatpush1.msra.mxu0 0.0
    %2937 = vmatprep.subr.mxu0 0.0
    %2938 = vmatpush1.msra.mxu0 0.0
    %2939 = vmatprep.subr.mxu0 0.0
    %2940 = vmatpush1.msra.mxu0 0.0
    %2941 = vmatprep.subr.mxu0 0.0
    %2942 = vmatpush1.msra.mxu0 0.0
    %2943 = vmatprep.subr.mxu0 0.0
    %2944 = vmatpush1.msra.mxu0 0.0
    %2945 = vmatprep.subr.mxu0 0.0
    %2946 = vmatpush1.msra.mxu0 0.0
    %2947 = vmatprep.subr.mxu0 0.0
    %2948 = vmatpush1.msra.mxu0 0.0
    %2949 = vmatprep.subr.mxu0 0.0
    %2950 = vmatpush1.msra.mxu0 0.0
    %2951 = vmatprep.subr.mxu0 0.0
    %2952 = vmatpush1.msra.mxu0 %v2916
    %2953 = vmatprep.subr.mxu0 0.0
    %2954 = vmatpush1.msra.mxu0 %v2915
    %2955 = vmatprep.subr.mxu0 0.0
    %2956 = vmatpush2.msra.mxu0 0.0
    %2957 = vmatprep.subr.mxu0 0.0
    %2958 = vmatpush2.msra.mxu0 0.0
    %2959 = vmatprep.subr.mxu0 0.0
    %2960 = vmatpush2.msra.mxu0 0.0
    %2961 = vmatprep.subr.mxu0 0.0
    %2962 = vmatpush2.msra.mxu0 0.0
    %2963 = vmatprep.subr.mxu0 0.0
    %2964 = vmatpush2.msra.mxu0 0.0
    %2965 = vmatprep.subr.mxu0 0.0
    %2966 = vmatpush2.msra.mxu0 0.0
    %2967 = vmatprep.subr.mxu0 0.0
    %2968 = vmatpush2.msra.mxu0 0.0
    %2969 = vmatprep.subr.mxu0 0.0
    %2970 = vmatpush2.msra.mxu0 0.0
    %2971 = vmatprep.subr.mxu0 0.0
    %2972 = vmatpush2.msra.mxu0 0.0
    %2973 = vmatprep.subr.mxu0 0.0
    %2974 = vmatpush2.msra.mxu0 0.0
    %2975 = vmatprep.subr.mxu0 0.0
    %2976 = vmatpush2.msra.mxu0 0.0
    %2977 = vmatprep.subr.mxu0 0.0
    %2978 = vmatpush2.msra.mxu0 0.0
    %2979 = vmatprep.subr.mxu0 0.0
    %2980 = vmatpush2.msra.mxu0 0.0
    %2981 = vmatprep.subr.mxu0 0.0
    %2982 = vmatpush2.msra.mxu0 0.0
    %2983 = vmatprep.subr.mxu0 0.0
    %2984 = vmatpush2.msra.mxu0 0.0
    %2985 = vmatprep.subr.mxu0 0.0
    %2986 = vmatpush2.msra.mxu0 0.0
    %2987 = vmatprep.mubr.f32.mxu0 0.0
    %2988 = vmatmul.mubr.f32.gmra.mxu0 %v2918
    %v2989 = vpop.f32.mrf.mxu0
    %v2990 = vadd.f32 0.0, %v2989
    %v2991 = vpop.f32.mrf.mxu0
    %2992 = vmatprep.mubr.f32.mxu0 0.0
    %2993 = vmatmul.mubr.f32.gmra.mxu0 %v2921
    %v2994 = vpop.f32.mrf.mxu0
    %v2995 = vadd.f32 0.0, %v2994
    %v2996 = vpop.f32.mrf.mxu0
    %2997 = vdwg.mxu0
    %v2998 = vadd.f32 %v2451, %v2990
    %v2999 = vadd.f32 %v2452, %v2995
    %v3000 = vadd.f32 %v2998, %v1890
    %v3001 = vadd.f32 %v2999, %v1891
    %s3002 = scalar_lea.vmem %s14, 1
    %v3003 = vld [vmem:[%s3002] sm:$0x1]
    %s3004 = scalar_lea.vmem %s15, 1
    %v3005 = vld [vmem:[%s3004] sm:$0x1]
    %v3006 = vsel %vm407, %v3000, 0.0
    %3007 = vadd.xlane.f32.xlu0 %v3006
    %v3008 = vpop.xlane.xlu0 %3007
    %v3009 = vsel %vm407, %v3001, 0.0
    %3010 = vadd.xlane.f32.xlu0 %v3009
    %v3011 = vpop.xlane.xlu0 %3010
    %v3012 = vmul.f32 %v3008, %v414
    %v3013 = vmul.f32 %v3011, %v414
    %v3014 = vmul.f32 %v3000, %v3000
    %v3015 = vmul.f32 %v3001, %v3001
    %v3016 = vsel %vm407, %v3014, 0.0
    %3017 = vadd.xlane.f32.xlu0 %v3016
    %v3018 = vpop.xlane.xlu0 %3017
    %v3019 = vsel %vm407, %v3015, 0.0
    %3020 = vadd.xlane.f32.xlu0 %v3019
    %v3021 = vpop.xlane.xlu0 %3020
    %v3022 = vmul.f32 %v3018, %v414
    %v3023 = vmul.f32 %v3021, %v414
    %v3024 = vmul.f32 %v3012, %v3012
    %v3025 = vmul.f32 %v3013, %v3013
    %v3026 = vsub.f32 %v3022, %v3024
    %v3027 = vsub.f32 %v3023, %v3025
    %v3028 = vsub.f32 %v3000, %v3012
    %v3029 = vsub.f32 %v3001, %v3013
    %v3030 = vadd.f32 %v3026, 1e-12
    %v3031 = vadd.f32 %v3027, 1e-12
    %v3032 = vrsqrt.pop %v3030
    %v3033 = vrsqrt.pop %v3031
    %v3034 = vmul.f32 %v3028, %v3032
    %v3035 = vmul.f32 %v3029, %v3033
    %v3037 = vlaneseq
    %v3038 = vshrl.u32 %v3037, 7
    %v3039 = vsub.s32 0, %v3038
    %v3040 = vrot.slane %v3003, %v3039
    %v3042 = vmul.f32 %v3034, %v3040
    %v3043 = vmul.f32 %v3035, %v3040
    %v3045 = vlaneseq
    %v3046 = vshrl.u32 %v3045, 7
    %v3047 = vsub.s32 0, %v3046
    %v3048 = vrot.slane %v3005, %v3047
    %v3050 = vadd.f32 %v3042, %v3048
    %v3051 = vadd.f32 %v3043, %v3048
    %s3052 = scalar_lea.vmem [#allocation11], 32
    %v3053 = vld [vmem:[%s3052] sm:$0xff]
    %v3054 = vld [vmem:[%s3052 + $0x8] sm:$0xff]
    %v3055 = vld [vmem:[%s3052 + $0x10] sm:$0xff]
    %v3056 = vld [vmem:[%s3052 + $0x18] sm:$0xff]
    %s3057 = scalar_lea.vmem %s17, 1
    %v3058 = vld [vmem:[%s3057] sm:$0x1]
    %v3060 = vlaneseq
    %v3061 = vshrl.u32 %v3060, 7
    %v3062 = vsub.s32 0, %v3061
    %v3063 = vrot.slane %v3058, %v3062
    %v3066 = vsel %vm407, %v3050, 0
    %v3069 = vsel %vm407, %v3051, 0
    %3071 = vmatprep.subr.mxu0 0.0
    %3072 = vmatpush1.msra.mxu0 0.0
    %3073 = vmatprep.subr.mxu0 0.0
    %3074 = vmatpush1.msra.mxu0 0.0
    %3075 = vmatprep.subr.mxu0 0.0
    %3076 = vmatpush1.msra.mxu0 0.0
    %3077 = vmatprep.subr.mxu0 0.0
    %3078 = vmatpush1.msra.mxu0 0.0
    %3079 = vmatprep.subr.mxu0 0.0
    %3080 = vmatpush1.msra.mxu0 0.0
    %3081 = vmatprep.subr.mxu0 0.0
    %3082 = vmatpush1.msra.mxu0 0.0
    %3083 = vmatprep.subr.mxu0 0.0
    %3084 = vmatpush1.msra.mxu0 0.0
    %3085 = vmatprep.subr.mxu0 0.0
    %3086 = vmatpush1.msra.mxu0 0.0
    %3087 = vmatprep.subr.mxu0 0.0
    %3088 = vmatpush1.msra.mxu0 0.0
    %3089 = vmatprep.subr.mxu0 0.0
    %3090 = vmatpush1.msra.mxu0 0.0
    %3091 = vmatprep.subr.mxu0 0.0
    %3092 = vmatpush1.msra.mxu0 0.0
    %3093 = vmatprep.subr.mxu0 0.0
    %3094 = vmatpush1.msra.mxu0 0.0
    %3095 = vmatprep.subr.mxu0 0.0
    %3096 = vmatpush1.msra.mxu0 %v3056
    %3097 = vmatprep.subr.mxu0 0.0
    %3098 = vmatpush1.msra.mxu0 %v3055
    %3099 = vmatprep.subr.mxu0 0.0
    %3100 = vmatpush1.msra.mxu0 %v3054
    %3101 = vmatprep.subr.mxu0 0.0
    %3102 = vmatpush1.msra.mxu0 %v3053
    %3103 = vmatprep.subr.mxu0 0.0
    %3104 = vmatpush2.msra.mxu0 0.0
    %3105 = vmatprep.subr.mxu0 0.0
    %3106 = vmatpush2.msra.mxu0 0.0
    %3107 = vmatprep.subr.mxu0 0.0
    %3108 = vmatpush2.msra.mxu0 0.0
    %3109 = vmatprep.subr.mxu0 0.0
    %3110 = vmatpush2.msra.mxu0 0.0
    %3111 = vmatprep.subr.mxu0 0.0
    %3112 = vmatpush2.msra.mxu0 0.0
    %3113 = vmatprep.subr.mxu0 0.0
    %3114 = vmatpush2.msra.mxu0 0.0
    %3115 = vmatprep.subr.mxu0 0.0
    %3116 = vmatpush2.msra.mxu0 0.0
    %3117 = vmatprep.subr.mxu0 0.0
    %3118 = vmatpush2.msra.mxu0 0.0
    %3119 = vmatprep.subr.mxu0 0.0
    %3120 = vmatpush2.msra.mxu0 0.0
    %3121 = vmatprep.subr.mxu0 0.0
    %3122 = vmatpush2.msra.mxu0 0.0
    %3123 = vmatprep.subr.mxu0 0.0
    %3124 = vmatpush2.msra.mxu0 0.0
    %3125 = vmatprep.subr.mxu0 0.0
    %3126 = vmatpush2.msra.mxu0 0.0
    %3127 = vmatprep.subr.mxu0 0.0
    %3128 = vmatpush2.msra.mxu0 0.0
    %3129 = vmatprep.subr.mxu0 0.0
    %3130 = vmatpush2.msra.mxu0 0.0
    %3131 = vmatprep.subr.mxu0 0.0
    %3132 = vmatpush2.msra.mxu0 0.0
    %3133 = vmatprep.subr.mxu0 0.0
    %3134 = vmatpush2.msra.mxu0 0.0
    %3135 = vmatprep.mubr.f32.mxu0 0.0
    %3136 = vmatmul.mubr.f32.gmra.mxu0 %v3066
    %v3137 = vpop.f32.mrf.mxu0
    %v3138 = vadd.f32 %v3063, %v3137
    %v3139 = vpop.f32.mrf.mxu0
    %3140 = vmatprep.mubr.f32.mxu0 0.0
    %3141 = vmatmul.mubr.f32.gmra.mxu0 %v3069
    %v3142 = vpop.f32.mrf.mxu0
    %v3143 = vadd.f32 %v3063, %v3142
    %v3144 = vpop.f32.mrf.mxu0
    %3145 = vdwg.mxu0
    %v3146 = vmul.f32 %v3138, %v3138
    %v3147 = vmul.f32 %v3143, %v3143
    %v3148 = vmul.f32 %v3138, %v3146
    %v3149 = vmul.f32 %v3143, %v3147
    %v3150 = vmul.f32 %v3148, 0.044715
    %v3151 = vmul.f32 %v3149, 0.044715
    %v3152 = vadd.f32 %v3138, %v3150
    %v3153 = vadd.f32 %v3143, %v3151
    %v3154 = vmul.f32 %v3152, 0.7978846
    %v3155 = vmul.f32 %v3153, 0.7978846
    %v3156 = vtanh.pop %v3154
    %v3157 = vtanh.pop %v3155
    %v3158 = vadd.f32 %v3156, 1.0
    %v3159 = vadd.f32 %v3157, 1.0
    %v3160 = vmul.f32 %v3158, 0.5
    %v3161 = vmul.f32 %v3159, 0.5
    %v3162 = vmul.f32 %v3138, %v3160
    %v3163 = vmul.f32 %v3143, %v3161
    %s3164 = scalar_lea.vmem [#allocation13], 64
    %v3165 = vld [vmem:[%s3164] sm:$0xff]
    %v3166 = vld [vmem:[%s3164 + $0x8] sm:$0xff]
    %v3167 = vld [vmem:[%s3164 + $0x10] sm:$0xff]
    %v3168 = vld [vmem:[%s3164 + $0x18] sm:$0xff]
    %v3169 = vld [vmem:[%s3164 + $0x20] sm:$0xff]
    %v3170 = vld [vmem:[%s3164 + $0x28] sm:$0xff]
    %v3171 = vld [vmem:[%s3164 + $0x30] sm:$0xff]
    %v3172 = vld [vmem:[%s3164 + $0x38] sm:$0xff]
    %s3173 = scalar_lea.vmem %s19, 1
    %v3174 = vld [vmem:[%s3173] sm:$0x1]
    %v3176 = vlaneseq
    %v3177 = vshrl.u32 %v3176, 7
    %v3178 = vsub.s32 0, %v3177
    %v3179 = vrot.slane %v3174, %v3178
    %v3182 = vsel %vm1760, %v3162, 0
    %v3185 = vsel %vm1760, %v3163, 0
    %3187 = vmatprep.subr.mxu0 0.0
    %3188 = vmatpush1.msra.mxu0 0.0
    %3189 = vmatprep.subr.mxu0 0.0
    %3190 = vmatpush1.msra.mxu0 0.0
    %3191 = vmatprep.subr.mxu0 0.0
    %3192 = vmatpush1.msra.mxu0 0.0
    %3193 = vmatprep.subr.mxu0 0.0
    %3194 = vmatpush1.msra.mxu0 0.0
    %3195 = vmatprep.subr.mxu0 0.0
    %3196 = vmatpush1.msra.mxu0 0.0
    %3197 = vmatprep.subr.mxu0 0.0
    %3198 = vmatpush1.msra.mxu0 0.0
    %3199 = vmatprep.subr.mxu0 0.0
    %3200 = vmatpush1.msra.mxu0 0.0
    %3201 = vmatprep.subr.mxu0 0.0
    %3202 = vmatpush1.msra.mxu0 0.0
    %3203 = vmatprep.subr.mxu0 0.0
    %3204 = vmatpush1.msra.mxu0 %v3172
    %3205 = vmatprep.subr.mxu0 0.0
    %3206 = vmatpush1.msra.mxu0 %v3171
    %3207 = vmatprep.subr.mxu0 0.0
    %3208 = vmatpush1.msra.mxu0 %v3170
    %3209 = vmatprep.subr.mxu0 0.0
    %3210 = vmatpush1.msra.mxu0 %v3169
    %3211 = vmatprep.subr.mxu0 0.0
    %3212 = vmatpush1.msra.mxu0 %v3168
    %3213 = vmatprep.subr.mxu0 0.0
    %3214 = vmatpush1.msra.mxu0 %v3167
    %3215 = vmatprep.subr.mxu0 0.0
    %3216 = vmatpush1.msra.mxu0 %v3166
    %3217 = vmatprep.subr.mxu0 0.0
    %3218 = vmatpush1.msra.mxu0 %v3165
    %3219 = vmatprep.subr.mxu0 0.0
    %3220 = vmatpush2.msra.mxu0 0.0
    %3221 = vmatprep.subr.mxu0 0.0
    %3222 = vmatpush2.msra.mxu0 0.0
    %3223 = vmatprep.subr.mxu0 0.0
    %3224 = vmatpush2.msra.mxu0 0.0
    %3225 = vmatprep.subr.mxu0 0.0
    %3226 = vmatpush2.msra.mxu0 0.0
    %3227 = vmatprep.subr.mxu0 0.0
    %3228 = vmatpush2.msra.mxu0 0.0
    %3229 = vmatprep.subr.mxu0 0.0
    %3230 = vmatpush2.msra.mxu0 0.0
    %3231 = vmatprep.subr.mxu0 0.0
    %3232 = vmatpush2.msra.mxu0 0.0
    %3233 = vmatprep.subr.mxu0 0.0
    %3234 = vmatpush2.msra.mxu0 0.0
    %3235 = vmatprep.subr.mxu0 0.0
    %3236 = vmatpush2.msra.mxu0 0.0
    %3237 = vmatprep.subr.mxu0 0.0
    %3238 = vmatpush2.msra.mxu0 0.0
    %3239 = vmatprep.subr.mxu0 0.0
    %3240 = vmatpush2.msra.mxu0 0.0
    %3241 = vmatprep.subr.mxu0 0.0
    %3242 = vmatpush2.msra.mxu0 0.0
    %3243 = vmatprep.subr.mxu0 0.0
    %3244 = vmatpush2.msra.mxu0 0.0
    %3245 = vmatprep.subr.mxu0 0.0
    %3246 = vmatpush2.msra.mxu0 0.0
    %3247 = vmatprep.subr.mxu0 0.0
    %3248 = vmatpush2.msra.mxu0 0.0
    %3249 = vmatprep.subr.mxu0 0.0
    %3250 = vmatpush2.msra.mxu0 0.0
    %3251 = vmatprep.mubr.f32.mxu0 0.0
    %3252 = vmatmul.mubr.f32.gmra.mxu0 %v3182
    %v3253 = vpop.f32.mrf.mxu0
    %v3254 = vadd.f32 %v3179, %v3253
    %v3255 = vpop.f32.mrf.mxu0
    %3256 = vmatprep.mubr.f32.mxu0 0.0
    %3257 = vmatmul.mubr.f32.gmra.mxu0 %v3185
    %v3258 = vpop.f32.mrf.mxu0
    %v3259 = vadd.f32 %v3179, %v3258
    %v3260 = vpop.f32.mrf.mxu0
    %3261 = vdwg.mxu0
    %v3262 = vadd.f32 %v3254, %v3050
    %v3263 = vadd.f32 %v3259, %v3051
    %s3264 = scalar_lea.vmem %s20, 1
    %v3265 = vld [vmem:[%s3264] sm:$0x1]
    %s3266 = scalar_lea.vmem %s21, 1
    %v3267 = vld [vmem:[%s3266] sm:$0x1]
    %v3268 = vsel %vm407, %v3262, 0.0
    %3269 = vadd.xlane.f32.xlu0 %v3268
    %v3270 = vpop.xlane.xlu0 %3269
    %v3271 = vsel %vm407, %v3263, 0.0
    %3272 = vadd.xlane.f32.xlu0 %v3271
    %v3273 = vpop.xlane.xlu0 %3272
    %v3274 = vmul.f32 %v3270, %v414
    %v3275 = vmul.f32 %v3273, %v414
    %v3276 = vmul.f32 %v3262, %v3262
    %v3277 = vmul.f32 %v3263, %v3263
    %v3278 = vsel %vm407, %v3276, 0.0
    %3279 = vadd.xlane.f32.xlu0 %v3278
    %v3280 = vpop.xlane.xlu0 %3279
    %v3281 = vsel %vm407, %v3277, 0.0
    %3282 = vadd.xlane.f32.xlu0 %v3281
    %v3283 = vpop.xlane.xlu0 %3282
    %v3284 = vmul.f32 %v3280, %v414
    %v3285 = vmul.f32 %v3283, %v414
    %v3286 = vmul.f32 %v3274, %v3274
    %v3287 = vmul.f32 %v3275, %v3275
    %v3288 = vsub.f32 %v3284, %v3286
    %v3289 = vsub.f32 %v3285, %v3287
    %v3290 = vsub.f32 %v3262, %v3274
    %v3291 = vsub.f32 %v3263, %v3275
    %v3292 = vadd.f32 %v3288, 1e-12
    %v3293 = vadd.f32 %v3289, 1e-12
    %v3294 = vrsqrt.pop %v3292
    %v3295 = vrsqrt.pop %v3293
    %v3296 = vmul.f32 %v3290, %v3294
    %v3297 = vmul.f32 %v3291, %v3295
    %v3299 = vlaneseq
    %v3300 = vshrl.u32 %v3299, 7
    %v3301 = vsub.s32 0, %v3300
    %v3302 = vrot.slane %v3265, %v3301
    %v3304 = vmul.f32 %v3296, %v3302
    %v3305 = vmul.f32 %v3297, %v3302
    %v3307 = vlaneseq
    %v3308 = vshrl.u32 %v3307, 7
    %v3309 = vsub.s32 0, %v3308
    %v3310 = vrot.slane %v3267, %v3309
    %v3312 = vadd.f32 %v3304, %v3310
    %v3313 = vadd.f32 %v3305, %v3310
    %v3314 = vld [vmem:[#allocation14] sm:$0xff]
    %v3315 = vld [vmem:[#allocation14 + $0x8] sm:$0xff]
    %v3316 = vld [vmem:[#allocation14 + $0x10] sm:$0xff]
    %v3317 = vld [vmem:[#allocation14 + $0x18] sm:$0xff]
    %v3318 = vld [vmem:[%s23] sm:$0x1]
    %v3320 = vlaneseq
    %v3321 = vshrl.u32 %v3320, 7
    %v3322 = vsub.s32 0, %v3321
    %v3323 = vrot.slane %v3318, %v3322
    %v3326 = vsel %vm407, %v3312, 0
    %v3329 = vsel %vm407, %v3313, 0
    %3331 = vmatprep.subr.mxu0 0.0
    %3332 = vmatpush1.msra.mxu0 0.0
    %3333 = vmatprep.subr.mxu0 0.0
    %3334 = vmatpush1.msra.mxu0 0.0
    %3335 = vmatprep.subr.mxu0 0.0
    %3336 = vmatpush1.msra.mxu0 0.0
    %3337 = vmatprep.subr.mxu0 0.0
    %3338 = vmatpush1.msra.mxu0 0.0
    %3339 = vmatprep.subr.mxu0 0.0
    %3340 = vmatpush1.msra.mxu0 0.0
    %3341 = vmatprep.subr.mxu0 0.0
    %3342 = vmatpush1.msra.mxu0 0.0
    %3343 = vmatprep.subr.mxu0 0.0
    %3344 = vmatpush1.msra.mxu0 0.0
    %3345 = vmatprep.subr.mxu0 0.0
    %3346 = vmatpush1.msra.mxu0 0.0
    %3347 = vmatprep.subr.mxu0 0.0
    %3348 = vmatpush1.msra.mxu0 0.0
    %3349 = vmatprep.subr.mxu0 0.0
    %3350 = vmatpush1.msra.mxu0 0.0
    %3351 = vmatprep.subr.mxu0 0.0
    %3352 = vmatpush1.msra.mxu0 0.0
    %3353 = vmatprep.subr.mxu0 0.0
    %3354 = vmatpush1.msra.mxu0 0.0
    %3355 = vmatprep.subr.mxu0 0.0
    %3356 = vmatpush1.msra.mxu0 %v3317
    %3357 = vmatprep.subr.mxu0 0.0
    %3358 = vmatpush1.msra.mxu0 %v3316
    %3359 = vmatprep.subr.mxu0 0.0
    %3360 = vmatpush1.msra.mxu0 %v3315
    %3361 = vmatprep.subr.mxu0 0.0
    %3362 = vmatpush1.msra.mxu0 %v3314
    %3363 = vmatprep.subr.mxu0 0.0
    %3364 = vmatpush2.msra.mxu0 0.0
    %3365 = vmatprep.subr.mxu0 0.0
    %3366 = vmatpush2.msra.mxu0 0.0
    %3367 = vmatprep.subr.mxu0 0.0
    %3368 = vmatpush2.msra.mxu0 0.0
    %3369 = vmatprep.subr.mxu0 0.0
    %3370 = vmatpush2.msra.mxu0 0.0
    %3371 = vmatprep.subr.mxu0 0.0
    %3372 = vmatpush2.msra.mxu0 0.0
    %3373 = vmatprep.subr.mxu0 0.0
    %3374 = vmatpush2.msra.mxu0 0.0
    %3375 = vmatprep.subr.mxu0 0.0
    %3376 = vmatpush2.msra.mxu0 0.0
    %3377 = vmatprep.subr.mxu0 0.0
    %3378 = vmatpush2.msra.mxu0 0.0
    %3379 = vmatprep.subr.mxu0 0.0
    %3380 = vmatpush2.msra.mxu0 0.0
    %3381 = vmatprep.subr.mxu0 0.0
    %3382 = vmatpush2.msra.mxu0 0.0
    %3383 = vmatprep.subr.mxu0 0.0
    %3384 = vmatpush2.msra.mxu0 0.0
    %3385 = vmatprep.subr.mxu0 0.0
    %3386 = vmatpush2.msra.mxu0 0.0
    %3387 = vmatprep.subr.mxu0 0.0
    %3388 = vmatpush2.msra.mxu0 0.0
    %3389 = vmatprep.subr.mxu0 0.0
    %3390 = vmatpush2.msra.mxu0 0.0
    %3391 = vmatprep.subr.mxu0 0.0
    %3392 = vmatpush2.msra.mxu0 0.0
    %3393 = vmatprep.subr.mxu0 0.0
    %3394 = vmatpush2.msra.mxu0 0.0
    %3395 = vmatprep.mubr.f32.mxu0 0.0
    %3396 = vmatmul.mubr.f32.gmra.mxu0 %v3326
    %v3397 = vpop.f32.mrf.mxu0
    %v3398 = vadd.f32 %v3323, %v3397
    %v3399 = vpop.f32.mrf.mxu0
    %3400 = vmatprep.mubr.f32.mxu0 0.0
    %3401 = vmatmul.mubr.f32.gmra.mxu0 %v3329
    %v3402 = vpop.f32.mrf.mxu0
    %v3403 = vadd.f32 %v3323, %v3402
    %v3404 = vpop.f32.mrf.mxu0
    %3405 = vdwg.mxu0
    %vm3406 = vcmask 8192
    %3407 = vst.msk [vmem:[#allocation16] sm:$0x1] %vm3406, %v3398
    %3408 = vst.msk [vmem:[#allocation16 + $0x1] sm:$0x1] %vm3406, %v3403
    // Predicated region
    $region130: #{text_only_spammer_forward.1} parent=1 // pred_check
      _
    $region131: #{text_only_spammer_forward.1} parent=1 // pred_check_branch
      %3410 = sbr.rel (0) target = $region133
    $region132: #{text_only_spammer_forward.1} parent=1 // pred_region
      %s3412 = ssub.s32 32, 32
      %3413 = vsyncadd [#allocation4], %s3412
      %s3415 = sshll.u32 [#allocation16], 4
      %s3416 = int_to_ptr.vmem [resolvable:$true] %s3415
      %3418 = dma.vmem_to_hbm [thread:$0]  %s3416, 32, %s24, [#allocation4]
    $region133: #{text_only_spammer_forward.1} parent=1 // pred_fallthru
      _
    // Predicated region
    $region134: #{text_only_spammer_forward.1} parent=1 // pred_check
      _
    $region135: #{text_only_spammer_forward.1} parent=1 // pred_check_branch
      %3420 = sbr.rel (0) target = $region137
    $region136: #{text_only_spammer_forward.1} parent=1 // pred_region
      %3421 = dma.done [#allocation4], 32
    $region137: #{text_only_spammer_forward.1} parent=1 // pred_fallthru
      _
    %3422 = vsyncpa [#allocation3], 1
    %3423 = vsyncpa [#allocation6], 1
    %3424 = vsyncpa [#allocation9], 1
    %3425 = vsyncpa [#allocation12], 1
    %3426 = vsyncpa [#allocation15], 1
    %3427 = vsyncpa [#allocation4], 1

</llo_original>
